<compile_context>
chip_gen: v5e
topology: v5e:2x2
jax: 0.10.0
libtpu: 0.0.40
codegen_flags: <defaults>
</compile_context>

<pallas_src>
import math

import jax
import jax.numpy as jnp
from jax.experimental import pallas as pl
from jax.experimental.pallas import tpu as pltpu

MXU_DTYPE = jnp.bfloat16      # operand dtype for weight matmuls (f32 accumulate)
LN_EPS = 1e-5                 # nn.LayerNorm default

PARAM_KEYS = (
    "wq_s", "bq_s", "wk_s", "bk_s", "wv_s", "bv_s", "wo_s", "bo_s",
    "ln1_g", "ln1_b",
    "wq_e", "bq_e", "wk_e", "bk_e", "wv_e", "bv_e", "wo_e", "bo_e",
    "ln2_g", "ln2_b",
    "w1", "b1", "w2", "b2", "ln3_g", "ln3_b",
)


# ------------------------- fused decoder-stack kernel ----------------------- #

def _decoder_stack_kernel(
    # activations / masks (per-batch blocks, resident across the layer axis)
    x_ref, enc_ref, smask_ref, emask_ref,
    # self-attention params (per-layer blocks, per-head weight layout)
    wq_s_ref, bq_s_ref, wk_s_ref, bk_s_ref, wv_s_ref, bv_s_ref,
    wo_s_ref, bo_s_ref, ln1g_ref, ln1b_ref,
    # encoder-decoder attention params
    wq_e_ref, bq_e_ref, wk_e_ref, bk_e_ref, wv_e_ref, bv_e_ref,
    wo_e_ref, bo_e_ref, ln2g_ref, ln2b_ref,
    # FFN params
    w1_ref, b1_ref, w2_ref, b2_ref, ln3g_ref, ln3b_ref,
    # outputs
    out_ref, sscore_ref, escore_ref,
    # scratch: decoder state, resident in VMEM across the layer grid axis
    x_buf_ref):
  """One decoder layer for one batch element; grid = (batch, layer)."""
  l = pl.program_id(1)
  n_head = wq_s_ref.shape[1]
  model_dim = x_ref.shape[-1]

  # layer 0: load the embedded+PE input into the resident state buffer.
  @pl.when(l == 0)
  def _():
    x_buf_ref[...] = x_ref[0]

  x = x_buf_ref[...]                                   # (L1, D) f32
  enc_m = enc_ref[0].astype(MXU_DTYPE)                 # (L2, D) bf16

  # Additive key-padding masks, hoisted out of the head loops.
  zero = jnp.float32(0.0)
  neg = jnp.float32(-1e9)
  sbias = jnp.where(smask_ref[0] > 0.5, zero, neg)     # (1, L1)
  ebias = jnp.where(emask_ref[0] > 0.5, zero, neg)     # (1, L2)
  # TODO(synk): causal mask not applied (reference DecoderLayer not provided).

  def layernorm(h, g_ref, b_ref):
    mu = jnp.mean(h, axis=-1, keepdims=True)
    var = jnp.mean(jnp.square(h - mu), axis=-1, keepdims=True)
    return (h - mu) * jax.lax.rsqrt(var + LN_EPS) * g_ref[0] + b_ref[0]

  def mha(xq_m, xkv_m, bias, wq, bq, wk, bk, wv, bv, wo, bo, score_ref):
    # xq_m: (Lq, D) bf16, xkv_m: (Lk, D) bf16, bias: (1, Lk) f32.
    # Per-head weights are leading-dim slices of the weight refs, so no lane
    # sub-slicing / lane concatenation is needed anywhere in the kernel.
    lq = xq_m.shape[0]
    ctx = jnp.zeros((lq, model_dim), jnp.float32)
    for h in range(n_head):                            # static unroll over heads
      q = jnp.dot(xq_m, wq[0, h], preferred_element_type=jnp.float32) + bq[0, h]
      k = jnp.dot(xkv_m, wk[0, h], preferred_element_type=jnp.float32) + bk[0, h]
      v = jnp.dot(xkv_m, wv[0, h], preferred_element_type=jnp.float32) + bv[0, h]
      # 1/sqrt(key_dim) is folded into wq/bq at parameter-initialization time.
      s = jax.lax.dot_general(q, k, (((1,), (1,)), ((), ())),
                              preferred_element_type=jnp.float32) + bias
      m = jnp.max(s, axis=-1, keepdims=True)
      e = jnp.exp(s - m)
      p = e / jnp.sum(e, axis=-1, keepdims=True)       # exact softmax (emitted)
      # per-head write at a sublane offset (no lane concat, no wrapper transpose)
      score_ref[0, 0, h * lq:(h + 1) * lq, :] = p
      o = jnp.dot(p, v, preferred_element_type=jnp.float32)          # (Lq, vd)
      # per-head output projection, accumulated (== concat(heads) @ W_o)
      ctx = ctx + jnp.dot(o.astype(MXU_DTYPE), wo[0, h],
                          preferred_element_type=jnp.float32)
    return ctx + bo[0]

  # ---- masked multi-head self-attention + add & norm ---------------------- #
  x_m = x.astype(MXU_DTYPE)
  sa = mha(x_m, x_m, sbias,
           wq_s_ref, bq_s_ref, wk_s_ref, bk_s_ref, wv_s_ref, bv_s_ref,
           wo_s_ref, bo_s_ref, sscore_ref)
  x = layernorm(x + sa, ln1g_ref, ln1b_ref)

  # ---- multi-head encoder-decoder attention + add & norm ------------------ #
  x_m = x.astype(MXU_DTYPE)
  ea = mha(x_m, enc_m, ebias,
           wq_e_ref, bq_e_ref, wk_e_ref, bk_e_ref, wv_e_ref, bv_e_ref,
           wo_e_ref, bo_e_ref, escore_ref)
  x = layernorm(x + ea, ln2g_ref, ln2b_ref)

  # ---- position-wise feed-forward + add & norm ---------------------------- #
  hdn = jnp.dot(x.astype(MXU_DTYPE), w1_ref[0],
                preferred_element_type=jnp.float32) + b1_ref[0]
  hdn = jnp.maximum(hdn, 0.0)                          # ReLU
  ff = jnp.dot(hdn.astype(MXU_DTYPE), w2_ref[0],
               preferred_element_type=jnp.float32) + b2_ref[0]
  x = layernorm(x + ff, ln3g_ref, ln3b_ref)

  x_buf_ref[...] = x                                   # carry to next layer
  out_ref[0] = x.astype(out_ref.dtype)                 # written back per batch


def decoder_stack_pallas(x, enc_out, self_mask, enc_mask, p):
  """Runs the whole decoder layer stack in a single pallas_call."""
  B, L1, D = x.shape
  L2 = enc_out.shape[1]
  n_layers = p["w1"].shape[0]
  n_head = p["wq_s"].shape[1]

  smask = self_mask.astype(jnp.float32).reshape(B, 1, L1)
  emask = enc_mask.astype(jnp.float32).reshape(B, 1, L2)

  def batch_spec(shape):                 # (B, ...): one batch row per step
    rest = tuple(shape[1:])
    return pl.BlockSpec((1,) + rest, lambda b, l: (b,) + (0,) * len(rest))

  def layer_spec(shape):                 # (n_layers, ...): one layer per step
    rest = tuple(shape[1:])
    return pl.BlockSpec((1,) + rest, lambda b, l: (l,) + (0,) * len(rest))

  in_specs = ([batch_spec(x.shape), batch_spec(enc_out.shape),
               batch_spec(smask.shape), batch_spec(emask.shape)]
              + [layer_spec(p[k].shape) for k in PARAM_KEYS])

  out_shape = (
      jax.ShapeDtypeStruct((B, L1, D), jnp.float32),
      jax.ShapeDtypeStruct((n_layers, B, n_head * L1, L1), jnp.float32),
      jax.ShapeDtypeStruct((n_layers, B, n_head * L1, L2), jnp.float32),
  )
  out_specs = (
      pl.BlockSpec((1, L1, D), lambda b, l: (b, 0, 0)),   # resident across layers
      pl.BlockSpec((1, 1, n_head * L1, L1), lambda b, l: (l, b, 0, 0)),
      pl.BlockSpec((1, 1, n_head * L1, L2), lambda b, l: (l, b, 0, 0)),
  )

  out, sscore, escore = pl.pallas_call(
      _decoder_stack_kernel,
      grid=(B, n_layers),                 # layer axis innermost (sequential)
      in_specs=in_specs,
      out_specs=out_specs,
      out_shape=out_shape,
      scratch_shapes=[pltpu.VMEM((L1, D), jnp.float32)],   # resident decoder state
      compiler_params=pltpu.CompilerParams(
          dimension_semantics=("parallel", "arbitrary"),
          vmem_limit_bytes=32 * 1024 * 1024),
  )(x, enc_out, smask, emask, *[p[k] for k in PARAM_KEYS])

  sscore = sscore.reshape(n_layers, B, n_head, L1, L1)
  escore = escore.reshape(n_layers, B, n_head, L1, L2)
  return out, sscore, escore


# ------------------------------ model glue ---------------------------------- #

def decoder_forward(params, tokens, input_mask, encoder_output, encoder_mask):
  # embedding lookup + positional encoding are cheap XLA glue (gather / add)
  emb = params["embed"][tokens]                         # (B, L1, D)
  x = emb + params["pos_enc"][: emb.shape[1]][None]     # additive sinusoidal PE
  # TODO(synk): dropout(p=0.1) evaluated in eval mode -> identity.
  out, sscore, escore = decoder_stack_pallas(
      x, encoder_output, input_mask, encoder_mask, params)
  n_layers = sscore.shape[0]
  self_attn_score_list = [sscore[i] for i in range(n_layers)]
  enc_attn_score_list = [escore[i] for i in range(n_layers)]
  return out, self_attn_score_list, enc_attn_score_list


# --------------------------- parameter creation ----------------------------- #

def sinusoidal_pos_encoding(max_len, d):
  pos = jnp.arange(max_len, dtype=jnp.float32)[:, None]
  i = jnp.arange(d)[None, :]
  angle = pos / jnp.power(10000.0, (2 * (i // 2)).astype(jnp.float32) / d)
  return jnp.where(i % 2 == 0, jnp.sin(angle), jnp.cos(angle)).astype(jnp.float32)


def init_params(key, input_dim, model_dim, n_head, key_dim, value_dim,
                hidden_dim, n_layers, max_seq_len=200):
  """Per-head, layer-stacked decoder parameters.

  Weight matrices are stored in bfloat16 (MXU operand dtype); biases and
  LayerNorm parameters stay float32.  The 1/sqrt(key_dim) attention scale is
  folded into the Q projection weights (a nonzero Q bias would be scaled too).
  """
  scale = 1.0 / math.sqrt(key_dim)

  def normal(k, shape):
    return 0.02 * jax.random.normal(k, shape, jnp.float32)

  keys = jax.random.split(key, 1 + n_layers)
  layer_list = []
  for li in range(n_layers):
    lk = jax.random.split(keys[1 + li], 10)
    layer_list.append(dict(
        # masked multi-head self-attention (per-head weight layout)
        wq_s=(normal(lk[0], (n_head, model_dim, key_dim)) * scale).astype(MXU_DTYPE),
        bq_s=jnp.zeros((n_head, 1, key_dim), jnp.float32),
        wk_s=normal(lk[1], (n_head, model_dim, key_dim)).astype(MXU_DTYPE),
        bk_s=jnp.zeros((n_head, 1, key_dim), jnp.float32),
        wv_s=normal(lk[2], (n_head, model_dim, value_dim)).astype(MXU_DTYPE),
        bv_s=jnp.zeros((n_head, 1, value_dim), jnp.float32),
        wo_s=normal(lk[3], (n_head, value_dim, model_dim)).astype(MXU_DTYPE),
        bo_s=jnp.zeros((1, model_dim), jnp.float32),
        ln1_g=jnp.ones((1, model_dim), jnp.float32),
        ln1_b=jnp.zeros((1, model_dim), jnp.float32),
        # multi-head encoder-decoder attention
        wq_e=(normal(lk[4], (n_head, model_dim, key_dim)) * scale).astype(MXU_DTYPE),
        bq_e=jnp.zeros((n_head, 1, key_dim), jnp.float32),
        wk_e=normal(lk[5], (n_head, model_dim, key_dim)).astype(MXU_DTYPE),
        bk_e=jnp.zeros((n_head, 1, key_dim), jnp.float32),
        wv_e=normal(lk[6], (n_head, model_dim, value_dim)).astype(MXU_DTYPE),
        bv_e=jnp.zeros((n_head, 1, value_dim), jnp.float32),
        wo_e=normal(lk[7], (n_head, value_dim, model_dim)).astype(MXU_DTYPE),
        bo_e=jnp.zeros((1, model_dim), jnp.float32),
        ln2_g=jnp.ones((1, model_dim), jnp.float32),
        ln2_b=jnp.zeros((1, model_dim), jnp.float32),
        # position-wise feed-forward
        w1=normal(lk[8], (model_dim, hidden_dim)).astype(MXU_DTYPE),
        b1=jnp.zeros((1, hidden_dim), jnp.float32),
        w2=normal(lk[9], (hidden_dim, model_dim)).astype(MXU_DTYPE),
        b2=jnp.zeros((1, model_dim), jnp.float32),
        ln3_g=jnp.ones((1, model_dim), jnp.float32),
        ln3_b=jnp.zeros((1, model_dim), jnp.float32),
    ))

  params = {
      "embed": 0.02 * jax.random.normal(keys[0], (input_dim, model_dim),
                                        jnp.float32),
      "pos_enc": sinusoidal_pos_encoding(max_seq_len, model_dim),
  }
  for k in PARAM_KEYS:
    params[k] = jnp.stack([lp[k] for lp in layer_list], axis=0)
  return params


# ---------------------------------- main ------------------------------------ #

if __name__ == "__main__":
  input_dim, model_dim = 50, 32
  n_head, key_dim, value_dim = 4, 8, 8
  hidden_dim, n_layers = 64, 2
  B, L1, L2 = 2, 8, 10

  root = jax.random.PRNGKey(0)
  kp, kt, ke = jax.random.split(root, 3)

  params = init_params(kp, input_dim, model_dim, n_head, key_dim,
                       value_dim, hidden_dim, n_layers)

  tokens = jax.random.randint(kt, (B, L1), 0, input_dim, dtype=jnp.int32)
  input_mask = jnp.ones((B, L1), jnp.float32).at[1, -2:].set(0.0)
  encoder_output = jax.random.normal(ke, (B, L2, model_dim), jnp.float32)
  encoder_mask = jnp.ones((B, L2), jnp.float32).at[1, -3:].set(0.0)

  fwd = jax.jit(decoder_forward)
  decoding, self_scores, enc_scores = fwd(
      params, tokens, input_mask, encoder_output, encoder_mask)

  jax.block_until_ready((decoding, self_scores, enc_scores))

  assert decoding.shape == (B, L1, model_dim)
  assert len(self_scores) == n_layers
  assert self_scores[0].shape == (B, n_head, L1, L1)
  assert len(enc_scores) == n_layers
  assert enc_scores[0].shape == (B, n_head, L1, L2)
  assert bool(jnp.all(jnp.isfinite(decoding)))
  print("KERNEL_OK")
</pallas_src>

<mosaic_0001>
module attributes {stable_mosaic.version = 11 : i64} {
  func.func @_decoder_stack_kernel(%arg0: i32, %arg1: i32, %arg2: memref<1x8x32xf32, #tpu.memory_space<vmem>>, %arg3: memref<1x10x32xf32, #tpu.memory_space<vmem>>, %arg4: memref<1x1x8xf32, #tpu.memory_space<vmem>>, %arg5: memref<1x1x10xf32, #tpu.memory_space<vmem>>, %arg6: memref<1x4x32x8xbf16, #tpu.memory_space<vmem>>, %arg7: memref<1x4x1x8xf32, #tpu.memory_space<vmem>>, %arg8: memref<1x4x32x8xbf16, #tpu.memory_space<vmem>>, %arg9: memref<1x4x1x8xf32, #tpu.memory_space<vmem>>, %arg10: memref<1x4x32x8xbf16, #tpu.memory_space<vmem>>, %arg11: memref<1x4x1x8xf32, #tpu.memory_space<vmem>>, %arg12: memref<1x4x8x32xbf16, #tpu.memory_space<vmem>>, %arg13: memref<1x1x32xf32, #tpu.memory_space<vmem>>, %arg14: memref<1x1x32xf32, #tpu.memory_space<vmem>>, %arg15: memref<1x1x32xf32, #tpu.memory_space<vmem>>, %arg16: memref<1x4x32x8xbf16, #tpu.memory_space<vmem>>, %arg17: memref<1x4x1x8xf32, #tpu.memory_space<vmem>>, %arg18: memref<1x4x32x8xbf16, #tpu.memory_space<vmem>>, %arg19: memref<1x4x1x8xf32, #tpu.memory_space<vmem>>, %arg20: memref<1x4x32x8xbf16, #tpu.memory_space<vmem>>, %arg21: memref<1x4x1x8xf32, #tpu.memory_space<vmem>>, %arg22: memref<1x4x8x32xbf16, #tpu.memory_space<vmem>>, %arg23: memref<1x1x32xf32, #tpu.memory_space<vmem>>, %arg24: memref<1x1x32xf32, #tpu.memory_space<vmem>>, %arg25: memref<1x1x32xf32, #tpu.memory_space<vmem>>, %arg26: memref<1x32x64xbf16, #tpu.memory_space<vmem>>, %arg27: memref<1x1x64xf32, #tpu.memory_space<vmem>>, %arg28: memref<1x64x32xbf16, #tpu.memory_space<vmem>>, %arg29: memref<1x1x32xf32, #tpu.memory_space<vmem>>, %arg30: memref<1x1x32xf32, #tpu.memory_space<vmem>>, %arg31: memref<1x1x32xf32, #tpu.memory_space<vmem>>, %arg32: memref<1x8x32xf32, #tpu.memory_space<vmem>>, %arg33: memref<1x1x32x8xf32, #tpu.memory_space<vmem>>, %arg34: memref<1x1x32x10xf32, #tpu.memory_space<vmem>>, %arg35: memref<8x32xf32, #tpu.memory_space<vmem>>) attributes {dimension_semantics = [#tpu.dimension_semantics<parallel>, #tpu.dimension_semantics<arbitrary>], iteration_bounds = array<i64: 2, 2>, scalar_prefetch = 0 : i64, scratch_operands = 1 : i64, tpu.core_type = #tpu.core_type<tc>, window_params = [{transform_indices = @transform_0, window_bounds = array<i64: 1, 8, 32>}, {transform_indices = @transform_1, window_bounds = array<i64: 1, 10, 32>}, {transform_indices = @transform_2, window_bounds = array<i64: 1, 1, 8>}, {transform_indices = @transform_3, window_bounds = array<i64: 1, 1, 10>}, {transform_indices = @transform_4, window_bounds = array<i64: 1, 4, 32, 8>}, {transform_indices = @transform_5, window_bounds = array<i64: 1, 4, 1, 8>}, {transform_indices = @transform_6, window_bounds = array<i64: 1, 4, 32, 8>}, {transform_indices = @transform_7, window_bounds = array<i64: 1, 4, 1, 8>}, {transform_indices = @transform_8, window_bounds = array<i64: 1, 4, 32, 8>}, {transform_indices = @transform_9, window_bounds = array<i64: 1, 4, 1, 8>}, {transform_indices = @transform_10, window_bounds = array<i64: 1, 4, 8, 32>}, {transform_indices = @transform_11, window_bounds = array<i64: 1, 1, 32>}, {transform_indices = @transform_12, window_bounds = array<i64: 1, 1, 32>}, {transform_indices = @transform_13, window_bounds = array<i64: 1, 1, 32>}, {transform_indices = @transform_14, window_bounds = array<i64: 1, 4, 32, 8>}, {transform_indices = @transform_15, window_bounds = array<i64: 1, 4, 1, 8>}, {transform_indices = @transform_16, window_bounds = array<i64: 1, 4, 32, 8>}, {transform_indices = @transform_17, window_bounds = array<i64: 1, 4, 1, 8>}, {transform_indices = @transform_18, window_bounds = array<i64: 1, 4, 32, 8>}, {transform_indices = @transform_19, window_bounds = array<i64: 1, 4, 1, 8>}, {transform_indices = @transform_20, window_bounds = array<i64: 1, 4, 8, 32>}, {transform_indices = @transform_21, window_bounds = array<i64: 1, 1, 32>}, {transform_indices = @transform_22, window_bounds = array<i64: 1, 1, 32>}, {transform_indices = @transform_23, window_bounds = array<i64: 1, 1, 32>}, {transform_indices = @transform_24, window_bounds = array<i64: 1, 32, 64>}, {transform_indices = @transform_25, window_bounds = array<i64: 1, 1, 64>}, {transform_indices = @transform_26, window_bounds = array<i64: 1, 64, 32>}, {transform_indices = @transform_27, window_bounds = array<i64: 1, 1, 32>}, {transform_indices = @transform_28, window_bounds = array<i64: 1, 1, 32>}, {transform_indices = @transform_29, window_bounds = array<i64: 1, 1, 32>}, {transform_indices = @transform_30, window_bounds = array<i64: 1, 8, 32>}, {transform_indices = @transform_31, window_bounds = array<i64: 1, 1, 32, 8>}, {transform_indices = @transform_32, window_bounds = array<i64: 1, 1, 32, 10>}]} {
    %c0_i32 = arith.constant 0 : i32
    %0 = arith.cmpi eq, %arg1, %c0_i32 : i32
    %1 = arith.extui %0 : i1 to i32
    %c0_i32_0 = arith.constant 0 : i32
    %2 = arith.cmpi ne, %1, %c0_i32_0 : i32
    scf.if %2 {
      %c0_391 = arith.constant 0 : index
      %c0_392 = arith.constant 0 : index
      %c0_393 = arith.constant 0 : index
      %472 = vector.load %arg2[%c0_391, %c0_392, %c0_393] : memref<1x8x32xf32, #tpu.memory_space<vmem>>, vector<1x8x32xf32>
      %473 = vector.shape_cast %472 : vector<1x8x32xf32> to vector<8x32xf32>
      %c0_394 = arith.constant 0 : index
      %c0_395 = arith.constant 0 : index
      %474 = vector.load %arg35[%c0_394, %c0_395] : memref<8x32xf32, #tpu.memory_space<vmem>>, vector<8x32xf32>
      tpu.vector_store %arg35[%c0_394, %c0_395], %473 {strides = array<i32>} : memref<8x32xf32, #tpu.memory_space<vmem>>, vector<8x32xf32>,
    } else {
    }
    %c0 = arith.constant 0 : index
    %c0_1 = arith.constant 0 : index
    %3 = vector.load %arg35[%c0, %c0_1] : memref<8x32xf32, #tpu.memory_space<vmem>>, vector<8x32xf32>
    %c0_2 = arith.constant 0 : index
    %c0_3 = arith.constant 0 : index
    %c0_4 = arith.constant 0 : index
    %4 = vector.load %arg3[%c0_2, %c0_3, %c0_4] : memref<1x10x32xf32, #tpu.memory_space<vmem>>, vector<1x10x32xf32>
    %5 = vector.shape_cast %4 : vector<1x10x32xf32> to vector<10x32xf32>
    %6 = arith.truncf %5 : vector<10x32xf32> to vector<10x32xbf16>
    %c0_5 = arith.constant 0 : index
    %c0_6 = arith.constant 0 : index
    %c0_7 = arith.constant 0 : index
    %7 = vector.load %arg4[%c0_5, %c0_6, %c0_7] : memref<1x1x8xf32, #tpu.memory_space<vmem>>, vector<1x1x8xf32>
    %8 = vector.shape_cast %7 : vector<1x1x8xf32> to vector<1x8xf32>
    %cst = arith.constant 5.000000e-01 : f32
    %9 = vector.broadcast %cst : f32 to vector<1x8xf32>
    %10 = arith.cmpf ogt, %8, %9 : vector<1x8xf32>
    %cst_8 = arith.constant 0.000000e+00 : f32
    %cst_9 = arith.constant -1.000000e+09 : f32
    %11 = vector.broadcast %cst_8 : f32 to vector<1x8xf32>
    %12 = vector.broadcast %cst_9 : f32 to vector<1x8xf32>
    %13 = arith.select %10, %11, %12 : vector<1x8xi1>, vector<1x8xf32>
    %c0_10 = arith.constant 0 : index
    %c0_11 = arith.constant 0 : index
    %c0_12 = arith.constant 0 : index
    %14 = vector.load %arg5[%c0_10, %c0_11, %c0_12] : memref<1x1x10xf32, #tpu.memory_space<vmem>>, vector<1x1x10xf32>
    %15 = vector.shape_cast %14 : vector<1x1x10xf32> to vector<1x10xf32>
    %cst_13 = arith.constant 5.000000e-01 : f32
    %16 = vector.broadcast %cst_13 : f32 to vector<1x10xf32>
    %17 = arith.cmpf ogt, %15, %16 : vector<1x10xf32>
    %cst_14 = arith.constant 0.000000e+00 : f32
    %cst_15 = arith.constant -1.000000e+09 : f32
    %18 = vector.broadcast %cst_14 : f32 to vector<1x10xf32>
    %19 = vector.broadcast %cst_15 : f32 to vector<1x10xf32>
    %20 = arith.select %17, %18, %19 : vector<1x10xi1>, vector<1x10xf32>
    %21 = arith.truncf %3 : vector<8x32xf32> to vector<8x32xbf16>
    %cst_16 = arith.constant 0.000000e+00 : f32
    %22 = vector.broadcast %cst_16 : f32 to vector<8x32xf32>
    %c0_17 = arith.constant 0 : index
    %c0_18 = arith.constant 0 : index
    %c0_19 = arith.constant 0 : index
    %c0_20 = arith.constant 0 : index
    %23 = vector.load %arg6[%c0_17, %c0_18, %c0_19, %c0_20] : memref<1x4x32x8xbf16, #tpu.memory_space<vmem>>, vector<1x1x32x8xbf16>
    %24 = vector.shape_cast %23 : vector<1x1x32x8xbf16> to vector<32x8xbf16>
    %cst_21 = arith.constant dense<0.000000e+00> : vector<8x8xf32>
    %25 = tpu.matmul %21, %24, %cst_21 {dimension_numbers = #tpu.dot_dimension_numbers<[1], [0], [0], [1], [0, 0, 1, 1], [], []>} : vector<8x32xbf16>, vector<32x8xbf16>, vector<8x8xf32> -> vector<8x8xf32>
    %c0_22 = arith.constant 0 : index
    %c0_23 = arith.constant 0 : index
    %c0_24 = arith.constant 0 : index
    %c0_25 = arith.constant 0 : index
    %26 = vector.load %arg7[%c0_22, %c0_23, %c0_24, %c0_25] : memref<1x4x1x8xf32, #tpu.memory_space<vmem>>, vector<1x1x1x8xf32>
    %27 = vector.shape_cast %26 : vector<1x1x1x8xf32> to vector<1x8xf32>
    %28 = vector.broadcast %27 : vector<1x8xf32> to vector<8x8xf32>
    %29 = arith.addf %25, %28 : vector<8x8xf32>
    %c0_26 = arith.constant 0 : index
    %c0_27 = arith.constant 0 : index
    %c0_28 = arith.constant 0 : index
    %c0_29 = arith.constant 0 : index
    %30 = vector.load %arg8[%c0_26, %c0_27, %c0_28, %c0_29] : memref<1x4x32x8xbf16, #tpu.memory_space<vmem>>, vector<1x1x32x8xbf16>
    %31 = vector.shape_cast %30 : vector<1x1x32x8xbf16> to vector<32x8xbf16>
    %cst_30 = arith.constant dense<0.000000e+00> : vector<8x8xf32>
    %32 = tpu.matmul %21, %31, %cst_30 {dimension_numbers = #tpu.dot_dimension_numbers<[1], [0], [0], [1], [0, 0, 1, 1], [], []>} : vector<8x32xbf16>, vector<32x8xbf16>, vector<8x8xf32> -> vector<8x8xf32>
    %c0_31 = arith.constant 0 : index
    %c0_32 = arith.constant 0 : index
    %c0_33 = arith.constant 0 : index
    %c0_34 = arith.constant 0 : index
    %33 = vector.load %arg9[%c0_31, %c0_32, %c0_33, %c0_34] : memref<1x4x1x8xf32, #tpu.memory_space<vmem>>, vector<1x1x1x8xf32>
    %34 = vector.shape_cast %33 : vector<1x1x1x8xf32> to vector<1x8xf32>
    %35 = vector.broadcast %34 : vector<1x8xf32> to vector<8x8xf32>
    %36 = arith.addf %32, %35 : vector<8x8xf32>
    %c0_35 = arith.constant 0 : index
    %c0_36 = arith.constant 0 : index
    %c0_37 = arith.constant 0 : index
    %c0_38 = arith.constant 0 : index
    %37 = vector.load %arg10[%c0_35, %c0_36, %c0_37, %c0_38] : memref<1x4x32x8xbf16, #tpu.memory_space<vmem>>, vector<1x1x32x8xbf16>
    %38 = vector.shape_cast %37 : vector<1x1x32x8xbf16> to vector<32x8xbf16>
    %cst_39 = arith.constant dense<0.000000e+00> : vector<8x8xf32>
    %39 = tpu.matmul %21, %38, %cst_39 {dimension_numbers = #tpu.dot_dimension_numbers<[1], [0], [0], [1], [0, 0, 1, 1], [], []>} : vector<8x32xbf16>, vector<32x8xbf16>, vector<8x8xf32> -> vector<8x8xf32>
    %c0_40 = arith.constant 0 : index
    %c0_41 = arith.constant 0 : index
    %c0_42 = arith.constant 0 : index
    %c0_43 = arith.constant 0 : index
    %40 = vector.load %arg11[%c0_40, %c0_41, %c0_42, %c0_43] : memref<1x4x1x8xf32, #tpu.memory_space<vmem>>, vector<1x1x1x8xf32>
    %41 = vector.shape_cast %40 : vector<1x1x1x8xf32> to vector<1x8xf32>
    %42 = vector.broadcast %41 : vector<1x8xf32> to vector<8x8xf32>
    %43 = arith.addf %39, %42 : vector<8x8xf32>
    %cst_44 = arith.constant dense<0.000000e+00> : vector<8x8xf32>
    %44 = tpu.matmul %29, %36, %cst_44 {dimension_numbers = #tpu.dot_dimension_numbers<[1], [1], [0], [0], [0, 0, 1, 0], [], []>} : vector<8x8xf32>, vector<8x8xf32>, vector<8x8xf32> -> vector<8x8xf32>
    %45 = vector.broadcast %13 : vector<1x8xf32> to vector<8x8xf32>
    %46 = arith.addf %44, %45 : vector<8x8xf32>
    %cst_45 = arith.constant dense<0xFF800000> : vector<8xf32>
    %47 = vector.multi_reduction <maximumf>, %46, %cst_45 [1] : vector<8x8xf32> to vector<8xf32>
    %48 = vector.shape_cast %47 : vector<8xf32> to vector<8x1xf32>
    %49 = vector.broadcast %48 : vector<8x1xf32> to vector<8x8xf32>
    %50 = arith.subf %46, %49 : vector<8x8xf32>
    %51 = math.exp %50 : vector<8x8xf32>
    %cst_46 = arith.constant dense<0.000000e+00> : vector<8xf32>
    %52 = vector.multi_reduction <add>, %51, %cst_46 [1] : vector<8x8xf32> to vector<8xf32>
    %53 = vector.shape_cast %52 : vector<8xf32> to vector<8x1xf32>
    %54 = vector.broadcast %53 : vector<8x1xf32> to vector<8x8xf32>
    %55 = arith.divf %51, %54 : vector<8x8xf32>
    %c0_47 = arith.constant 0 : index
    %c0_48 = arith.constant 0 : index
    %c0_49 = arith.constant 0 : index
    %c0_50 = arith.constant 0 : index
    %56 = vector.load %arg33[%c0_47, %c0_48, %c0_49, %c0_50] : memref<1x1x32x8xf32, #tpu.memory_space<vmem>>, vector<1x1x8x8xf32>
    %57 = vector.shape_cast %56 : vector<1x1x8x8xf32> to vector<8x8xf32>
    %58 = vector.shape_cast %55 : vector<8x8xf32> to vector<1x1x8x8xf32>
    tpu.vector_store %arg33[%c0_47, %c0_48, %c0_49, %c0_50], %58 {strides = array<i32>} : memref<1x1x32x8xf32, #tpu.memory_space<vmem>>, vector<1x1x8x8xf32>,
    %cst_51 = arith.constant dense<0.000000e+00> : vector<8x8xf32>
    %59 = tpu.matmul %55, %43, %cst_51 {dimension_numbers = #tpu.dot_dimension_numbers<[1], [0], [0], [1], [0, 0, 1, 1], [], []>} : vector<8x8xf32>, vector<8x8xf32>, vector<8x8xf32> -> vector<8x8xf32>
    %60 = arith.truncf %59 : vector<8x8xf32> to vector<8x8xbf16>
    %c0_52 = arith.constant 0 : index
    %c0_53 = arith.constant 0 : index
    %c0_54 = arith.constant 0 : index
    %c0_55 = arith.constant 0 : index
    %61 = vector.load %arg12[%c0_52, %c0_53, %c0_54, %c0_55] : memref<1x4x8x32xbf16, #tpu.memory_space<vmem>>, vector<1x1x8x32xbf16>
    %62 = vector.shape_cast %61 : vector<1x1x8x32xbf16> to vector<8x32xbf16>
    %cst_56 = arith.constant dense<0.000000e+00> : vector<8x32xf32>
    %63 = tpu.matmul %60, %62, %cst_56 {dimension_numbers = #tpu.dot_dimension_numbers<[1], [0], [0], [1], [0, 0, 1, 1], [], []>} : vector<8x8xbf16>, vector<8x32xbf16>, vector<8x32xf32> -> vector<8x32xf32>
    %64 = arith.addf %22, %63 : vector<8x32xf32>
    %c0_57 = arith.constant 0 : index
    %c1 = arith.constant 1 : index
    %c0_58 = arith.constant 0 : index
    %c0_59 = arith.constant 0 : index
    %65 = vector.load %arg6[%c0_57, %c1, %c0_58, %c0_59] : memref<1x4x32x8xbf16, #tpu.memory_space<vmem>>, vector<1x1x32x8xbf16>
    %66 = vector.shape_cast %65 : vector<1x1x32x8xbf16> to vector<32x8xbf16>
    %cst_60 = arith.constant dense<0.000000e+00> : vector<8x8xf32>
    %67 = tpu.matmul %21, %66, %cst_60 {dimension_numbers = #tpu.dot_dimension_numbers<[1], [0], [0], [1], [0, 0, 1, 1], [], []>} : vector<8x32xbf16>, vector<32x8xbf16>, vector<8x8xf32> -> vector<8x8xf32>
    %c0_61 = arith.constant 0 : index
    %c1_62 = arith.constant 1 : index
    %c0_63 = arith.constant 0 : index
    %c0_64 = arith.constant 0 : index
    %68 = vector.load %arg7[%c0_61, %c1_62, %c0_63, %c0_64] : memref<1x4x1x8xf32, #tpu.memory_space<vmem>>, vector<1x1x1x8xf32>
    %69 = vector.shape_cast %68 : vector<1x1x1x8xf32> to vector<1x8xf32>
    %70 = vector.broadcast %69 : vector<1x8xf32> to vector<8x8xf32>
    %71 = arith.addf %67, %70 : vector<8x8xf32>
    %c0_65 = arith.constant 0 : index
    %c1_66 = arith.constant 1 : index
    %c0_67 = arith.constant 0 : index
    %c0_68 = arith.constant 0 : index
    %72 = vector.load %arg8[%c0_65, %c1_66, %c0_67, %c0_68] : memref<1x4x32x8xbf16, #tpu.memory_space<vmem>>, vector<1x1x32x8xbf16>
    %73 = vector.shape_cast %72 : vector<1x1x32x8xbf16> to vector<32x8xbf16>
    %cst_69 = arith.constant dense<0.000000e+00> : vector<8x8xf32>
    %74 = tpu.matmul %21, %73, %cst_69 {dimension_numbers = #tpu.dot_dimension_numbers<[1], [0], [0], [1], [0, 0, 1, 1], [], []>} : vector<8x32xbf16>, vector<32x8xbf16>, vector<8x8xf32> -> vector<8x8xf32>
    %c0_70 = arith.constant 0 : index
    %c1_71 = arith.constant 1 : index
    %c0_72 = arith.constant 0 : index
    %c0_73 = arith.constant 0 : index
    %75 = vector.load %arg9[%c0_70, %c1_71, %c0_72, %c0_73] : memref<1x4x1x8xf32, #tpu.memory_space<vmem>>, vector<1x1x1x8xf32>
    %76 = vector.shape_cast %75 : vector<1x1x1x8xf32> to vector<1x8xf32>
    %77 = vector.broadcast %76 : vector<1x8xf32> to vector<8x8xf32>
    %78 = arith.addf %74, %77 : vector<8x8xf32>
    %c0_74 = arith.constant 0 : index
    %c1_75 = arith.constant 1 : index
    %c0_76 = arith.constant 0 : index
    %c0_77 = arith.constant 0 : index
    %79 = vector.load %arg10[%c0_74, %c1_75, %c0_76, %c0_77] : memref<1x4x32x8xbf16, #tpu.memory_space<vmem>>, vector<1x1x32x8xbf16>
    %80 = vector.shape_cast %79 : vector<1x1x32x8xbf16> to vector<32x8xbf16>
    %cst_78 = arith.constant dense<0.000000e+00> : vector<8x8xf32>
    %81 = tpu.matmul %21, %80, %cst_78 {dimension_numbers = #tpu.dot_dimension_numbers<[1], [0], [0], [1], [0, 0, 1, 1], [], []>} : vector<8x32xbf16>, vector<32x8xbf16>, vector<8x8xf32> -> vector<8x8xf32>
    %c0_79 = arith.constant 0 : index
    %c1_80 = arith.constant 1 : index
    %c0_81 = arith.constant 0 : index
    %c0_82 = arith.constant 0 : index
    %82 = vector.load %arg11[%c0_79, %c1_80, %c0_81, %c0_82] : memref<1x4x1x8xf32, #tpu.memory_space<vmem>>, vector<1x1x1x8xf32>
    %83 = vector.shape_cast %82 : vector<1x1x1x8xf32> to vector<1x8xf32>
    %84 = vector.broadcast %83 : vector<1x8xf32> to vector<8x8xf32>
    %85 = arith.addf %81, %84 : vector<8x8xf32>
    %cst_83 = arith.constant dense<0.000000e+00> : vector<8x8xf32>
    %86 = tpu.matmul %71, %78, %cst_83 {dimension_numbers = #tpu.dot_dimension_numbers<[1], [1], [0], [0], [0, 0, 1, 0], [], []>} : vector<8x8xf32>, vector<8x8xf32>, vector<8x8xf32> -> vector<8x8xf32>
    %87 = vector.broadcast %13 : vector<1x8xf32> to vector<8x8xf32>
    %88 = arith.addf %86, %87 : vector<8x8xf32>
    %cst_84 = arith.constant dense<0xFF800000> : vector<8xf32>
    %89 = vector.multi_reduction <maximumf>, %88, %cst_84 [1] : vector<8x8xf32> to vector<8xf32>
    %90 = vector.shape_cast %89 : vector<8xf32> to vector<8x1xf32>
    %91 = vector.broadcast %90 : vector<8x1xf32> to vector<8x8xf32>
    %92 = arith.subf %88, %91 : vector<8x8xf32>
    %93 = math.exp %92 : vector<8x8xf32>
    %cst_85 = arith.constant dense<0.000000e+00> : vector<8xf32>
    %94 = vector.multi_reduction <add>, %93, %cst_85 [1] : vector<8x8xf32> to vector<8xf32>
    %95 = vector.shape_cast %94 : vector<8xf32> to vector<8x1xf32>
    %96 = vector.broadcast %95 : vector<8x1xf32> to vector<8x8xf32>
    %97 = arith.divf %93, %96 : vector<8x8xf32>
    %c0_86 = arith.constant 0 : index
    %c0_87 = arith.constant 0 : index
    %c8 = arith.constant 8 : index
    %c0_88 = arith.constant 0 : index
    %98 = vector.load %arg33[%c0_86, %c0_87, %c8, %c0_88] : memref<1x1x32x8xf32, #tpu.memory_space<vmem>>, vector<1x1x8x8xf32>
    %99 = vector.shape_cast %98 : vector<1x1x8x8xf32> to vector<8x8xf32>
    %100 = vector.shape_cast %97 : vector<8x8xf32> to vector<1x1x8x8xf32>
    tpu.vector_store %arg33[%c0_86, %c0_87, %c8, %c0_88], %100 {strides = array<i32>} : memref<1x1x32x8xf32, #tpu.memory_space<vmem>>, vector<1x1x8x8xf32>,
    %cst_89 = arith.constant dense<0.000000e+00> : vector<8x8xf32>
    %101 = tpu.matmul %97, %85, %cst_89 {dimension_numbers = #tpu.dot_dimension_numbers<[1], [0], [0], [1], [0, 0, 1, 1], [], []>} : vector<8x8xf32>, vector<8x8xf32>, vector<8x8xf32> -> vector<8x8xf32>
    %102 = arith.truncf %101 : vector<8x8xf32> to vector<8x8xbf16>
    %c0_90 = arith.constant 0 : index
    %c1_91 = arith.constant 1 : index
    %c0_92 = arith.constant 0 : index
    %c0_93 = arith.constant 0 : index
    %103 = vector.load %arg12[%c0_90, %c1_91, %c0_92, %c0_93] : memref<1x4x8x32xbf16, #tpu.memory_space<vmem>>, vector<1x1x8x32xbf16>
    %104 = vector.shape_cast %103 : vector<1x1x8x32xbf16> to vector<8x32xbf16>
    %cst_94 = arith.constant dense<0.000000e+00> : vector<8x32xf32>
    %105 = tpu.matmul %102, %104, %cst_94 {dimension_numbers = #tpu.dot_dimension_numbers<[1], [0], [0], [1], [0, 0, 1, 1], [], []>} : vector<8x8xbf16>, vector<8x32xbf16>, vector<8x32xf32> -> vector<8x32xf32>
    %106 = arith.addf %64, %105 : vector<8x32xf32>
    %c0_95 = arith.constant 0 : index
    %c2 = arith.constant 2 : index
    %c0_96 = arith.constant 0 : index
    %c0_97 = arith.constant 0 : index
    %107 = vector.load %arg6[%c0_95, %c2, %c0_96, %c0_97] : memref<1x4x32x8xbf16, #tpu.memory_space<vmem>>, vector<1x1x32x8xbf16>
    %108 = vector.shape_cast %107 : vector<1x1x32x8xbf16> to vector<32x8xbf16>
    %cst_98 = arith.constant dense<0.000000e+00> : vector<8x8xf32>
    %109 = tpu.matmul %21, %108, %cst_98 {dimension_numbers = #tpu.dot_dimension_numbers<[1], [0], [0], [1], [0, 0, 1, 1], [], []>} : vector<8x32xbf16>, vector<32x8xbf16>, vector<8x8xf32> -> vector<8x8xf32>
    %c0_99 = arith.constant 0 : index
    %c2_100 = arith.constant 2 : index
    %c0_101 = arith.constant 0 : index
    %c0_102 = arith.constant 0 : index
    %110 = vector.load %arg7[%c0_99, %c2_100, %c0_101, %c0_102] : memref<1x4x1x8xf32, #tpu.memory_space<vmem>>, vector<1x1x1x8xf32>
    %111 = vector.shape_cast %110 : vector<1x1x1x8xf32> to vector<1x8xf32>
    %112 = vector.broadcast %111 : vector<1x8xf32> to vector<8x8xf32>
    %113 = arith.addf %109, %112 : vector<8x8xf32>
    %c0_103 = arith.constant 0 : index
    %c2_104 = arith.constant 2 : index
    %c0_105 = arith.constant 0 : index
    %c0_106 = arith.constant 0 : index
    %114 = vector.load %arg8[%c0_103, %c2_104, %c0_105, %c0_106] : memref<1x4x32x8xbf16, #tpu.memory_space<vmem>>, vector<1x1x32x8xbf16>
    %115 = vector.shape_cast %114 : vector<1x1x32x8xbf16> to vector<32x8xbf16>
    %cst_107 = arith.constant dense<0.000000e+00> : vector<8x8xf32>
    %116 = tpu.matmul %21, %115, %cst_107 {dimension_numbers = #tpu.dot_dimension_numbers<[1], [0], [0], [1], [0, 0, 1, 1], [], []>} : vector<8x32xbf16>, vector<32x8xbf16>, vector<8x8xf32> -> vector<8x8xf32>
    %c0_108 = arith.constant 0 : index
    %c2_109 = arith.constant 2 : index
    %c0_110 = arith.constant 0 : index
    %c0_111 = arith.constant 0 : index
    %117 = vector.load %arg9[%c0_108, %c2_109, %c0_110, %c0_111] : memref<1x4x1x8xf32, #tpu.memory_space<vmem>>, vector<1x1x1x8xf32>
    %118 = vector.shape_cast %117 : vector<1x1x1x8xf32> to vector<1x8xf32>
    %119 = vector.broadcast %118 : vector<1x8xf32> to vector<8x8xf32>
    %120 = arith.addf %116, %119 : vector<8x8xf32>
    %c0_112 = arith.constant 0 : index
    %c2_113 = arith.constant 2 : index
    %c0_114 = arith.constant 0 : index
    %c0_115 = arith.constant 0 : index
    %121 = vector.load %arg10[%c0_112, %c2_113, %c0_114, %c0_115] : memref<1x4x32x8xbf16, #tpu.memory_space<vmem>>, vector<1x1x32x8xbf16>
    %122 = vector.shape_cast %121 : vector<1x1x32x8xbf16> to vector<32x8xbf16>
    %cst_116 = arith.constant dense<0.000000e+00> : vector<8x8xf32>
    %123 = tpu.matmul %21, %122, %cst_116 {dimension_numbers = #tpu.dot_dimension_numbers<[1], [0], [0], [1], [0, 0, 1, 1], [], []>} : vector<8x32xbf16>, vector<32x8xbf16>, vector<8x8xf32> -> vector<8x8xf32>
    %c0_117 = arith.constant 0 : index
    %c2_118 = arith.constant 2 : index
    %c0_119 = arith.constant 0 : index
    %c0_120 = arith.constant 0 : index
    %124 = vector.load %arg11[%c0_117, %c2_118, %c0_119, %c0_120] : memref<1x4x1x8xf32, #tpu.memory_space<vmem>>, vector<1x1x1x8xf32>
    %125 = vector.shape_cast %124 : vector<1x1x1x8xf32> to vector<1x8xf32>
    %126 = vector.broadcast %125 : vector<1x8xf32> to vector<8x8xf32>
    %127 = arith.addf %123, %126 : vector<8x8xf32>
    %cst_121 = arith.constant dense<0.000000e+00> : vector<8x8xf32>
    %128 = tpu.matmul %113, %120, %cst_121 {dimension_numbers = #tpu.dot_dimension_numbers<[1], [1], [0], [0], [0, 0, 1, 0], [], []>} : vector<8x8xf32>, vector<8x8xf32>, vector<8x8xf32> -> vector<8x8xf32>
    %129 = vector.broadcast %13 : vector<1x8xf32> to vector<8x8xf32>
    %130 = arith.addf %128, %129 : vector<8x8xf32>
    %cst_122 = arith.constant dense<0xFF800000> : vector<8xf32>
    %131 = vector.multi_reduction <maximumf>, %130, %cst_122 [1] : vector<8x8xf32> to vector<8xf32>
    %132 = vector.shape_cast %131 : vector<8xf32> to vector<8x1xf32>
    %133 = vector.broadcast %132 : vector<8x1xf32> to vector<8x8xf32>
    %134 = arith.subf %130, %133 : vector<8x8xf32>
    %135 = math.exp %134 : vector<8x8xf32>
    %cst_123 = arith.constant dense<0.000000e+00> : vector<8xf32>
    %136 = vector.multi_reduction <add>, %135, %cst_123 [1] : vector<8x8xf32> to vector<8xf32>
    %137 = vector.shape_cast %136 : vector<8xf32> to vector<8x1xf32>
    %138 = vector.broadcast %137 : vector<8x1xf32> to vector<8x8xf32>
    %139 = arith.divf %135, %138 : vector<8x8xf32>
    %c0_124 = arith.constant 0 : index
    %c0_125 = arith.constant 0 : index
    %c16 = arith.constant 16 : index
    %c0_126 = arith.constant 0 : index
    %140 = vector.load %arg33[%c0_124, %c0_125, %c16, %c0_126] : memref<1x1x32x8xf32, #tpu.memory_space<vmem>>, vector<1x1x8x8xf32>
    %141 = vector.shape_cast %140 : vector<1x1x8x8xf32> to vector<8x8xf32>
    %142 = vector.shape_cast %139 : vector<8x8xf32> to vector<1x1x8x8xf32>
    tpu.vector_store %arg33[%c0_124, %c0_125, %c16, %c0_126], %142 {strides = array<i32>} : memref<1x1x32x8xf32, #tpu.memory_space<vmem>>, vector<1x1x8x8xf32>,
    %cst_127 = arith.constant dense<0.000000e+00> : vector<8x8xf32>
    %143 = tpu.matmul %139, %127, %cst_127 {dimension_numbers = #tpu.dot_dimension_numbers<[1], [0], [0], [1], [0, 0, 1, 1], [], []>} : vector<8x8xf32>, vector<8x8xf32>, vector<8x8xf32> -> vector<8x8xf32>
    %144 = arith.truncf %143 : vector<8x8xf32> to vector<8x8xbf16>
    %c0_128 = arith.constant 0 : index
    %c2_129 = arith.constant 2 : index
    %c0_130 = arith.constant 0 : index
    %c0_131 = arith.constant 0 : index
    %145 = vector.load %arg12[%c0_128, %c2_129, %c0_130, %c0_131] : memref<1x4x8x32xbf16, #tpu.memory_space<vmem>>, vector<1x1x8x32xbf16>
    %146 = vector.shape_cast %145 : vector<1x1x8x32xbf16> to vector<8x32xbf16>
    %cst_132 = arith.constant dense<0.000000e+00> : vector<8x32xf32>
    %147 = tpu.matmul %144, %146, %cst_132 {dimension_numbers = #tpu.dot_dimension_numbers<[1], [0], [0], [1], [0, 0, 1, 1], [], []>} : vector<8x8xbf16>, vector<8x32xbf16>, vector<8x32xf32> -> vector<8x32xf32>
    %148 = arith.addf %106, %147 : vector<8x32xf32>
    %c0_133 = arith.constant 0 : index
    %c3 = arith.constant 3 : index
    %c0_134 = arith.constant 0 : index
    %c0_135 = arith.constant 0 : index
    %149 = vector.load %arg6[%c0_133, %c3, %c0_134, %c0_135] : memref<1x4x32x8xbf16, #tpu.memory_space<vmem>>, vector<1x1x32x8xbf16>
    %150 = vector.shape_cast %149 : vector<1x1x32x8xbf16> to vector<32x8xbf16>
    %cst_136 = arith.constant dense<0.000000e+00> : vector<8x8xf32>
    %151 = tpu.matmul %21, %150, %cst_136 {dimension_numbers = #tpu.dot_dimension_numbers<[1], [0], [0], [1], [0, 0, 1, 1], [], []>} : vector<8x32xbf16>, vector<32x8xbf16>, vector<8x8xf32> -> vector<8x8xf32>
    %c0_137 = arith.constant 0 : index
    %c3_138 = arith.constant 3 : index
    %c0_139 = arith.constant 0 : index
    %c0_140 = arith.constant 0 : index
    %152 = vector.load %arg7[%c0_137, %c3_138, %c0_139, %c0_140] : memref<1x4x1x8xf32, #tpu.memory_space<vmem>>, vector<1x1x1x8xf32>
    %153 = vector.shape_cast %152 : vector<1x1x1x8xf32> to vector<1x8xf32>
    %154 = vector.broadcast %153 : vector<1x8xf32> to vector<8x8xf32>
    %155 = arith.addf %151, %154 : vector<8x8xf32>
    %c0_141 = arith.constant 0 : index
    %c3_142 = arith.constant 3 : index
    %c0_143 = arith.constant 0 : index
    %c0_144 = arith.constant 0 : index
    %156 = vector.load %arg8[%c0_141, %c3_142, %c0_143, %c0_144] : memref<1x4x32x8xbf16, #tpu.memory_space<vmem>>, vector<1x1x32x8xbf16>
    %157 = vector.shape_cast %156 : vector<1x1x32x8xbf16> to vector<32x8xbf16>
    %cst_145 = arith.constant dense<0.000000e+00> : vector<8x8xf32>
    %158 = tpu.matmul %21, %157, %cst_145 {dimension_numbers = #tpu.dot_dimension_numbers<[1], [0], [0], [1], [0, 0, 1, 1], [], []>} : vector<8x32xbf16>, vector<32x8xbf16>, vector<8x8xf32> -> vector<8x8xf32>
    %c0_146 = arith.constant 0 : index
    %c3_147 = arith.constant 3 : index
    %c0_148 = arith.constant 0 : index
    %c0_149 = arith.constant 0 : index
    %159 = vector.load %arg9[%c0_146, %c3_147, %c0_148, %c0_149] : memref<1x4x1x8xf32, #tpu.memory_space<vmem>>, vector<1x1x1x8xf32>
    %160 = vector.shape_cast %159 : vector<1x1x1x8xf32> to vector<1x8xf32>
    %161 = vector.broadcast %160 : vector<1x8xf32> to vector<8x8xf32>
    %162 = arith.addf %158, %161 : vector<8x8xf32>
    %c0_150 = arith.constant 0 : index
    %c3_151 = arith.constant 3 : index
    %c0_152 = arith.constant 0 : index
    %c0_153 = arith.constant 0 : index
    %163 = vector.load %arg10[%c0_150, %c3_151, %c0_152, %c0_153] : memref<1x4x32x8xbf16, #tpu.memory_space<vmem>>, vector<1x1x32x8xbf16>
    %164 = vector.shape_cast %163 : vector<1x1x32x8xbf16> to vector<32x8xbf16>
    %cst_154 = arith.constant dense<0.000000e+00> : vector<8x8xf32>
    %165 = tpu.matmul %21, %164, %cst_154 {dimension_numbers = #tpu.dot_dimension_numbers<[1], [0], [0], [1], [0, 0, 1, 1], [], []>} : vector<8x32xbf16>, vector<32x8xbf16>, vector<8x8xf32> -> vector<8x8xf32>
    %c0_155 = arith.constant 0 : index
    %c3_156 = arith.constant 3 : index
    %c0_157 = arith.constant 0 : index
    %c0_158 = arith.constant 0 : index
    %166 = vector.load %arg11[%c0_155, %c3_156, %c0_157, %c0_158] : memref<1x4x1x8xf32, #tpu.memory_space<vmem>>, vector<1x1x1x8xf32>
    %167 = vector.shape_cast %166 : vector<1x1x1x8xf32> to vector<1x8xf32>
    %168 = vector.broadcast %167 : vector<1x8xf32> to vector<8x8xf32>
    %169 = arith.addf %165, %168 : vector<8x8xf32>
    %cst_159 = arith.constant dense<0.000000e+00> : vector<8x8xf32>
    %170 = tpu.matmul %155, %162, %cst_159 {dimension_numbers = #tpu.dot_dimension_numbers<[1], [1], [0], [0], [0, 0, 1, 0], [], []>} : vector<8x8xf32>, vector<8x8xf32>, vector<8x8xf32> -> vector<8x8xf32>
    %171 = vector.broadcast %13 : vector<1x8xf32> to vector<8x8xf32>
    %172 = arith.addf %170, %171 : vector<8x8xf32>
    %cst_160 = arith.constant dense<0xFF800000> : vector<8xf32>
    %173 = vector.multi_reduction <maximumf>, %172, %cst_160 [1] : vector<8x8xf32> to vector<8xf32>
    %174 = vector.shape_cast %173 : vector<8xf32> to vector<8x1xf32>
    %175 = vector.broadcast %174 : vector<8x1xf32> to vector<8x8xf32>
    %176 = arith.subf %172, %175 : vector<8x8xf32>
    %177 = math.exp %176 : vector<8x8xf32>
    %cst_161 = arith.constant dense<0.000000e+00> : vector<8xf32>
    %178 = vector.multi_reduction <add>, %177, %cst_161 [1] : vector<8x8xf32> to vector<8xf32>
    %179 = vector.shape_cast %178 : vector<8xf32> to vector<8x1xf32>
    %180 = vector.broadcast %179 : vector<8x1xf32> to vector<8x8xf32>
    %181 = arith.divf %177, %180 : vector<8x8xf32>
    %c0_162 = arith.constant 0 : index
    %c0_163 = arith.constant 0 : index
    %c24 = arith.constant 24 : index
    %c0_164 = arith.constant 0 : index
    %182 = vector.load %arg33[%c0_162, %c0_163, %c24, %c0_164] : memref<1x1x32x8xf32, #tpu.memory_space<vmem>>, vector<1x1x8x8xf32>
    %183 = vector.shape_cast %182 : vector<1x1x8x8xf32> to vector<8x8xf32>
    %184 = vector.shape_cast %181 : vector<8x8xf32> to vector<1x1x8x8xf32>
    tpu.vector_store %arg33[%c0_162, %c0_163, %c24, %c0_164], %184 {strides = array<i32>} : memref<1x1x32x8xf32, #tpu.memory_space<vmem>>, vector<1x1x8x8xf32>,
    %cst_165 = arith.constant dense<0.000000e+00> : vector<8x8xf32>
    %185 = tpu.matmul %181, %169, %cst_165 {dimension_numbers = #tpu.dot_dimension_numbers<[1], [0], [0], [1], [0, 0, 1, 1], [], []>} : vector<8x8xf32>, vector<8x8xf32>, vector<8x8xf32> -> vector<8x8xf32>
    %186 = arith.truncf %185 : vector<8x8xf32> to vector<8x8xbf16>
    %c0_166 = arith.constant 0 : index
    %c3_167 = arith.constant 3 : index
    %c0_168 = arith.constant 0 : index
    %c0_169 = arith.constant 0 : index
    %187 = vector.load %arg12[%c0_166, %c3_167, %c0_168, %c0_169] : memref<1x4x8x32xbf16, #tpu.memory_space<vmem>>, vector<1x1x8x32xbf16>
    %188 = vector.shape_cast %187 : vector<1x1x8x32xbf16> to vector<8x32xbf16>
    %cst_170 = arith.constant dense<0.000000e+00> : vector<8x32xf32>
    %189 = tpu.matmul %186, %188, %cst_170 {dimension_numbers = #tpu.dot_dimension_numbers<[1], [0], [0], [1], [0, 0, 1, 1], [], []>} : vector<8x8xbf16>, vector<8x32xbf16>, vector<8x32xf32> -> vector<8x32xf32>
    %190 = arith.addf %148, %189 : vector<8x32xf32>
    %c0_171 = arith.constant 0 : index
    %c0_172 = arith.constant 0 : index
    %c0_173 = arith.constant 0 : index
    %191 = vector.load %arg13[%c0_171, %c0_172, %c0_173] : memref<1x1x32xf32, #tpu.memory_space<vmem>>, vector<1x1x32xf32>
    %192 = vector.shape_cast %191 : vector<1x1x32xf32> to vector<1x32xf32>
    %193 = vector.broadcast %192 : vector<1x32xf32> to vector<8x32xf32>
    %194 = arith.addf %190, %193 : vector<8x32xf32>
    %195 = arith.addf %3, %194 : vector<8x32xf32>
    %cst_174 = arith.constant dense<0.000000e+00> : vector<8xf32>
    %196 = vector.multi_reduction <add>, %195, %cst_174 [1] : vector<8x32xf32> to vector<8xf32>
    %197 = vector.shape_cast %196 : vector<8xf32> to vector<8x1xf32>
    %cst_175 = arith.constant 3.200000e+01 : f32
    %198 = vector.broadcast %cst_175 : f32 to vector<8x1xf32>
    %199 = arith.divf %197, %198 : vector<8x1xf32>
    %200 = vector.broadcast %199 : vector<8x1xf32> to vector<8x32xf32>
    %201 = arith.subf %195, %200 : vector<8x32xf32>
    %202 = arith.mulf %201, %201 : vector<8x32xf32>
    %cst_176 = arith.constant dense<0.000000e+00> : vector<8xf32>
    %203 = vector.multi_reduction <add>, %202, %cst_176 [1] : vector<8x32xf32> to vector<8xf32>
    %204 = vector.shape_cast %203 : vector<8xf32> to vector<8x1xf32>
    %cst_177 = arith.constant 3.200000e+01 : f32
    %205 = vector.broadcast %cst_177 : f32 to vector<8x1xf32>
    %206 = arith.divf %204, %205 : vector<8x1xf32>
    %207 = vector.broadcast %199 : vector<8x1xf32> to vector<8x32xf32>
    %208 = arith.subf %195, %207 : vector<8x32xf32>
    %cst_178 = arith.constant 9.99999974E-6 : f32
    %209 = vector.broadcast %cst_178 : f32 to vector<8x1xf32>
    %210 = arith.addf %206, %209 : vector<8x1xf32>
    %211 = math.rsqrt %210 : vector<8x1xf32>
    %212 = vector.broadcast %211 : vector<8x1xf32> to vector<8x32xf32>
    %213 = arith.mulf %208, %212 : vector<8x32xf32>
    %c0_179 = arith.constant 0 : index
    %c0_180 = arith.constant 0 : index
    %c0_181 = arith.constant 0 : index
    %214 = vector.load %arg14[%c0_179, %c0_180, %c0_181] : memref<1x1x32xf32, #tpu.memory_space<vmem>>, vector<1x1x32xf32>
    %215 = vector.shape_cast %214 : vector<1x1x32xf32> to vector<1x32xf32>
    %216 = vector.broadcast %215 : vector<1x32xf32> to vector<8x32xf32>
    %217 = arith.mulf %213, %216 : vector<8x32xf32>
    %c0_182 = arith.constant 0 : index
    %c0_183 = arith.constant 0 : index
    %c0_184 = arith.constant 0 : index
    %218 = vector.load %arg15[%c0_182, %c0_183, %c0_184] : memref<1x1x32xf32, #tpu.memory_space<vmem>>, vector<1x1x32xf32>
    %219 = vector.shape_cast %218 : vector<1x1x32xf32> to vector<1x32xf32>
    %220 = vector.broadcast %219 : vector<1x32xf32> to vector<8x32xf32>
    %221 = arith.addf %217, %220 : vector<8x32xf32>
    %222 = arith.truncf %221 : vector<8x32xf32> to vector<8x32xbf16>
    %cst_185 = arith.constant 0.000000e+00 : f32
    %223 = vector.broadcast %cst_185 : f32 to vector<8x32xf32>
    %c0_186 = arith.constant 0 : index
    %c0_187 = arith.constant 0 : index
    %c0_188 = arith.constant 0 : index
    %c0_189 = arith.constant 0 : index
    %224 = vector.load %arg16[%c0_186, %c0_187, %c0_188, %c0_189] : memref<1x4x32x8xbf16, #tpu.memory_space<vmem>>, vector<1x1x32x8xbf16>
    %225 = vector.shape_cast %224 : vector<1x1x32x8xbf16> to vector<32x8xbf16>
    %cst_190 = arith.constant dense<0.000000e+00> : vector<8x8xf32>
    %226 = tpu.matmul %222, %225, %cst_190 {dimension_numbers = #tpu.dot_dimension_numbers<[1], [0], [0], [1], [0, 0, 1, 1], [], []>} : vector<8x32xbf16>, vector<32x8xbf16>, vector<8x8xf32> -> vector<8x8xf32>
    %c0_191 = arith.constant 0 : index
    %c0_192 = arith.constant 0 : index
    %c0_193 = arith.constant 0 : index
    %c0_194 = arith.constant 0 : index
    %227 = vector.load %arg17[%c0_191, %c0_192, %c0_193, %c0_194] : memref<1x4x1x8xf32, #tpu.memory_space<vmem>>, vector<1x1x1x8xf32>
    %228 = vector.shape_cast %227 : vector<1x1x1x8xf32> to vector<1x8xf32>
    %229 = vector.broadcast %228 : vector<1x8xf32> to vector<8x8xf32>
    %230 = arith.addf %226, %229 : vector<8x8xf32>
    %c0_195 = arith.constant 0 : index
    %c0_196 = arith.constant 0 : index
    %c0_197 = arith.constant 0 : index
    %c0_198 = arith.constant 0 : index
    %231 = vector.load %arg18[%c0_195, %c0_196, %c0_197, %c0_198] : memref<1x4x32x8xbf16, #tpu.memory_space<vmem>>, vector<1x1x32x8xbf16>
    %232 = vector.shape_cast %231 : vector<1x1x32x8xbf16> to vector<32x8xbf16>
    %cst_199 = arith.constant dense<0.000000e+00> : vector<10x8xf32>
    %233 = tpu.matmul %6, %232, %cst_199 {dimension_numbers = #tpu.dot_dimension_numbers<[1], [0], [0], [1], [0, 0, 1, 1], [], []>} : vector<10x32xbf16>, vector<32x8xbf16>, vector<10x8xf32> -> vector<10x8xf32>
    %c0_200 = arith.constant 0 : index
    %c0_201 = arith.constant 0 : index
    %c0_202 = arith.constant 0 : index
    %c0_203 = arith.constant 0 : index
    %234 = vector.load %arg19[%c0_200, %c0_201, %c0_202, %c0_203] : memref<1x4x1x8xf32, #tpu.memory_space<vmem>>, vector<1x1x1x8xf32>
    %235 = vector.shape_cast %234 : vector<1x1x1x8xf32> to vector<1x8xf32>
    %236 = vector.broadcast %235 : vector<1x8xf32> to vector<10x8xf32>
    %237 = arith.addf %233, %236 : vector<10x8xf32>
    %c0_204 = arith.constant 0 : index
    %c0_205 = arith.constant 0 : index
    %c0_206 = arith.constant 0 : index
    %c0_207 = arith.constant 0 : index
    %238 = vector.load %arg20[%c0_204, %c0_205, %c0_206, %c0_207] : memref<1x4x32x8xbf16, #tpu.memory_space<vmem>>, vector<1x1x32x8xbf16>
    %239 = vector.shape_cast %238 : vector<1x1x32x8xbf16> to vector<32x8xbf16>
    %cst_208 = arith.constant dense<0.000000e+00> : vector<10x8xf32>
    %240 = tpu.matmul %6, %239, %cst_208 {dimension_numbers = #tpu.dot_dimension_numbers<[1], [0], [0], [1], [0, 0, 1, 1], [], []>} : vector<10x32xbf16>, vector<32x8xbf16>, vector<10x8xf32> -> vector<10x8xf32>
    %c0_209 = arith.constant 0 : index
    %c0_210 = arith.constant 0 : index
    %c0_211 = arith.constant 0 : index
    %c0_212 = arith.constant 0 : index
    %241 = vector.load %arg21[%c0_209, %c0_210, %c0_211, %c0_212] : memref<1x4x1x8xf32, #tpu.memory_space<vmem>>, vector<1x1x1x8xf32>
    %242 = vector.shape_cast %241 : vector<1x1x1x8xf32> to vector<1x8xf32>
    %243 = vector.broadcast %242 : vector<1x8xf32> to vector<10x8xf32>
    %244 = arith.addf %240, %243 : vector<10x8xf32>
    %cst_213 = arith.constant dense<0.000000e+00> : vector<8x10xf32>
    %245 = tpu.matmul %230, %237, %cst_213 {dimension_numbers = #tpu.dot_dimension_numbers<[1], [1], [0], [0], [0, 0, 1, 0], [], []>} : vector<8x8xf32>, vector<10x8xf32>, vector<8x10xf32> -> vector<8x10xf32>
    %246 = vector.broadcast %20 : vector<1x10xf32> to vector<8x10xf32>
    %247 = arith.addf %245, %246 : vector<8x10xf32>
    %cst_214 = arith.constant dense<0xFF800000> : vector<8xf32>
    %248 = vector.multi_reduction <maximumf>, %247, %cst_214 [1] : vector<8x10xf32> to vector<8xf32>
    %249 = vector.shape_cast %248 : vector<8xf32> to vector<8x1xf32>
    %250 = vector.broadcast %249 : vector<8x1xf32> to vector<8x10xf32>
    %251 = arith.subf %247, %250 : vector<8x10xf32>
    %252 = math.exp %251 : vector<8x10xf32>
    %cst_215 = arith.constant dense<0.000000e+00> : vector<8xf32>
    %253 = vector.multi_reduction <add>, %252, %cst_215 [1] : vector<8x10xf32> to vector<8xf32>
    %254 = vector.shape_cast %253 : vector<8xf32> to vector<8x1xf32>
    %255 = vector.broadcast %254 : vector<8x1xf32> to vector<8x10xf32>
    %256 = arith.divf %252, %255 : vector<8x10xf32>
    %c0_216 = arith.constant 0 : index
    %c0_217 = arith.constant 0 : index
    %c0_218 = arith.constant 0 : index
    %c0_219 = arith.constant 0 : index
    %257 = vector.load %arg34[%c0_216, %c0_217, %c0_218, %c0_219] : memref<1x1x32x10xf32, #tpu.memory_space<vmem>>, vector<1x1x8x10xf32>
    %258 = vector.shape_cast %257 : vector<1x1x8x10xf32> to vector<8x10xf32>
    %259 = vector.shape_cast %256 : vector<8x10xf32> to vector<1x1x8x10xf32>
    tpu.vector_store %arg34[%c0_216, %c0_217, %c0_218, %c0_219], %259 {strides = array<i32>} : memref<1x1x32x10xf32, #tpu.memory_space<vmem>>, vector<1x1x8x10xf32>,
    %cst_220 = arith.constant dense<0.000000e+00> : vector<8x8xf32>
    %260 = tpu.matmul %256, %244, %cst_220 {dimension_numbers = #tpu.dot_dimension_numbers<[1], [0], [0], [1], [0, 0, 1, 1], [], []>} : vector<8x10xf32>, vector<10x8xf32>, vector<8x8xf32> -> vector<8x8xf32>
    %261 = arith.truncf %260 : vector<8x8xf32> to vector<8x8xbf16>
    %c0_221 = arith.constant 0 : index
    %c0_222 = arith.constant 0 : index
    %c0_223 = arith.constant 0 : index
    %c0_224 = arith.constant 0 : index
    %262 = vector.load %arg22[%c0_221, %c0_222, %c0_223, %c0_224] : memref<1x4x8x32xbf16, #tpu.memory_space<vmem>>, vector<1x1x8x32xbf16>
    %263 = vector.shape_cast %262 : vector<1x1x8x32xbf16> to vector<8x32xbf16>
    %cst_225 = arith.constant dense<0.000000e+00> : vector<8x32xf32>
    %264 = tpu.matmul %261, %263, %cst_225 {dimension_numbers = #tpu.dot_dimension_numbers<[1], [0], [0], [1], [0, 0, 1, 1], [], []>} : vector<8x8xbf16>, vector<8x32xbf16>, vector<8x32xf32> -> vector<8x32xf32>
    %265 = arith.addf %223, %264 : vector<8x32xf32>
    %c0_226 = arith.constant 0 : index
    %c1_227 = arith.constant 1 : index
    %c0_228 = arith.constant 0 : index
    %c0_229 = arith.constant 0 : index
    %266 = vector.load %arg16[%c0_226, %c1_227, %c0_228, %c0_229] : memref<1x4x32x8xbf16, #tpu.memory_space<vmem>>, vector<1x1x32x8xbf16>
    %267 = vector.shape_cast %266 : vector<1x1x32x8xbf16> to vector<32x8xbf16>
    %cst_230 = arith.constant dense<0.000000e+00> : vector<8x8xf32>
    %268 = tpu.matmul %222, %267, %cst_230 {dimension_numbers = #tpu.dot_dimension_numbers<[1], [0], [0], [1], [0, 0, 1, 1], [], []>} : vector<8x32xbf16>, vector<32x8xbf16>, vector<8x8xf32> -> vector<8x8xf32>
    %c0_231 = arith.constant 0 : index
    %c1_232 = arith.constant 1 : index
    %c0_233 = arith.constant 0 : index
    %c0_234 = arith.constant 0 : index
    %269 = vector.load %arg17[%c0_231, %c1_232, %c0_233, %c0_234] : memref<1x4x1x8xf32, #tpu.memory_space<vmem>>, vector<1x1x1x8xf32>
    %270 = vector.shape_cast %269 : vector<1x1x1x8xf32> to vector<1x8xf32>
    %271 = vector.broadcast %270 : vector<1x8xf32> to vector<8x8xf32>
    %272 = arith.addf %268, %271 : vector<8x8xf32>
    %c0_235 = arith.constant 0 : index
    %c1_236 = arith.constant 1 : index
    %c0_237 = arith.constant 0 : index
    %c0_238 = arith.constant 0 : index
    %273 = vector.load %arg18[%c0_235, %c1_236, %c0_237, %c0_238] : memref<1x4x32x8xbf16, #tpu.memory_space<vmem>>, vector<1x1x32x8xbf16>
    %274 = vector.shape_cast %273 : vector<1x1x32x8xbf16> to vector<32x8xbf16>
    %cst_239 = arith.constant dense<0.000000e+00> : vector<10x8xf32>
    %275 = tpu.matmul %6, %274, %cst_239 {dimension_numbers = #tpu.dot_dimension_numbers<[1], [0], [0], [1], [0, 0, 1, 1], [], []>} : vector<10x32xbf16>, vector<32x8xbf16>, vector<10x8xf32> -> vector<10x8xf32>
    %c0_240 = arith.constant 0 : index
    %c1_241 = arith.constant 1 : index
    %c0_242 = arith.constant 0 : index
    %c0_243 = arith.constant 0 : index
    %276 = vector.load %arg19[%c0_240, %c1_241, %c0_242, %c0_243] : memref<1x4x1x8xf32, #tpu.memory_space<vmem>>, vector<1x1x1x8xf32>
    %277 = vector.shape_cast %276 : vector<1x1x1x8xf32> to vector<1x8xf32>
    %278 = vector.broadcast %277 : vector<1x8xf32> to vector<10x8xf32>
    %279 = arith.addf %275, %278 : vector<10x8xf32>
    %c0_244 = arith.constant 0 : index
    %c1_245 = arith.constant 1 : index
    %c0_246 = arith.constant 0 : index
    %c0_247 = arith.constant 0 : index
    %280 = vector.load %arg20[%c0_244, %c1_245, %c0_246, %c0_247] : memref<1x4x32x8xbf16, #tpu.memory_space<vmem>>, vector<1x1x32x8xbf16>
    %281 = vector.shape_cast %280 : vector<1x1x32x8xbf16> to vector<32x8xbf16>
    %cst_248 = arith.constant dense<0.000000e+00> : vector<10x8xf32>
    %282 = tpu.matmul %6, %281, %cst_248 {dimension_numbers = #tpu.dot_dimension_numbers<[1], [0], [0], [1], [0, 0, 1, 1], [], []>} : vector<10x32xbf16>, vector<32x8xbf16>, vector<10x8xf32> -> vector<10x8xf32>
    %c0_249 = arith.constant 0 : index
    %c1_250 = arith.constant 1 : index
    %c0_251 = arith.constant 0 : index
    %c0_252 = arith.constant 0 : index
    %283 = vector.load %arg21[%c0_249, %c1_250, %c0_251, %c0_252] : memref<1x4x1x8xf32, #tpu.memory_space<vmem>>, vector<1x1x1x8xf32>
    %284 = vector.shape_cast %283 : vector<1x1x1x8xf32> to vector<1x8xf32>
    %285 = vector.broadcast %284 : vector<1x8xf32> to vector<10x8xf32>
    %286 = arith.addf %282, %285 : vector<10x8xf32>
    %cst_253 = arith.constant dense<0.000000e+00> : vector<8x10xf32>
    %287 = tpu.matmul %272, %279, %cst_253 {dimension_numbers = #tpu.dot_dimension_numbers<[1], [1], [0], [0], [0, 0, 1, 0], [], []>} : vector<8x8xf32>, vector<10x8xf32>, vector<8x10xf32> -> vector<8x10xf32>
    %288 = vector.broadcast %20 : vector<1x10xf32> to vector<8x10xf32>
    %289 = arith.addf %287, %288 : vector<8x10xf32>
    %cst_254 = arith.constant dense<0xFF800000> : vector<8xf32>
    %290 = vector.multi_reduction <maximumf>, %289, %cst_254 [1] : vector<8x10xf32> to vector<8xf32>
    %291 = vector.shape_cast %290 : vector<8xf32> to vector<8x1xf32>
    %292 = vector.broadcast %291 : vector<8x1xf32> to vector<8x10xf32>
    %293 = arith.subf %289, %292 : vector<8x10xf32>
    %294 = math.exp %293 : vector<8x10xf32>
    %cst_255 = arith.constant dense<0.000000e+00> : vector<8xf32>
    %295 = vector.multi_reduction <add>, %294, %cst_255 [1] : vector<8x10xf32> to vector<8xf32>
    %296 = vector.shape_cast %295 : vector<8xf32> to vector<8x1xf32>
    %297 = vector.broadcast %296 : vector<8x1xf32> to vector<8x10xf32>
    %298 = arith.divf %294, %297 : vector<8x10xf32>
    %c0_256 = arith.constant 0 : index
    %c0_257 = arith.constant 0 : index
    %c8_258 = arith.constant 8 : index
    %c0_259 = arith.constant 0 : index
    %299 = vector.load %arg34[%c0_256, %c0_257, %c8_258, %c0_259] : memref<1x1x32x10xf32, #tpu.memory_space<vmem>>, vector<1x1x8x10xf32>
    %300 = vector.shape_cast %299 : vector<1x1x8x10xf32> to vector<8x10xf32>
    %301 = vector.shape_cast %298 : vector<8x10xf32> to vector<1x1x8x10xf32>
    tpu.vector_store %arg34[%c0_256, %c0_257, %c8_258, %c0_259], %301 {strides = array<i32>} : memref<1x1x32x10xf32, #tpu.memory_space<vmem>>, vector<1x1x8x10xf32>,
    %cst_260 = arith.constant dense<0.000000e+00> : vector<8x8xf32>
    %302 = tpu.matmul %298, %286, %cst_260 {dimension_numbers = #tpu.dot_dimension_numbers<[1], [0], [0], [1], [0, 0, 1, 1], [], []>} : vector<8x10xf32>, vector<10x8xf32>, vector<8x8xf32> -> vector<8x8xf32>
    %303 = arith.truncf %302 : vector<8x8xf32> to vector<8x8xbf16>
    %c0_261 = arith.constant 0 : index
    %c1_262 = arith.constant 1 : index
    %c0_263 = arith.constant 0 : index
    %c0_264 = arith.constant 0 : index
    %304 = vector.load %arg22[%c0_261, %c1_262, %c0_263, %c0_264] : memref<1x4x8x32xbf16, #tpu.memory_space<vmem>>, vector<1x1x8x32xbf16>
    %305 = vector.shape_cast %304 : vector<1x1x8x32xbf16> to vector<8x32xbf16>
    %cst_265 = arith.constant dense<0.000000e+00> : vector<8x32xf32>
    %306 = tpu.matmul %303, %305, %cst_265 {dimension_numbers = #tpu.dot_dimension_numbers<[1], [0], [0], [1], [0, 0, 1, 1], [], []>} : vector<8x8xbf16>, vector<8x32xbf16>, vector<8x32xf32> -> vector<8x32xf32>
    %307 = arith.addf %265, %306 : vector<8x32xf32>
    %c0_266 = arith.constant 0 : index
    %c2_267 = arith.constant 2 : index
    %c0_268 = arith.constant 0 : index
    %c0_269 = arith.constant 0 : index
    %308 = vector.load %arg16[%c0_266, %c2_267, %c0_268, %c0_269] : memref<1x4x32x8xbf16, #tpu.memory_space<vmem>>, vector<1x1x32x8xbf16>
    %309 = vector.shape_cast %308 : vector<1x1x32x8xbf16> to vector<32x8xbf16>
    %cst_270 = arith.constant dense<0.000000e+00> : vector<8x8xf32>
    %310 = tpu.matmul %222, %309, %cst_270 {dimension_numbers = #tpu.dot_dimension_numbers<[1], [0], [0], [1], [0, 0, 1, 1], [], []>} : vector<8x32xbf16>, vector<32x8xbf16>, vector<8x8xf32> -> vector<8x8xf32>
    %c0_271 = arith.constant 0 : index
    %c2_272 = arith.constant 2 : index
    %c0_273 = arith.constant 0 : index
    %c0_274 = arith.constant 0 : index
    %311 = vector.load %arg17[%c0_271, %c2_272, %c0_273, %c0_274] : memref<1x4x1x8xf32, #tpu.memory_space<vmem>>, vector<1x1x1x8xf32>
    %312 = vector.shape_cast %311 : vector<1x1x1x8xf32> to vector<1x8xf32>
    %313 = vector.broadcast %312 : vector<1x8xf32> to vector<8x8xf32>
    %314 = arith.addf %310, %313 : vector<8x8xf32>
    %c0_275 = arith.constant 0 : index
    %c2_276 = arith.constant 2 : index
    %c0_277 = arith.constant 0 : index
    %c0_278 = arith.constant 0 : index
    %315 = vector.load %arg18[%c0_275, %c2_276, %c0_277, %c0_278] : memref<1x4x32x8xbf16, #tpu.memory_space<vmem>>, vector<1x1x32x8xbf16>
    %316 = vector.shape_cast %315 : vector<1x1x32x8xbf16> to vector<32x8xbf16>
    %cst_279 = arith.constant dense<0.000000e+00> : vector<10x8xf32>
    %317 = tpu.matmul %6, %316, %cst_279 {dimension_numbers = #tpu.dot_dimension_numbers<[1], [0], [0], [1], [0, 0, 1, 1], [], []>} : vector<10x32xbf16>, vector<32x8xbf16>, vector<10x8xf32> -> vector<10x8xf32>
    %c0_280 = arith.constant 0 : index
    %c2_281 = arith.constant 2 : index
    %c0_282 = arith.constant 0 : index
    %c0_283 = arith.constant 0 : index
    %318 = vector.load %arg19[%c0_280, %c2_281, %c0_282, %c0_283] : memref<1x4x1x8xf32, #tpu.memory_space<vmem>>, vector<1x1x1x8xf32>
    %319 = vector.shape_cast %318 : vector<1x1x1x8xf32> to vector<1x8xf32>
    %320 = vector.broadcast %319 : vector<1x8xf32> to vector<10x8xf32>
    %321 = arith.addf %317, %320 : vector<10x8xf32>
    %c0_284 = arith.constant 0 : index
    %c2_285 = arith.constant 2 : index
    %c0_286 = arith.constant 0 : index
    %c0_287 = arith.constant 0 : index
    %322 = vector.load %arg20[%c0_284, %c2_285, %c0_286, %c0_287] : memref<1x4x32x8xbf16, #tpu.memory_space<vmem>>, vector<1x1x32x8xbf16>
    %323 = vector.shape_cast %322 : vector<1x1x32x8xbf16> to vector<32x8xbf16>
    %cst_288 = arith.constant dense<0.000000e+00> : vector<10x8xf32>
    %324 = tpu.matmul %6, %323, %cst_288 {dimension_numbers = #tpu.dot_dimension_numbers<[1], [0], [0], [1], [0, 0, 1, 1], [], []>} : vector<10x32xbf16>, vector<32x8xbf16>, vector<10x8xf32> -> vector<10x8xf32>
    %c0_289 = arith.constant 0 : index
    %c2_290 = arith.constant 2 : index
    %c0_291 = arith.constant 0 : index
    %c0_292 = arith.constant 0 : index
    %325 = vector.load %arg21[%c0_289, %c2_290, %c0_291, %c0_292] : memref<1x4x1x8xf32, #tpu.memory_space<vmem>>, vector<1x1x1x8xf32>
    %326 = vector.shape_cast %325 : vector<1x1x1x8xf32> to vector<1x8xf32>
    %327 = vector.broadcast %326 : vector<1x8xf32> to vector<10x8xf32>
    %328 = arith.addf %324, %327 : vector<10x8xf32>
    %cst_293 = arith.constant dense<0.000000e+00> : vector<8x10xf32>
    %329 = tpu.matmul %314, %321, %cst_293 {dimension_numbers = #tpu.dot_dimension_numbers<[1], [1], [0], [0], [0, 0, 1, 0], [], []>} : vector<8x8xf32>, vector<10x8xf32>, vector<8x10xf32> -> vector<8x10xf32>
    %330 = vector.broadcast %20 : vector<1x10xf32> to vector<8x10xf32>
    %331 = arith.addf %329, %330 : vector<8x10xf32>
    %cst_294 = arith.constant dense<0xFF800000> : vector<8xf32>
    %332 = vector.multi_reduction <maximumf>, %331, %cst_294 [1] : vector<8x10xf32> to vector<8xf32>
    %333 = vector.shape_cast %332 : vector<8xf32> to vector<8x1xf32>
    %334 = vector.broadcast %333 : vector<8x1xf32> to vector<8x10xf32>
    %335 = arith.subf %331, %334 : vector<8x10xf32>
    %336 = math.exp %335 : vector<8x10xf32>
    %cst_295 = arith.constant dense<0.000000e+00> : vector<8xf32>
    %337 = vector.multi_reduction <add>, %336, %cst_295 [1] : vector<8x10xf32> to vector<8xf32>
    %338 = vector.shape_cast %337 : vector<8xf32> to vector<8x1xf32>
    %339 = vector.broadcast %338 : vector<8x1xf32> to vector<8x10xf32>
    %340 = arith.divf %336, %339 : vector<8x10xf32>
    %c0_296 = arith.constant 0 : index
    %c0_297 = arith.constant 0 : index
    %c16_298 = arith.constant 16 : index
    %c0_299 = arith.constant 0 : index
    %341 = vector.load %arg34[%c0_296, %c0_297, %c16_298, %c0_299] : memref<1x1x32x10xf32, #tpu.memory_space<vmem>>, vector<1x1x8x10xf32>
    %342 = vector.shape_cast %341 : vector<1x1x8x10xf32> to vector<8x10xf32>
    %343 = vector.shape_cast %340 : vector<8x10xf32> to vector<1x1x8x10xf32>
    tpu.vector_store %arg34[%c0_296, %c0_297, %c16_298, %c0_299], %343 {strides = array<i32>} : memref<1x1x32x10xf32, #tpu.memory_space<vmem>>, vector<1x1x8x10xf32>,
    %cst_300 = arith.constant dense<0.000000e+00> : vector<8x8xf32>
    %344 = tpu.matmul %340, %328, %cst_300 {dimension_numbers = #tpu.dot_dimension_numbers<[1], [0], [0], [1], [0, 0, 1, 1], [], []>} : vector<8x10xf32>, vector<10x8xf32>, vector<8x8xf32> -> vector<8x8xf32>
    %345 = arith.truncf %344 : vector<8x8xf32> to vector<8x8xbf16>
    %c0_301 = arith.constant 0 : index
    %c2_302 = arith.constant 2 : index
    %c0_303 = arith.constant 0 : index
    %c0_304 = arith.constant 0 : index
    %346 = vector.load %arg22[%c0_301, %c2_302, %c0_303, %c0_304] : memref<1x4x8x32xbf16, #tpu.memory_space<vmem>>, vector<1x1x8x32xbf16>
    %347 = vector.shape_cast %346 : vector<1x1x8x32xbf16> to vector<8x32xbf16>
    %cst_305 = arith.constant dense<0.000000e+00> : vector<8x32xf32>
    %348 = tpu.matmul %345, %347, %cst_305 {dimension_numbers = #tpu.dot_dimension_numbers<[1], [0], [0], [1], [0, 0, 1, 1], [], []>} : vector<8x8xbf16>, vector<8x32xbf16>, vector<8x32xf32> -> vector<8x32xf32>
    %349 = arith.addf %307, %348 : vector<8x32xf32>
    %c0_306 = arith.constant 0 : index
    %c3_307 = arith.constant 3 : index
    %c0_308 = arith.constant 0 : index
    %c0_309 = arith.constant 0 : index
    %350 = vector.load %arg16[%c0_306, %c3_307, %c0_308, %c0_309] : memref<1x4x32x8xbf16, #tpu.memory_space<vmem>>, vector<1x1x32x8xbf16>
    %351 = vector.shape_cast %350 : vector<1x1x32x8xbf16> to vector<32x8xbf16>
    %cst_310 = arith.constant dense<0.000000e+00> : vector<8x8xf32>
    %352 = tpu.matmul %222, %351, %cst_310 {dimension_numbers = #tpu.dot_dimension_numbers<[1], [0], [0], [1], [0, 0, 1, 1], [], []>} : vector<8x32xbf16>, vector<32x8xbf16>, vector<8x8xf32> -> vector<8x8xf32>
    %c0_311 = arith.constant 0 : index
    %c3_312 = arith.constant 3 : index
    %c0_313 = arith.constant 0 : index
    %c0_314 = arith.constant 0 : index
    %353 = vector.load %arg17[%c0_311, %c3_312, %c0_313, %c0_314] : memref<1x4x1x8xf32, #tpu.memory_space<vmem>>, vector<1x1x1x8xf32>
    %354 = vector.shape_cast %353 : vector<1x1x1x8xf32> to vector<1x8xf32>
    %355 = vector.broadcast %354 : vector<1x8xf32> to vector<8x8xf32>
    %356 = arith.addf %352, %355 : vector<8x8xf32>
    %c0_315 = arith.constant 0 : index
    %c3_316 = arith.constant 3 : index
    %c0_317 = arith.constant 0 : index
    %c0_318 = arith.constant 0 : index
    %357 = vector.load %arg18[%c0_315, %c3_316, %c0_317, %c0_318] : memref<1x4x32x8xbf16, #tpu.memory_space<vmem>>, vector<1x1x32x8xbf16>
    %358 = vector.shape_cast %357 : vector<1x1x32x8xbf16> to vector<32x8xbf16>
    %cst_319 = arith.constant dense<0.000000e+00> : vector<10x8xf32>
    %359 = tpu.matmul %6, %358, %cst_319 {dimension_numbers = #tpu.dot_dimension_numbers<[1], [0], [0], [1], [0, 0, 1, 1], [], []>} : vector<10x32xbf16>, vector<32x8xbf16>, vector<10x8xf32> -> vector<10x8xf32>
    %c0_320 = arith.constant 0 : index
    %c3_321 = arith.constant 3 : index
    %c0_322 = arith.constant 0 : index
    %c0_323 = arith.constant 0 : index
    %360 = vector.load %arg19[%c0_320, %c3_321, %c0_322, %c0_323] : memref<1x4x1x8xf32, #tpu.memory_space<vmem>>, vector<1x1x1x8xf32>
    %361 = vector.shape_cast %360 : vector<1x1x1x8xf32> to vector<1x8xf32>
    %362 = vector.broadcast %361 : vector<1x8xf32> to vector<10x8xf32>
    %363 = arith.addf %359, %362 : vector<10x8xf32>
    %c0_324 = arith.constant 0 : index
    %c3_325 = arith.constant 3 : index
    %c0_326 = arith.constant 0 : index
    %c0_327 = arith.constant 0 : index
    %364 = vector.load %arg20[%c0_324, %c3_325, %c0_326, %c0_327] : memref<1x4x32x8xbf16, #tpu.memory_space<vmem>>, vector<1x1x32x8xbf16>
    %365 = vector.shape_cast %364 : vector<1x1x32x8xbf16> to vector<32x8xbf16>
    %cst_328 = arith.constant dense<0.000000e+00> : vector<10x8xf32>
    %366 = tpu.matmul %6, %365, %cst_328 {dimension_numbers = #tpu.dot_dimension_numbers<[1], [0], [0], [1], [0, 0, 1, 1], [], []>} : vector<10x32xbf16>, vector<32x8xbf16>, vector<10x8xf32> -> vector<10x8xf32>
    %c0_329 = arith.constant 0 : index
    %c3_330 = arith.constant 3 : index
    %c0_331 = arith.constant 0 : index
    %c0_332 = arith.constant 0 : index
    %367 = vector.load %arg21[%c0_329, %c3_330, %c0_331, %c0_332] : memref<1x4x1x8xf32, #tpu.memory_space<vmem>>, vector<1x1x1x8xf32>
    %368 = vector.shape_cast %367 : vector<1x1x1x8xf32> to vector<1x8xf32>
    %369 = vector.broadcast %368 : vector<1x8xf32> to vector<10x8xf32>
    %370 = arith.addf %366, %369 : vector<10x8xf32>
    %cst_333 = arith.constant dense<0.000000e+00> : vector<8x10xf32>
    %371 = tpu.matmul %356, %363, %cst_333 {dimension_numbers = #tpu.dot_dimension_numbers<[1], [1], [0], [0], [0, 0, 1, 0], [], []>} : vector<8x8xf32>, vector<10x8xf32>, vector<8x10xf32> -> vector<8x10xf32>
    %372 = vector.broadcast %20 : vector<1x10xf32> to vector<8x10xf32>
    %373 = arith.addf %371, %372 : vector<8x10xf32>
    %cst_334 = arith.constant dense<0xFF800000> : vector<8xf32>
    %374 = vector.multi_reduction <maximumf>, %373, %cst_334 [1] : vector<8x10xf32> to vector<8xf32>
    %375 = vector.shape_cast %374 : vector<8xf32> to vector<8x1xf32>
    %376 = vector.broadcast %375 : vector<8x1xf32> to vector<8x10xf32>
    %377 = arith.subf %373, %376 : vector<8x10xf32>
    %378 = math.exp %377 : vector<8x10xf32>
    %cst_335 = arith.constant dense<0.000000e+00> : vector<8xf32>
    %379 = vector.multi_reduction <add>, %378, %cst_335 [1] : vector<8x10xf32> to vector<8xf32>
    %380 = vector.shape_cast %379 : vector<8xf32> to vector<8x1xf32>
    %381 = vector.broadcast %380 : vector<8x1xf32> to vector<8x10xf32>
    %382 = arith.divf %378, %381 : vector<8x10xf32>
    %c0_336 = arith.constant 0 : index
    %c0_337 = arith.constant 0 : index
    %c24_338 = arith.constant 24 : index
    %c0_339 = arith.constant 0 : index
    %383 = vector.load %arg34[%c0_336, %c0_337, %c24_338, %c0_339] : memref<1x1x32x10xf32, #tpu.memory_space<vmem>>, vector<1x1x8x10xf32>
    %384 = vector.shape_cast %383 : vector<1x1x8x10xf32> to vector<8x10xf32>
    %385 = vector.shape_cast %382 : vector<8x10xf32> to vector<1x1x8x10xf32>
    tpu.vector_store %arg34[%c0_336, %c0_337, %c24_338, %c0_339], %385 {strides = array<i32>} : memref<1x1x32x10xf32, #tpu.memory_space<vmem>>, vector<1x1x8x10xf32>,
    %cst_340 = arith.constant dense<0.000000e+00> : vector<8x8xf32>
    %386 = tpu.matmul %382, %370, %cst_340 {dimension_numbers = #tpu.dot_dimension_numbers<[1], [0], [0], [1], [0, 0, 1, 1], [], []>} : vector<8x10xf32>, vector<10x8xf32>, vector<8x8xf32> -> vector<8x8xf32>
    %387 = arith.truncf %386 : vector<8x8xf32> to vector<8x8xbf16>
    %c0_341 = arith.constant 0 : index
    %c3_342 = arith.constant 3 : index
    %c0_343 = arith.constant 0 : index
    %c0_344 = arith.constant 0 : index
    %388 = vector.load %arg22[%c0_341, %c3_342, %c0_343, %c0_344] : memref<1x4x8x32xbf16, #tpu.memory_space<vmem>>, vector<1x1x8x32xbf16>
    %389 = vector.shape_cast %388 : vector<1x1x8x32xbf16> to vector<8x32xbf16>
    %cst_345 = arith.constant dense<0.000000e+00> : vector<8x32xf32>
    %390 = tpu.matmul %387, %389, %cst_345 {dimension_numbers = #tpu.dot_dimension_numbers<[1], [0], [0], [1], [0, 0, 1, 1], [], []>} : vector<8x8xbf16>, vector<8x32xbf16>, vector<8x32xf32> -> vector<8x32xf32>
    %391 = arith.addf %349, %390 : vector<8x32xf32>
    %c0_346 = arith.constant 0 : index
    %c0_347 = arith.constant 0 : index
    %c0_348 = arith.constant 0 : index
    %392 = vector.load %arg23[%c0_346, %c0_347, %c0_348] : memref<1x1x32xf32, #tpu.memory_space<vmem>>, vector<1x1x32xf32>
    %393 = vector.shape_cast %392 : vector<1x1x32xf32> to vector<1x32xf32>
    %394 = vector.broadcast %393 : vector<1x32xf32> to vector<8x32xf32>
    %395 = arith.addf %391, %394 : vector<8x32xf32>
    %396 = arith.addf %221, %395 : vector<8x32xf32>
    %cst_349 = arith.constant dense<0.000000e+00> : vector<8xf32>
    %397 = vector.multi_reduction <add>, %396, %cst_349 [1] : vector<8x32xf32> to vector<8xf32>
    %398 = vector.shape_cast %397 : vector<8xf32> to vector<8x1xf32>
    %cst_350 = arith.constant 3.200000e+01 : f32
    %399 = vector.broadcast %cst_350 : f32 to vector<8x1xf32>
    %400 = arith.divf %398, %399 : vector<8x1xf32>
    %401 = vector.broadcast %400 : vector<8x1xf32> to vector<8x32xf32>
    %402 = arith.subf %396, %401 : vector<8x32xf32>
    %403 = arith.mulf %402, %402 : vector<8x32xf32>
    %cst_351 = arith.constant dense<0.000000e+00> : vector<8xf32>
    %404 = vector.multi_reduction <add>, %403, %cst_351 [1] : vector<8x32xf32> to vector<8xf32>
    %405 = vector.shape_cast %404 : vector<8xf32> to vector<8x1xf32>
    %cst_352 = arith.constant 3.200000e+01 : f32
    %406 = vector.broadcast %cst_352 : f32 to vector<8x1xf32>
    %407 = arith.divf %405, %406 : vector<8x1xf32>
    %408 = vector.broadcast %400 : vector<8x1xf32> to vector<8x32xf32>
    %409 = arith.subf %396, %408 : vector<8x32xf32>
    %cst_353 = arith.constant 9.99999974E-6 : f32
    %410 = vector.broadcast %cst_353 : f32 to vector<8x1xf32>
    %411 = arith.addf %407, %410 : vector<8x1xf32>
    %412 = math.rsqrt %411 : vector<8x1xf32>
    %413 = vector.broadcast %412 : vector<8x1xf32> to vector<8x32xf32>
    %414 = arith.mulf %409, %413 : vector<8x32xf32>
    %c0_354 = arith.constant 0 : index
    %c0_355 = arith.constant 0 : index
    %c0_356 = arith.constant 0 : index
    %415 = vector.load %arg24[%c0_354, %c0_355, %c0_356] : memref<1x1x32xf32, #tpu.memory_space<vmem>>, vector<1x1x32xf32>
    %416 = vector.shape_cast %415 : vector<1x1x32xf32> to vector<1x32xf32>
    %417 = vector.broadcast %416 : vector<1x32xf32> to vector<8x32xf32>
    %418 = arith.mulf %414, %417 : vector<8x32xf32>
    %c0_357 = arith.constant 0 : index
    %c0_358 = arith.constant 0 : index
    %c0_359 = arith.constant 0 : index
    %419 = vector.load %arg25[%c0_357, %c0_358, %c0_359] : memref<1x1x32xf32, #tpu.memory_space<vmem>>, vector<1x1x32xf32>
    %420 = vector.shape_cast %419 : vector<1x1x32xf32> to vector<1x32xf32>
    %421 = vector.broadcast %420 : vector<1x32xf32> to vector<8x32xf32>
    %422 = arith.addf %418, %421 : vector<8x32xf32>
    %423 = arith.truncf %422 : vector<8x32xf32> to vector<8x32xbf16>
    %c0_360 = arith.constant 0 : index
    %c0_361 = arith.constant 0 : index
    %c0_362 = arith.constant 0 : index
    %424 = vector.load %arg26[%c0_360, %c0_361, %c0_362] : memref<1x32x64xbf16, #tpu.memory_space<vmem>>, vector<1x32x64xbf16>
    %425 = vector.shape_cast %424 : vector<1x32x64xbf16> to vector<32x64xbf16>
    %cst_363 = arith.constant dense<0.000000e+00> : vector<8x64xf32>
    %426 = tpu.matmul %423, %425, %cst_363 {dimension_numbers = #tpu.dot_dimension_numbers<[1], [0], [0], [1], [0, 0, 1, 1], [], []>} : vector<8x32xbf16>, vector<32x64xbf16>, vector<8x64xf32> -> vector<8x64xf32>
    %c0_364 = arith.constant 0 : index
    %c0_365 = arith.constant 0 : index
    %c0_366 = arith.constant 0 : index
    %427 = vector.load %arg27[%c0_364, %c0_365, %c0_366] : memref<1x1x64xf32, #tpu.memory_space<vmem>>, vector<1x1x64xf32>
    %428 = vector.shape_cast %427 : vector<1x1x64xf32> to vector<1x64xf32>
    %429 = vector.broadcast %428 : vector<1x64xf32> to vector<8x64xf32>
    %430 = arith.addf %426, %429 : vector<8x64xf32>
    %cst_367 = arith.constant 0.000000e+00 : f32
    %431 = vector.broadcast %cst_367 : f32 to vector<8x64xf32>
    %432 = arith.maximumf %430, %431 : vector<8x64xf32>
    %433 = arith.truncf %432 : vector<8x64xf32> to vector<8x64xbf16>
    %c0_368 = arith.constant 0 : index
    %c0_369 = arith.constant 0 : index
    %c0_370 = arith.constant 0 : index
    %434 = vector.load %arg28[%c0_368, %c0_369, %c0_370] : memref<1x64x32xbf16, #tpu.memory_space<vmem>>, vector<1x64x32xbf16>
    %435 = vector.shape_cast %434 : vector<1x64x32xbf16> to vector<64x32xbf16>
    %cst_371 = arith.constant dense<0.000000e+00> : vector<8x32xf32>
    %436 = tpu.matmul %433, %435, %cst_371 {dimension_numbers = #tpu.dot_dimension_numbers<[1], [0], [0], [1], [0, 0, 1, 1], [], []>} : vector<8x64xbf16>, vector<64x32xbf16>, vector<8x32xf32> -> vector<8x32xf32>
    %c0_372 = arith.constant 0 : index
    %c0_373 = arith.constant 0 : index
    %c0_374 = arith.constant 0 : index
    %437 = vector.load %arg29[%c0_372, %c0_373, %c0_374] : memref<1x1x32xf32, #tpu.memory_space<vmem>>, vector<1x1x32xf32>
    %438 = vector.shape_cast %437 : vector<1x1x32xf32> to vector<1x32xf32>
    %439 = vector.broadcast %438 : vector<1x32xf32> to vector<8x32xf32>
    %440 = arith.addf %436, %439 : vector<8x32xf32>
    %441 = arith.addf %422, %440 : vector<8x32xf32>
    %cst_375 = arith.constant dense<0.000000e+00> : vector<8xf32>
    %442 = vector.multi_reduction <add>, %441, %cst_375 [1] : vector<8x32xf32> to vector<8xf32>
    %443 = vector.shape_cast %442 : vector<8xf32> to vector<8x1xf32>
    %cst_376 = arith.constant 3.200000e+01 : f32
    %444 = vector.broadcast %cst_376 : f32 to vector<8x1xf32>
    %445 = arith.divf %443, %444 : vector<8x1xf32>
    %446 = vector.broadcast %445 : vector<8x1xf32> to vector<8x32xf32>
    %447 = arith.subf %441, %446 : vector<8x32xf32>
    %448 = arith.mulf %447, %447 : vector<8x32xf32>
    %cst_377 = arith.constant dense<0.000000e+00> : vector<8xf32>
    %449 = vector.multi_reduction <add>, %448, %cst_377 [1] : vector<8x32xf32> to vector<8xf32>
    %450 = vector.shape_cast %449 : vector<8xf32> to vector<8x1xf32>
    %cst_378 = arith.constant 3.200000e+01 : f32
    %451 = vector.broadcast %cst_378 : f32 to vector<8x1xf32>
    %452 = arith.divf %450, %451 : vector<8x1xf32>
    %453 = vector.broadcast %445 : vector<8x1xf32> to vector<8x32xf32>
    %454 = arith.subf %441, %453 : vector<8x32xf32>
    %cst_379 = arith.constant 9.99999974E-6 : f32
    %455 = vector.broadcast %cst_379 : f32 to vector<8x1xf32>
    %456 = arith.addf %452, %455 : vector<8x1xf32>
    %457 = math.rsqrt %456 : vector<8x1xf32>
    %458 = vector.broadcast %457 : vector<8x1xf32> to vector<8x32xf32>
    %459 = arith.mulf %454, %458 : vector<8x32xf32>
    %c0_380 = arith.constant 0 : index
    %c0_381 = arith.constant 0 : index
    %c0_382 = arith.constant 0 : index
    %460 = vector.load %arg30[%c0_380, %c0_381, %c0_382] : memref<1x1x32xf32, #tpu.memory_space<vmem>>, vector<1x1x32xf32>
    %461 = vector.shape_cast %460 : vector<1x1x32xf32> to vector<1x32xf32>
    %462 = vector.broadcast %461 : vector<1x32xf32> to vector<8x32xf32>
    %463 = arith.mulf %459, %462 : vector<8x32xf32>
    %c0_383 = arith.constant 0 : index
    %c0_384 = arith.constant 0 : index
    %c0_385 = arith.constant 0 : index
    %464 = vector.load %arg31[%c0_383, %c0_384, %c0_385] : memref<1x1x32xf32, #tpu.memory_space<vmem>>, vector<1x1x32xf32>
    %465 = vector.shape_cast %464 : vector<1x1x32xf32> to vector<1x32xf32>
    %466 = vector.broadcast %465 : vector<1x32xf32> to vector<8x32xf32>
    %467 = arith.addf %463, %466 : vector<8x32xf32>
    %c0_386 = arith.constant 0 : index
    %c0_387 = arith.constant 0 : index
    %468 = vector.load %arg35[%c0_386, %c0_387] : memref<8x32xf32, #tpu.memory_space<vmem>>, vector<8x32xf32>
    tpu.vector_store %arg35[%c0_386, %c0_387], %467 {strides = array<i32>} : memref<8x32xf32, #tpu.memory_space<vmem>>, vector<8x32xf32>,
    %c0_388 = arith.constant 0 : index
    %c0_389 = arith.constant 0 : index
    %c0_390 = arith.constant 0 : index
    %469 = vector.load %arg32[%c0_388, %c0_389, %c0_390] : memref<1x8x32xf32, #tpu.memory_space<vmem>>, vector<1x8x32xf32>
    %470 = vector.shape_cast %469 : vector<1x8x32xf32> to vector<8x32xf32>
    %471 = vector.shape_cast %467 : vector<8x32xf32> to vector<1x8x32xf32>
    tpu.vector_store %arg32[%c0_388, %c0_389, %c0_390], %471 {strides = array<i32>} : memref<1x8x32xf32, #tpu.memory_space<vmem>>, vector<1x8x32xf32>,
    return
  }
  func.func @transform_0(%arg0: i32, %arg1: i32) -> (i32, i32, i32) {
    %c0_i32 = arith.constant 0 : i32
    %c0_i32_0 = arith.constant 0 : i32
    %c0_i32_1 = arith.constant 0 : i32
    return %arg0, %c0_i32, %c0_i32_0 : i32, i32, i32
  }
  func.func @transform_1(%arg0: i32, %arg1: i32) -> (i32, i32, i32) {
    %c0_i32 = arith.constant 0 : i32
    %c0_i32_0 = arith.constant 0 : i32
    %c0_i32_1 = arith.constant 0 : i32
    return %arg0, %c0_i32, %c0_i32_0 : i32, i32, i32
  }
  func.func @transform_2(%arg0: i32, %arg1: i32) -> (i32, i32, i32) {
    %c0_i32 = arith.constant 0 : i32
    %c0_i32_0 = arith.constant 0 : i32
    %c0_i32_1 = arith.constant 0 : i32
    return %arg0, %c0_i32, %c0_i32_0 : i32, i32, i32
  }
  func.func @transform_3(%arg0: i32, %arg1: i32) -> (i32, i32, i32) {
    %c0_i32 = arith.constant 0 : i32
    %c0_i32_0 = arith.constant 0 : i32
    %c0_i32_1 = arith.constant 0 : i32
    return %arg0, %c0_i32, %c0_i32_0 : i32, i32, i32
  }
  func.func @transform_4(%arg0: i32, %arg1: i32) -> (i32, i32, i32, i32) {
    %c0_i32 = arith.constant 0 : i32
    %c0_i32_0 = arith.constant 0 : i32
    %c0_i32_1 = arith.constant 0 : i32
    %c0_i32_2 = arith.constant 0 : i32
    return %arg1, %c0_i32, %c0_i32_0, %c0_i32_1 : i32, i32, i32, i32
  }
  func.func @transform_5(%arg0: i32, %arg1: i32) -> (i32, i32, i32, i32) {
    %c0_i32 = arith.constant 0 : i32
    %c0_i32_0 = arith.constant 0 : i32
    %c0_i32_1 = arith.constant 0 : i32
    %c0_i32_2 = arith.constant 0 : i32
    return %arg1, %c0_i32, %c0_i32_0, %c0_i32_1 : i32, i32, i32, i32
  }
  func.func @transform_6(%arg0: i32, %arg1: i32) -> (i32, i32, i32, i32) {
    %c0_i32 = arith.constant 0 : i32
    %c0_i32_0 = arith.constant 0 : i32
    %c0_i32_1 = arith.constant 0 : i32
    %c0_i32_2 = arith.constant 0 : i32
    return %arg1, %c0_i32, %c0_i32_0, %c0_i32_1 : i32, i32, i32, i32
  }
  func.func @transform_7(%arg0: i32, %arg1: i32) -> (i32, i32, i32, i32) {
    %c0_i32 = arith.constant 0 : i32
    %c0_i32_0 = arith.constant 0 : i32
    %c0_i32_1 = arith.constant 0 : i32
    %c0_i32_2 = arith.constant 0 : i32
    return %arg1, %c0_i32, %c0_i32_0, %c0_i32_1 : i32, i32, i32, i32
  }
  func.func @transform_8(%arg0: i32, %arg1: i32) -> (i32, i32, i32, i32) {
    %c0_i32 = arith.constant 0 : i32
    %c0_i32_0 = arith.constant 0 : i32
    %c0_i32_1 = arith.constant 0 : i32
    %c0_i32_2 = arith.constant 0 : i32
    return %arg1, %c0_i32, %c0_i32_0, %c0_i32_1 : i32, i32, i32, i32
  }
  func.func @transform_9(%arg0: i32, %arg1: i32) -> (i32, i32, i32, i32) {
    %c0_i32 = arith.constant 0 : i32
    %c0_i32_0 = arith.constant 0 : i32
    %c0_i32_1 = arith.constant 0 : i32
    %c0_i32_2 = arith.constant 0 : i32
    return %arg1, %c0_i32, %c0_i32_0, %c0_i32_1 : i32, i32, i32, i32
  }
  func.func @transform_10(%arg0: i32, %arg1: i32) -> (i32, i32, i32, i32) {
    %c0_i32 = arith.constant 0 : i32
    %c0_i32_0 = arith.constant 0 : i32
    %c0_i32_1 = arith.constant 0 : i32
    %c0_i32_2 = arith.constant 0 : i32
    return %arg1, %c0_i32, %c0_i32_0, %c0_i32_1 : i32, i32, i32, i32
  }
  func.func @transform_11(%arg0: i32, %arg1: i32) -> (i32, i32, i32) {
    %c0_i32 = arith.constant 0 : i32
    %c0_i32_0 = arith.constant 0 : i32
    %c0_i32_1 = arith.constant 0 : i32
    return %arg1, %c0_i32, %c0_i32_0 : i32, i32, i32
  }
  func.func @transform_12(%arg0: i32, %arg1: i32) -> (i32, i32, i32) {
    %c0_i32 = arith.constant 0 : i32
    %c0_i32_0 = arith.constant 0 : i32
    %c0_i32_1 = arith.constant 0 : i32
    return %arg1, %c0_i32, %c0_i32_0 : i32, i32, i32
  }
  func.func @transform_13(%arg0: i32, %arg1: i32) -> (i32, i32, i32) {
    %c0_i32 = arith.constant 0 : i32
    %c0_i32_0 = arith.constant 0 : i32
    %c0_i32_1 = arith.constant 0 : i32
    return %arg1, %c0_i32, %c0_i32_0 : i32, i32, i32
  }
  func.func @transform_14(%arg0: i32, %arg1: i32) -> (i32, i32, i32, i32) {
    %c0_i32 = arith.constant 0 : i32
    %c0_i32_0 = arith.constant 0 : i32
    %c0_i32_1 = arith.constant 0 : i32
    %c0_i32_2 = arith.constant 0 : i32
    return %arg1, %c0_i32, %c0_i32_0, %c0_i32_1 : i32, i32, i32, i32
  }
  func.func @transform_15(%arg0: i32, %arg1: i32) -> (i32, i32, i32, i32) {
    %c0_i32 = arith.constant 0 : i32
    %c0_i32_0 = arith.constant 0 : i32
    %c0_i32_1 = arith.constant 0 : i32
    %c0_i32_2 = arith.constant 0 : i32
    return %arg1, %c0_i32, %c0_i32_0, %c0_i32_1 : i32, i32, i32, i32
  }
  func.func @transform_16(%arg0: i32, %arg1: i32) -> (i32, i32, i32, i32) {
    %c0_i32 = arith.constant 0 : i32
    %c0_i32_0 = arith.constant 0 : i32
    %c0_i32_1 = arith.constant 0 : i32
    %c0_i32_2 = arith.constant 0 : i32
    return %arg1, %c0_i32, %c0_i32_0, %c0_i32_1 : i32, i32, i32, i32
  }
  func.func @transform_17(%arg0: i32, %arg1: i32) -> (i32, i32, i32, i32) {
    %c0_i32 = arith.constant 0 : i32
    %c0_i32_0 = arith.constant 0 : i32
    %c0_i32_1 = arith.constant 0 : i32
    %c0_i32_2 = arith.constant 0 : i32
    return %arg1, %c0_i32, %c0_i32_0, %c0_i32_1 : i32, i32, i32, i32
  }
  func.func @transform_18(%arg0: i32, %arg1: i32) -> (i32, i32, i32, i32) {
    %c0_i32 = arith.constant 0 : i32
    %c0_i32_0 = arith.constant 0 : i32
    %c0_i32_1 = arith.constant 0 : i32
    %c0_i32_2 = arith.constant 0 : i32
    return %arg1, %c0_i32, %c0_i32_0, %c0_i32_1 : i32, i32, i32, i32
  }
  func.func @transform_19(%arg0: i32, %arg1: i32) -> (i32, i32, i32, i32) {
    %c0_i32 = arith.constant 0 : i32
    %c0_i32_0 = arith.constant 0 : i32
    %c0_i32_1 = arith.constant 0 : i32
    %c0_i32_2 = arith.constant 0 : i32
    return %arg1, %c0_i32, %c0_i32_0, %c0_i32_1 : i32, i32, i32, i32
  }
  func.func @transform_20(%arg0: i32, %arg1: i32) -> (i32, i32, i32, i32) {
    %c0_i32 = arith.constant 0 : i32
    %c0_i32_0 = arith.constant 0 : i32
    %c0_i32_1 = arith.constant 0 : i32
    %c0_i32_2 = arith.constant 0 : i32
    return %arg1, %c0_i32, %c0_i32_0, %c0_i32_1 : i32, i32, i32, i32
  }
  func.func @transform_21(%arg0: i32, %arg1: i32) -> (i32, i32, i32) {
    %c0_i32 = arith.constant 0 : i32
    %c0_i32_0 = arith.constant 0 : i32
    %c0_i32_1 = arith.constant 0 : i32
    return %arg1, %c0_i32, %c0_i32_0 : i32, i32, i32
  }
  func.func @transform_22(%arg0: i32, %arg1: i32) -> (i32, i32, i32) {
    %c0_i32 = arith.constant 0 : i32
    %c0_i32_0 = arith.constant 0 : i32
    %c0_i32_1 = arith.constant 0 : i32
    return %arg1, %c0_i32, %c0_i32_0 : i32, i32, i32
  }
  func.func @transform_23(%arg0: i32, %arg1: i32) -> (i32, i32, i32) {
    %c0_i32 = arith.constant 0 : i32
    %c0_i32_0 = arith.constant 0 : i32
    %c0_i32_1 = arith.constant 0 : i32
    return %arg1, %c0_i32, %c0_i32_0 : i32, i32, i32
  }
  func.func @transform_24(%arg0: i32, %arg1: i32) -> (i32, i32, i32) {
    %c0_i32 = arith.constant 0 : i32
    %c0_i32_0 = arith.constant 0 : i32
    %c0_i32_1 = arith.constant 0 : i32
    return %arg1, %c0_i32, %c0_i32_0 : i32, i32, i32
  }
  func.func @transform_25(%arg0: i32, %arg1: i32) -> (i32, i32, i32) {
    %c0_i32 = arith.constant 0 : i32
    %c0_i32_0 = arith.constant 0 : i32
    %c0_i32_1 = arith.constant 0 : i32
    return %arg1, %c0_i32, %c0_i32_0 : i32, i32, i32
  }
  func.func @transform_26(%arg0: i32, %arg1: i32) -> (i32, i32, i32) {
    %c0_i32 = arith.constant 0 : i32
    %c0_i32_0 = arith.constant 0 : i32
    %c0_i32_1 = arith.constant 0 : i32
    return %arg1, %c0_i32, %c0_i32_0 : i32, i32, i32
  }
  func.func @transform_27(%arg0: i32, %arg1: i32) -> (i32, i32, i32) {
    %c0_i32 = arith.constant 0 : i32
    %c0_i32_0 = arith.constant 0 : i32
    %c0_i32_1 = arith.constant 0 : i32
    return %arg1, %c0_i32, %c0_i32_0 : i32, i32, i32
  }
  func.func @transform_28(%arg0: i32, %arg1: i32) -> (i32, i32, i32) {
    %c0_i32 = arith.constant 0 : i32
    %c0_i32_0 = arith.constant 0 : i32
    %c0_i32_1 = arith.constant 0 : i32
    return %arg1, %c0_i32, %c0_i32_0 : i32, i32, i32
  }
  func.func @transform_29(%arg0: i32, %arg1: i32) -> (i32, i32, i32) {
    %c0_i32 = arith.constant 0 : i32
    %c0_i32_0 = arith.constant 0 : i32
    %c0_i32_1 = arith.constant 0 : i32
    return %arg1, %c0_i32, %c0_i32_0 : i32, i32, i32
  }
  func.func @transform_30(%arg0: i32, %arg1: i32) -> (i32, i32, i32) {
    %c0_i32 = arith.constant 0 : i32
    %c0_i32_0 = arith.constant 0 : i32
    %c0_i32_1 = arith.constant 0 : i32
    return %arg0, %c0_i32, %c0_i32_0 : i32, i32, i32
  }
  func.func @transform_31(%arg0: i32, %arg1: i32) -> (i32, i32, i32, i32) {
    %c0_i32 = arith.constant 0 : i32
    %c0_i32_0 = arith.constant 0 : i32
    %c0_i32_1 = arith.constant 0 : i32
    return %arg1, %arg0, %c0_i32, %c0_i32_0 : i32, i32, i32, i32
  }
  func.func @transform_32(%arg0: i32, %arg1: i32) -> (i32, i32, i32, i32) {
    %c0_i32 = arith.constant 0 : i32
    %c0_i32_0 = arith.constant 0 : i32
    %c0_i32_1 = arith.constant 0 : i32
    return %arg1, %arg0, %c0_i32, %c0_i32_0 : i32, i32, i32, i32
  }
}

</mosaic_0001>

<llo_original>
// kernel: decoder_forward.1
$region0: #{decoder_forward.1}
  #allocation0 [shape = 'u32[]', space=smem, size = 0x4, offset = 0x4, fixed_abs, tag = 'smem constant byte address 0x4 - core index']
  #allocation1 [shape = 'u32[72,128]{1,0:T(1,128)}', space=vmem, size = 0x9000, scoped, tag = 'internal scratch']
  #allocation2 [shape = 'f32[8,32]{1,0:T(8,128)}', space=vmem, size = 0x1000, scoped, tag = 'scratch operand']
  %s0 = inlined_call_operand.smem [shape: u32[33], index: -1, kind: input, shape index: {}]
  %s1 = sld [smem:[%s0]]
  %s2 = scalar_lea.smem %s0, 1
  %s3 = sld [smem:[%s2]]
  %s4 = scalar_lea.smem %s0, 2
  %s5 = sld [smem:[%s4]]
  %s6 = scalar_lea.smem %s0, 3
  %s7 = sld [smem:[%s6]]
  %s8 = scalar_lea.smem %s0, 4
  %s9 = sld [smem:[%s8]]
  %s10 = scalar_lea.smem %s0, 5
  %s11 = sld [smem:[%s10]]
  %s12 = scalar_lea.smem %s0, 6
  %s13 = sld [smem:[%s12]]
  %s14 = scalar_lea.smem %s0, 7
  %s15 = sld [smem:[%s14]]
  %s16 = scalar_lea.smem %s0, 8
  %s17 = sld [smem:[%s16]]
  %s18 = scalar_lea.smem %s0, 9
  %s19 = sld [smem:[%s18]]
  %s20 = scalar_lea.smem %s0, 10
  %s21 = sld [smem:[%s20]]
  %s22 = scalar_lea.smem %s0, 11
  %s23 = sld [smem:[%s22]]
  %s24 = scalar_lea.smem %s0, 12
  %s25 = sld [smem:[%s24]]
  %s26 = scalar_lea.smem %s0, 13
  %s27 = sld [smem:[%s26]]
  %s28 = scalar_lea.smem %s0, 14
  %s29 = sld [smem:[%s28]]
  %s30 = scalar_lea.smem %s0, 15
  %s31 = sld [smem:[%s30]]
  %s32 = scalar_lea.smem %s0, 16
  %s33 = sld [smem:[%s32]]
  %s34 = scalar_lea.smem %s0, 17
  %s35 = sld [smem:[%s34]]
  %s36 = scalar_lea.smem %s0, 18
  %s37 = sld [smem:[%s36]]
  %s38 = scalar_lea.smem %s0, 19
  %s39 = sld [smem:[%s38]]
  %s40 = scalar_lea.smem %s0, 20
  %s41 = sld [smem:[%s40]]
  %s42 = scalar_lea.smem %s0, 21
  %s43 = sld [smem:[%s42]]
  %s44 = scalar_lea.smem %s0, 22
  %s45 = sld [smem:[%s44]]
  %s46 = scalar_lea.smem %s0, 23
  %s47 = sld [smem:[%s46]]
  %s48 = scalar_lea.smem %s0, 24
  %s49 = sld [smem:[%s48]]
  %s50 = scalar_lea.smem %s0, 25
  %s51 = sld [smem:[%s50]]
  %s52 = scalar_lea.smem %s0, 26
  %s53 = sld [smem:[%s52]]
  %s54 = scalar_lea.smem %s0, 27
  %s55 = sld [smem:[%s54]]
  %s56 = scalar_lea.smem %s0, 28
  %s57 = sld [smem:[%s56]]
  %s58 = scalar_lea.smem %s0, 29
  %s59 = sld [smem:[%s58]]
  %s60 = scalar_lea.smem %s0, 30
  %s61 = sld [smem:[%s60]]
  %s62 = scalar_lea.smem %s0, 31
  %s63 = sld [smem:[%s62]]
  %s64 = scalar_lea.smem %s0, 32
  %s65 = sld [smem:[%s64]]
  %66 = xla_tuple %s61, %s63, %s65
  %s67 = sld [smem:[#allocation0]]
  $region173: #{decoder_forward.1} parent=0
    _
  %s69 = ssub.s32 1, %s67
  %s70 = scalar_select 0, %s69, %s67
  $region1: #{decoder_forward.1} parent=0
    #allocation3 [shape = 'u8[8192]{0}', space=vmem, size = 0x2000, scoped, tag = 'output window, operand 0']
    #allocation4 [shape = 's32[2]{0}', space=sflag, size = 0x8, scoped, tag = 'scoped memory for decoder_forward.1']
    %71 = vsyncpa [#allocation4], 0
    %s72 = scalar_lea.sflag [#allocation4], 1
    %73 = vsyncpa %s72, 0
    loop: start=0, step=1, limit=6
    $region2: #{decoder_forward.1} parent=1 // loop_pre_header
      _
    $region3: #{decoder_forward.1} parent=1 // loop_header
      %s75 = sphi 0, %s79
      %p76 = scmp.ge.s32.totalorder %s75, 6
      %s82 = sphi 0, %s94
      %s83 = sphi 0, %s90
      %s84 = sphi 0, %s82
      %s85 = sphi 0, %s83
      %s86 = sphi 0, %s84
      %s87 = sphi 0, %s85
      %s97 = sphi 0, %s99
      %s100 = sphi 0, %s97
      %s101 = sphi 0, %s100
      %s117 = sphi 0, %s101
      %s123 = sphi 0, %s125
      %s126 = sphi 0, %s123
      %s127 = sphi 0, %s126
      %s143 = sphi 0, %s127
      %s149 = sphi 0, %s151
      %s152 = sphi 0, %s149
      %s153 = sphi 0, %s152
      %s169 = sphi 0, %s153
      %s175 = sphi 0, %s177
      %s178 = sphi 0, %s175
      %s179 = sphi 0, %s178
      %s195 = sphi 0, %s179
      %s201 = sphi 0, %s203
      %s204 = sphi 0, %s201
      %s205 = sphi 0, %s204
      %s221 = sphi 0, %s205
      %s227 = sphi 0, %s229
      %s230 = sphi 0, %s227
      %s231 = sphi 0, %s230
      %s247 = sphi 0, %s231
      %s253 = sphi 0, %s255
      %s256 = sphi 0, %s253
      %s257 = sphi 0, %s256
      %s273 = sphi 0, %s257
      %s279 = sphi 0, %s281
      %s282 = sphi 0, %s279
      %s283 = sphi 0, %s282
      %s299 = sphi 0, %s283
      %s305 = sphi 0, %s307
      %s308 = sphi 0, %s305
      %s309 = sphi 0, %s308
      %s325 = sphi 0, %s309
      %s331 = sphi 0, %s333
      %s334 = sphi 0, %s331
      %s335 = sphi 0, %s334
      %s351 = sphi 0, %s335
      %s357 = sphi 0, %s359
      %s360 = sphi 0, %s357
      %s361 = sphi 0, %s360
      %s377 = sphi 0, %s361
      %s383 = sphi 0, %s385
      %s386 = sphi 0, %s383
      %s387 = sphi 0, %s386
      %s403 = sphi 0, %s387
      %s409 = sphi 0, %s411
      %s412 = sphi 0, %s409
      %s413 = sphi 0, %s412
      %s429 = sphi 0, %s413
      %s435 = sphi 0, %s437
      %s438 = sphi 0, %s435
      %s439 = sphi 0, %s438
      %s455 = sphi 0, %s439
      %s461 = sphi 0, %s463
      %s464 = sphi 0, %s461
      %s465 = sphi 0, %s464
      %s481 = sphi 0, %s465
      %s487 = sphi 0, %s489
      %s490 = sphi 0, %s487
      %s491 = sphi 0, %s490
      %s507 = sphi 0, %s491
      %s513 = sphi 0, %s515
      %s516 = sphi 0, %s513
      %s517 = sphi 0, %s516
      %s533 = sphi 0, %s517
      %s539 = sphi 0, %s541
      %s542 = sphi 0, %s539
      %s543 = sphi 0, %s542
      %s559 = sphi 0, %s543
      %s565 = sphi 0, %s567
      %s568 = sphi 0, %s565
      %s569 = sphi 0, %s568
      %s585 = sphi 0, %s569
      %s591 = sphi 0, %s593
      %s594 = sphi 0, %s591
      %s595 = sphi 0, %s594
      %s611 = sphi 0, %s595
      %s617 = sphi 0, %s619
      %s620 = sphi 0, %s617
      %s621 = sphi 0, %s620
      %s637 = sphi 0, %s621
      %s643 = sphi 0, %s645
      %s646 = sphi 0, %s643
      %s647 = sphi 0, %s646
      %s663 = sphi 0, %s647
      %s669 = sphi 0, %s671
      %s672 = sphi 0, %s669
      %s673 = sphi 0, %s672
      %s689 = sphi 0, %s673
      %s695 = sphi 0, %s697
      %s698 = sphi 0, %s695
      %s699 = sphi 0, %s698
      %s715 = sphi 0, %s699
      %s721 = sphi 0, %s723
      %s724 = sphi 0, %s721
      %s725 = sphi 0, %s724
      %s741 = sphi 0, %s725
      %s747 = sphi 0, %s749
      %s750 = sphi 0, %s747
      %s751 = sphi 0, %s750
      %s767 = sphi 0, %s751
      %s773 = sphi 0, %s775
      %s776 = sphi 0, %s773
      %s777 = sphi 0, %s776
      %s793 = sphi 0, %s777
      %s799 = sphi 0, %s801
      %s802 = sphi 0, %s799
      %s803 = sphi 0, %s802
      %s819 = sphi 0, %s803
      %s825 = sphi 0, %s827
      %s828 = sphi 0, %s825
      %s829 = sphi 0, %s828
      %s845 = sphi 0, %s829
      %s851 = sphi 0, %s853
      %s854 = sphi 0, %s851
      %s855 = sphi 0, %s854
      %s871 = sphi 0, %s855
      %s877 = sphi 0, %s879
      %s880 = sphi 0, %s877
      %s881 = sphi 0, %s880
      %s897 = sphi 0, %s881
      %s905 = sphi 0, %s907
      %s908 = sphi 0, %s905
      %s909 = sphi 0, %s908
      %s925 = sphi 0, %s909
      %s933 = sphi 0, %s935
      %s936 = sphi 0, %s933
      %s937 = sphi 0, %s936
      %s953 = sphi 0, %s937
    $region4: #{decoder_forward.1} parent=1 // loop_header_branch
      %78 = sbr.rel (%p76) target = $region8
    $region5: #{decoder_forward.1} parent=1 // loop_body
      %s80 = ssub.s32 %s75, 1
      %s81 = ssub.s32 %s75, 2
      %s88 = sadd.s32 1, %s83
      %p89 = scmp.ge.s32.totalorder %s88, 2
      %s90 = scalar_select %p89, 0, %s88
      %s91 = sadd.s32 1, %s82
      %s92 = scalar_select %p89, %s91, %s82
      %p93 = scmp.ge.s32.totalorder %s92, 2
      %s94 = scalar_select %p93, 0, %s92
      %s95 = ssub.s32 %s82, %s94
      %p96 = scmp.eq.s32.totalorder %s95, 0
      %s98 = sadd.s32 %s97, 1
      %s99 = scalar_select %p96, %s97, %s98
      %p102 = pneg %p96
      %p103 = scmp.eq.s32.totalorder %s75, 3
      %p104 = por %p102, %p103
      %p105 = scmp.ne.s32.totalorder %s97, %s100
      %p106 = scmp.eq.s32.totalorder %s75, 0
      %p107 = por %p105, %p106
      %p108 = scmp.ne.s32.totalorder %s97, %s100
      %p109 = scmp.eq.s32.totalorder %s80, 3
      %p110 = por %p108, %p109
      %p111 = scmp.ne.s32.totalorder %s100, %s101
      %p112 = scmp.eq.s32.totalorder %s80, 0
      %p113 = por %p111, %p112
      %p114 = scmp.ne.s32.totalorder %s100, %s101
      %p115 = scmp.eq.s32.totalorder %s81, 3
      %p116 = por %p114, %p115
      %p118 = scmp.ne.s32.totalorder %s101, %s117
      %p119 = scmp.eq.s32.totalorder %s81, 0
      %p120 = por %p118, %p119
      %s121 = ssub.s32 %s82, %s94
      %p122 = scmp.eq.s32.totalorder %s121, 0
      %s124 = sadd.s32 %s123, 1
      %s125 = scalar_select %p122, %s123, %s124
      %p128 = pneg %p122
      %p129 = scmp.eq.s32.totalorder %s75, 3
      %p130 = por %p128, %p129
      %p131 = scmp.ne.s32.totalorder %s123, %s126
      %p132 = scmp.eq.s32.totalorder %s75, 0
      %p133 = por %p131, %p132
      %p134 = scmp.ne.s32.totalorder %s123, %s126
      %p135 = scmp.eq.s32.totalorder %s80, 3
      %p136 = por %p134, %p135
      %p137 = scmp.ne.s32.totalorder %s126, %s127
      %p138 = scmp.eq.s32.totalorder %s80, 0
      %p139 = por %p137, %p138
      %p140 = scmp.ne.s32.totalorder %s126, %s127
      %p141 = scmp.eq.s32.totalorder %s81, 3
      %p142 = por %p140, %p141
      %p144 = scmp.ne.s32.totalorder %s127, %s143
      %p145 = scmp.eq.s32.totalorder %s81, 0
      %p146 = por %p144, %p145
      %s147 = ssub.s32 %s82, %s94
      %p148 = scmp.eq.s32.totalorder %s147, 0
      %s150 = sadd.s32 %s149, 1
      %s151 = scalar_select %p148, %s149, %s150
      %p154 = pneg %p148
      %p155 = scmp.eq.s32.totalorder %s75, 3
      %p156 = por %p154, %p155
      %p157 = scmp.ne.s32.totalorder %s149, %s152
      %p158 = scmp.eq.s32.totalorder %s75, 0
      %p159 = por %p157, %p158
      %p160 = scmp.ne.s32.totalorder %s149, %s152
      %p161 = scmp.eq.s32.totalorder %s80, 3
      %p162 = por %p160, %p161
      %p163 = scmp.ne.s32.totalorder %s152, %s153
      %p164 = scmp.eq.s32.totalorder %s80, 0
      %p165 = por %p163, %p164
      %p166 = scmp.ne.s32.totalorder %s152, %s153
      %p167 = scmp.eq.s32.totalorder %s81, 3
      %p168 = por %p166, %p167
      %p170 = scmp.ne.s32.totalorder %s153, %s169
      %p171 = scmp.eq.s32.totalorder %s81, 0
      %p172 = por %p170, %p171
      %s173 = ssub.s32 %s82, %s94
      %p174 = scmp.eq.s32.totalorder %s173, 0
      %s176 = sadd.s32 %s175, 1
      %s177 = scalar_select %p174, %s175, %s176
      %p180 = pneg %p174
      %p181 = scmp.eq.s32.totalorder %s75, 3
      %p182 = por %p180, %p181
      %p183 = scmp.ne.s32.totalorder %s175, %s178
      %p184 = scmp.eq.s32.totalorder %s75, 0
      %p185 = por %p183, %p184
      %p186 = scmp.ne.s32.totalorder %s175, %s178
      %p187 = scmp.eq.s32.totalorder %s80, 3
      %p188 = por %p186, %p187
      %p189 = scmp.ne.s32.totalorder %s178, %s179
      %p190 = scmp.eq.s32.totalorder %s80, 0
      %p191 = por %p189, %p190
      %p192 = scmp.ne.s32.totalorder %s178, %s179
      %p193 = scmp.eq.s32.totalorder %s81, 3
      %p194 = por %p192, %p193
      %p196 = scmp.ne.s32.totalorder %s179, %s195
      %p197 = scmp.eq.s32.totalorder %s81, 0
      %p198 = por %p196, %p197
      %s199 = ssub.s32 %s83, %s90
      %p200 = scmp.eq.s32.totalorder %s199, 0
      %s202 = sadd.s32 %s201, 1
      %s203 = scalar_select %p200, %s201, %s202
      %p206 = pneg %p200
      %p207 = scmp.eq.s32.totalorder %s75, 3
      %p208 = por %p206, %p207
      %p209 = scmp.ne.s32.totalorder %s201, %s204
      %p210 = scmp.eq.s32.totalorder %s75, 0
      %p211 = por %p209, %p210
      %p212 = scmp.ne.s32.totalorder %s201, %s204
      %p213 = scmp.eq.s32.totalorder %s80, 3
      %p214 = por %p212, %p213
      %p215 = scmp.ne.s32.totalorder %s204, %s205
      %p216 = scmp.eq.s32.totalorder %s80, 0
      %p217 = por %p215, %p216
      %p218 = scmp.ne.s32.totalorder %s204, %s205
      %p219 = scmp.eq.s32.totalorder %s81, 3
      %p220 = por %p218, %p219
      %p222 = scmp.ne.s32.totalorder %s205, %s221
      %p223 = scmp.eq.s32.totalorder %s81, 0
      %p224 = por %p222, %p223
      %s225 = ssub.s32 %s83, %s90
      %p226 = scmp.eq.s32.totalorder %s225, 0
      %s228 = sadd.s32 %s227, 1
      %s229 = scalar_select %p226, %s227, %s228
      %p232 = pneg %p226
      %p233 = scmp.eq.s32.totalorder %s75, 3
      %p234 = por %p232, %p233
      %p235 = scmp.ne.s32.totalorder %s227, %s230
      %p236 = scmp.eq.s32.totalorder %s75, 0
      %p237 = por %p235, %p236
      %p238 = scmp.ne.s32.totalorder %s227, %s230
      %p239 = scmp.eq.s32.totalorder %s80, 3
      %p240 = por %p238, %p239
      %p241 = scmp.ne.s32.totalorder %s230, %s231
      %p242 = scmp.eq.s32.totalorder %s80, 0
      %p243 = por %p241, %p242
      %p244 = scmp.ne.s32.totalorder %s230, %s231
      %p245 = scmp.eq.s32.totalorder %s81, 3
      %p246 = por %p244, %p245
      %p248 = scmp.ne.s32.totalorder %s231, %s247
      %p249 = scmp.eq.s32.totalorder %s81, 0
      %p250 = por %p248, %p249
      %s251 = ssub.s32 %s83, %s90
      %p252 = scmp.eq.s32.totalorder %s251, 0
      %s254 = sadd.s32 %s253, 1
      %s255 = scalar_select %p252, %s253, %s254
      %p258 = pneg %p252
      %p259 = scmp.eq.s32.totalorder %s75, 3
      %p260 = por %p258, %p259
      %p261 = scmp.ne.s32.totalorder %s253, %s256
      %p262 = scmp.eq.s32.totalorder %s75, 0
      %p263 = por %p261, %p262
      %p264 = scmp.ne.s32.totalorder %s253, %s256
      %p265 = scmp.eq.s32.totalorder %s80, 3
      %p266 = por %p264, %p265
      %p267 = scmp.ne.s32.totalorder %s256, %s257
      %p268 = scmp.eq.s32.totalorder %s80, 0
      %p269 = por %p267, %p268
      %p270 = scmp.ne.s32.totalorder %s256, %s257
      %p271 = scmp.eq.s32.totalorder %s81, 3
      %p272 = por %p270, %p271
      %p274 = scmp.ne.s32.totalorder %s257, %s273
      %p275 = scmp.eq.s32.totalorder %s81, 0
      %p276 = por %p274, %p275
      %s277 = ssub.s32 %s83, %s90
      %p278 = scmp.eq.s32.totalorder %s277, 0
      %s280 = sadd.s32 %s279, 1
      %s281 = scalar_select %p278, %s279, %s280
      %p284 = pneg %p278
      %p285 = scmp.eq.s32.totalorder %s75, 3
      %p286 = por %p284, %p285
      %p287 = scmp.ne.s32.totalorder %s279, %s282
      %p288 = scmp.eq.s32.totalorder %s75, 0
      %p289 = por %p287, %p288
      %p290 = scmp.ne.s32.totalorder %s279, %s282
      %p291 = scmp.eq.s32.totalorder %s80, 3
      %p292 = por %p290, %p291
      %p293 = scmp.ne.s32.totalorder %s282, %s283
      %p294 = scmp.eq.s32.totalorder %s80, 0
      %p295 = por %p293, %p294
      %p296 = scmp.ne.s32.totalorder %s282, %s283
      %p297 = scmp.eq.s32.totalorder %s81, 3
      %p298 = por %p296, %p297
      %p300 = scmp.ne.s32.totalorder %s283, %s299
      %p301 = scmp.eq.s32.totalorder %s81, 0
      %p302 = por %p300, %p301
      %s303 = ssub.s32 %s83, %s90
      %p304 = scmp.eq.s32.totalorder %s303, 0
      %s306 = sadd.s32 %s305, 1
      %s307 = scalar_select %p304, %s305, %s306
      %p310 = pneg %p304
      %p311 = scmp.eq.s32.totalorder %s75, 3
      %p312 = por %p310, %p311
      %p313 = scmp.ne.s32.totalorder %s305, %s308
      %p314 = scmp.eq.s32.totalorder %s75, 0
      %p315 = por %p313, %p314
      %p316 = scmp.ne.s32.totalorder %s305, %s308
      %p317 = scmp.eq.s32.totalorder %s80, 3
      %p318 = por %p316, %p317
      %p319 = scmp.ne.s32.totalorder %s308, %s309
      %p320 = scmp.eq.s32.totalorder %s80, 0
      %p321 = por %p319, %p320
      %p322 = scmp.ne.s32.totalorder %s308, %s309
      %p323 = scmp.eq.s32.totalorder %s81, 3
      %p324 = por %p322, %p323
      %p326 = scmp.ne.s32.totalorder %s309, %s325
      %p327 = scmp.eq.s32.totalorder %s81, 0
      %p328 = por %p326, %p327
      %s329 = ssub.s32 %s83, %s90
      %p330 = scmp.eq.s32.totalorder %s329, 0
      %s332 = sadd.s32 %s331, 1
      %s333 = scalar_select %p330, %s331, %s332
      %p336 = pneg %p330
      %p337 = scmp.eq.s32.totalorder %s75, 3
      %p338 = por %p336, %p337
      %p339 = scmp.ne.s32.totalorder %s331, %s334
      %p340 = scmp.eq.s32.totalorder %s75, 0
      %p341 = por %p339, %p340
      %p342 = scmp.ne.s32.totalorder %s331, %s334
      %p343 = scmp.eq.s32.totalorder %s80, 3
      %p344 = por %p342, %p343
      %p345 = scmp.ne.s32.totalorder %s334, %s335
      %p346 = scmp.eq.s32.totalorder %s80, 0
      %p347 = por %p345, %p346
      %p348 = scmp.ne.s32.totalorder %s334, %s335
      %p349 = scmp.eq.s32.totalorder %s81, 3
      %p350 = por %p348, %p349
      %p352 = scmp.ne.s32.totalorder %s335, %s351
      %p353 = scmp.eq.s32.totalorder %s81, 0
      %p354 = por %p352, %p353
      %s355 = ssub.s32 %s83, %s90
      %p356 = scmp.eq.s32.totalorder %s355, 0
      %s358 = sadd.s32 %s357, 1
      %s359 = scalar_select %p356, %s357, %s358
      %p362 = pneg %p356
      %p363 = scmp.eq.s32.totalorder %s75, 3
      %p364 = por %p362, %p363
      %p365 = scmp.ne.s32.totalorder %s357, %s360
      %p366 = scmp.eq.s32.totalorder %s75, 0
      %p367 = por %p365, %p366
      %p368 = scmp.ne.s32.totalorder %s357, %s360
      %p369 = scmp.eq.s32.totalorder %s80, 3
      %p370 = por %p368, %p369
      %p371 = scmp.ne.s32.totalorder %s360, %s361
      %p372 = scmp.eq.s32.totalorder %s80, 0
      %p373 = por %p371, %p372
      %p374 = scmp.ne.s32.totalorder %s360, %s361
      %p375 = scmp.eq.s32.totalorder %s81, 3
      %p376 = por %p374, %p375
      %p378 = scmp.ne.s32.totalorder %s361, %s377
      %p379 = scmp.eq.s32.totalorder %s81, 0
      %p380 = por %p378, %p379
      %s381 = ssub.s32 %s83, %s90
      %p382 = scmp.eq.s32.totalorder %s381, 0
      %s384 = sadd.s32 %s383, 1
      %s385 = scalar_select %p382, %s383, %s384
      %p388 = pneg %p382
      %p389 = scmp.eq.s32.totalorder %s75, 3
      %p390 = por %p388, %p389
      %p391 = scmp.ne.s32.totalorder %s383, %s386
      %p392 = scmp.eq.s32.totalorder %s75, 0
      %p393 = por %p391, %p392
      %p394 = scmp.ne.s32.totalorder %s383, %s386
      %p395 = scmp.eq.s32.totalorder %s80, 3
      %p396 = por %p394, %p395
      %p397 = scmp.ne.s32.totalorder %s386, %s387
      %p398 = scmp.eq.s32.totalorder %s80, 0
      %p399 = por %p397, %p398
      %p400 = scmp.ne.s32.totalorder %s386, %s387
      %p401 = scmp.eq.s32.totalorder %s81, 3
      %p402 = por %p400, %p401
      %p404 = scmp.ne.s32.totalorder %s387, %s403
      %p405 = scmp.eq.s32.totalorder %s81, 0
      %p406 = por %p404, %p405
      %s407 = ssub.s32 %s83, %s90
      %p408 = scmp.eq.s32.totalorder %s407, 0
      %s410 = sadd.s32 %s409, 1
      %s411 = scalar_select %p408, %s409, %s410
      %p414 = pneg %p408
      %p415 = scmp.eq.s32.totalorder %s75, 3
      %p416 = por %p414, %p415
      %p417 = scmp.ne.s32.totalorder %s409, %s412
      %p418 = scmp.eq.s32.totalorder %s75, 0
      %p419 = por %p417, %p418
      %p420 = scmp.ne.s32.totalorder %s409, %s412
      %p421 = scmp.eq.s32.totalorder %s80, 3
      %p422 = por %p420, %p421
      %p423 = scmp.ne.s32.totalorder %s412, %s413
      %p424 = scmp.eq.s32.totalorder %s80, 0
      %p425 = por %p423, %p424
      %p426 = scmp.ne.s32.totalorder %s412, %s413
      %p427 = scmp.eq.s32.totalorder %s81, 3
      %p428 = por %p426, %p427
      %p430 = scmp.ne.s32.totalorder %s413, %s429
      %p431 = scmp.eq.s32.totalorder %s81, 0
      %p432 = por %p430, %p431
      %s433 = ssub.s32 %s83, %s90
      %p434 = scmp.eq.s32.totalorder %s433, 0
      %s436 = sadd.s32 %s435, 1
      %s437 = scalar_select %p434, %s435, %s436
      %p440 = pneg %p434
      %p441 = scmp.eq.s32.totalorder %s75, 3
      %p442 = por %p440, %p441
      %p443 = scmp.ne.s32.totalorder %s435, %s438
      %p444 = scmp.eq.s32.totalorder %s75, 0
      %p445 = por %p443, %p444
      %p446 = scmp.ne.s32.totalorder %s435, %s438
      %p447 = scmp.eq.s32.totalorder %s80, 3
      %p448 = por %p446, %p447
      %p449 = scmp.ne.s32.totalorder %s438, %s439
      %p450 = scmp.eq.s32.totalorder %s80, 0
      %p451 = por %p449, %p450
      %p452 = scmp.ne.s32.totalorder %s438, %s439
      %p453 = scmp.eq.s32.totalorder %s81, 3
      %p454 = por %p452, %p453
      %p456 = scmp.ne.s32.totalorder %s439, %s455
      %p457 = scmp.eq.s32.totalorder %s81, 0
      %p458 = por %p456, %p457
      %s459 = ssub.s32 %s83, %s90
      %p460 = scmp.eq.s32.totalorder %s459, 0
      %s462 = sadd.s32 %s461, 1
      %s463 = scalar_select %p460, %s461, %s462
      %p466 = pneg %p460
      %p467 = scmp.eq.s32.totalorder %s75, 3
      %p468 = por %p466, %p467
      %p469 = scmp.ne.s32.totalorder %s461, %s464
      %p470 = scmp.eq.s32.totalorder %s75, 0
      %p471 = por %p469, %p470
      %p472 = scmp.ne.s32.totalorder %s461, %s464
      %p473 = scmp.eq.s32.totalorder %s80, 3
      %p474 = por %p472, %p473
      %p475 = scmp.ne.s32.totalorder %s464, %s465
      %p476 = scmp.eq.s32.totalorder %s80, 0
      %p477 = por %p475, %p476
      %p478 = scmp.ne.s32.totalorder %s464, %s465
      %p479 = scmp.eq.s32.totalorder %s81, 3
      %p480 = por %p478, %p479
      %p482 = scmp.ne.s32.totalorder %s465, %s481
      %p483 = scmp.eq.s32.totalorder %s81, 0
      %p484 = por %p482, %p483
      %s485 = ssub.s32 %s83, %s90
      %p486 = scmp.eq.s32.totalorder %s485, 0
      %s488 = sadd.s32 %s487, 1
      %s489 = scalar_select %p486, %s487, %s488
      %p492 = pneg %p486
      %p493 = scmp.eq.s32.totalorder %s75, 3
      %p494 = por %p492, %p493
      %p495 = scmp.ne.s32.totalorder %s487, %s490
      %p496 = scmp.eq.s32.totalorder %s75, 0
      %p497 = por %p495, %p496
      %p498 = scmp.ne.s32.totalorder %s487, %s490
      %p499 = scmp.eq.s32.totalorder %s80, 3
      %p500 = por %p498, %p499
      %p501 = scmp.ne.s32.totalorder %s490, %s491
      %p502 = scmp.eq.s32.totalorder %s80, 0
      %p503 = por %p501, %p502
      %p504 = scmp.ne.s32.totalorder %s490, %s491
      %p505 = scmp.eq.s32.totalorder %s81, 3
      %p506 = por %p504, %p505
      %p508 = scmp.ne.s32.totalorder %s491, %s507
      %p509 = scmp.eq.s32.totalorder %s81, 0
      %p510 = por %p508, %p509
      %s511 = ssub.s32 %s83, %s90
      %p512 = scmp.eq.s32.totalorder %s511, 0
      %s514 = sadd.s32 %s513, 1
      %s515 = scalar_select %p512, %s513, %s514
      %p518 = pneg %p512
      %p519 = scmp.eq.s32.totalorder %s75, 3
      %p520 = por %p518, %p519
      %p521 = scmp.ne.s32.totalorder %s513, %s516
      %p522 = scmp.eq.s32.totalorder %s75, 0
      %p523 = por %p521, %p522
      %p524 = scmp.ne.s32.totalorder %s513, %s516
      %p525 = scmp.eq.s32.totalorder %s80, 3
      %p526 = por %p524, %p525
      %p527 = scmp.ne.s32.totalorder %s516, %s517
      %p528 = scmp.eq.s32.totalorder %s80, 0
      %p529 = por %p527, %p528
      %p530 = scmp.ne.s32.totalorder %s516, %s517
      %p531 = scmp.eq.s32.totalorder %s81, 3
      %p532 = por %p530, %p531
      %p534 = scmp.ne.s32.totalorder %s517, %s533
      %p535 = scmp.eq.s32.totalorder %s81, 0
      %p536 = por %p534, %p535
      %s537 = ssub.s32 %s83, %s90
      %p538 = scmp.eq.s32.totalorder %s537, 0
      %s540 = sadd.s32 %s539, 1
      %s541 = scalar_select %p538, %s539, %s540
      %p544 = pneg %p538
      %p545 = scmp.eq.s32.totalorder %s75, 3
      %p546 = por %p544, %p545
      %p547 = scmp.ne.s32.totalorder %s539, %s542
      %p548 = scmp.eq.s32.totalorder %s75, 0
      %p549 = por %p547, %p548
      %p550 = scmp.ne.s32.totalorder %s539, %s542
      %p551 = scmp.eq.s32.totalorder %s80, 3
      %p552 = por %p550, %p551
      %p553 = scmp.ne.s32.totalorder %s542, %s543
      %p554 = scmp.eq.s32.totalorder %s80, 0
      %p555 = por %p553, %p554
      %p556 = scmp.ne.s32.totalorder %s542, %s543
      %p557 = scmp.eq.s32.totalorder %s81, 3
      %p558 = por %p556, %p557
      %p560 = scmp.ne.s32.totalorder %s543, %s559
      %p561 = scmp.eq.s32.totalorder %s81, 0
      %p562 = por %p560, %p561
      %s563 = ssub.s32 %s83, %s90
      %p564 = scmp.eq.s32.totalorder %s563, 0
      %s566 = sadd.s32 %s565, 1
      %s567 = scalar_select %p564, %s565, %s566
      %p570 = pneg %p564
      %p571 = scmp.eq.s32.totalorder %s75, 3
      %p572 = por %p570, %p571
      %p573 = scmp.ne.s32.totalorder %s565, %s568
      %p574 = scmp.eq.s32.totalorder %s75, 0
      %p575 = por %p573, %p574
      %p576 = scmp.ne.s32.totalorder %s565, %s568
      %p577 = scmp.eq.s32.totalorder %s80, 3
      %p578 = por %p576, %p577
      %p579 = scmp.ne.s32.totalorder %s568, %s569
      %p580 = scmp.eq.s32.totalorder %s80, 0
      %p581 = por %p579, %p580
      %p582 = scmp.ne.s32.totalorder %s568, %s569
      %p583 = scmp.eq.s32.totalorder %s81, 3
      %p584 = por %p582, %p583
      %p586 = scmp.ne.s32.totalorder %s569, %s585
      %p587 = scmp.eq.s32.totalorder %s81, 0
      %p588 = por %p586, %p587
      %s589 = ssub.s32 %s83, %s90
      %p590 = scmp.eq.s32.totalorder %s589, 0
      %s592 = sadd.s32 %s591, 1
      %s593 = scalar_select %p590, %s591, %s592
      %p596 = pneg %p590
      %p597 = scmp.eq.s32.totalorder %s75, 3
      %p598 = por %p596, %p597
      %p599 = scmp.ne.s32.totalorder %s591, %s594
      %p600 = scmp.eq.s32.totalorder %s75, 0
      %p601 = por %p599, %p600
      %p602 = scmp.ne.s32.totalorder %s591, %s594
      %p603 = scmp.eq.s32.totalorder %s80, 3
      %p604 = por %p602, %p603
      %p605 = scmp.ne.s32.totalorder %s594, %s595
      %p606 = scmp.eq.s32.totalorder %s80, 0
      %p607 = por %p605, %p606
      %p608 = scmp.ne.s32.totalorder %s594, %s595
      %p609 = scmp.eq.s32.totalorder %s81, 3
      %p610 = por %p608, %p609
      %p612 = scmp.ne.s32.totalorder %s595, %s611
      %p613 = scmp.eq.s32.totalorder %s81, 0
      %p614 = por %p612, %p613
      %s615 = ssub.s32 %s83, %s90
      %p616 = scmp.eq.s32.totalorder %s615, 0
      %s618 = sadd.s32 %s617, 1
      %s619 = scalar_select %p616, %s617, %s618
      %p622 = pneg %p616
      %p623 = scmp.eq.s32.totalorder %s75, 3
      %p624 = por %p622, %p623
      %p625 = scmp.ne.s32.totalorder %s617, %s620
      %p626 = scmp.eq.s32.totalorder %s75, 0
      %p627 = por %p625, %p626
      %p628 = scmp.ne.s32.totalorder %s617, %s620
      %p629 = scmp.eq.s32.totalorder %s80, 3
      %p630 = por %p628, %p629
      %p631 = scmp.ne.s32.totalorder %s620, %s621
      %p632 = scmp.eq.s32.totalorder %s80, 0
      %p633 = por %p631, %p632
      %p634 = scmp.ne.s32.totalorder %s620, %s621
      %p635 = scmp.eq.s32.totalorder %s81, 3
      %p636 = por %p634, %p635
      %p638 = scmp.ne.s32.totalorder %s621, %s637
      %p639 = scmp.eq.s32.totalorder %s81, 0
      %p640 = por %p638, %p639
      %s641 = ssub.s32 %s83, %s90
      %p642 = scmp.eq.s32.totalorder %s641, 0
      %s644 = sadd.s32 %s643, 1
      %s645 = scalar_select %p642, %s643, %s644
      %p648 = pneg %p642
      %p649 = scmp.eq.s32.totalorder %s75, 3
      %p650 = por %p648, %p649
      %p651 = scmp.ne.s32.totalorder %s643, %s646
      %p652 = scmp.eq.s32.totalorder %s75, 0
      %p653 = por %p651, %p652
      %p654 = scmp.ne.s32.totalorder %s643, %s646
      %p655 = scmp.eq.s32.totalorder %s80, 3
      %p656 = por %p654, %p655
      %p657 = scmp.ne.s32.totalorder %s646, %s647
      %p658 = scmp.eq.s32.totalorder %s80, 0
      %p659 = por %p657, %p658
      %p660 = scmp.ne.s32.totalorder %s646, %s647
      %p661 = scmp.eq.s32.totalorder %s81, 3
      %p662 = por %p660, %p661
      %p664 = scmp.ne.s32.totalorder %s647, %s663
      %p665 = scmp.eq.s32.totalorder %s81, 0
      %p666 = por %p664, %p665
      %s667 = ssub.s32 %s83, %s90
      %p668 = scmp.eq.s32.totalorder %s667, 0
      %s670 = sadd.s32 %s669, 1
      %s671 = scalar_select %p668, %s669, %s670
      %p674 = pneg %p668
      %p675 = scmp.eq.s32.totalorder %s75, 3
      %p676 = por %p674, %p675
      %p677 = scmp.ne.s32.totalorder %s669, %s672
      %p678 = scmp.eq.s32.totalorder %s75, 0
      %p679 = por %p677, %p678
      %p680 = scmp.ne.s32.totalorder %s669, %s672
      %p681 = scmp.eq.s32.totalorder %s80, 3
      %p682 = por %p680, %p681
      %p683 = scmp.ne.s32.totalorder %s672, %s673
      %p684 = scmp.eq.s32.totalorder %s80, 0
      %p685 = por %p683, %p684
      %p686 = scmp.ne.s32.totalorder %s672, %s673
      %p687 = scmp.eq.s32.totalorder %s81, 3
      %p688 = por %p686, %p687
      %p690 = scmp.ne.s32.totalorder %s673, %s689
      %p691 = scmp.eq.s32.totalorder %s81, 0
      %p692 = por %p690, %p691
      %s693 = ssub.s32 %s83, %s90
      %p694 = scmp.eq.s32.totalorder %s693, 0
      %s696 = sadd.s32 %s695, 1
      %s697 = scalar_select %p694, %s695, %s696
      %p700 = pneg %p694
      %p701 = scmp.eq.s32.totalorder %s75, 3
      %p702 = por %p700, %p701
      %p703 = scmp.ne.s32.totalorder %s695, %s698
      %p704 = scmp.eq.s32.totalorder %s75, 0
      %p705 = por %p703, %p704
      %p706 = scmp.ne.s32.totalorder %s695, %s698
      %p707 = scmp.eq.s32.totalorder %s80, 3
      %p708 = por %p706, %p707
      %p709 = scmp.ne.s32.totalorder %s698, %s699
      %p710 = scmp.eq.s32.totalorder %s80, 0
      %p711 = por %p709, %p710
      %p712 = scmp.ne.s32.totalorder %s698, %s699
      %p713 = scmp.eq.s32.totalorder %s81, 3
      %p714 = por %p712, %p713
      %p716 = scmp.ne.s32.totalorder %s699, %s715
      %p717 = scmp.eq.s32.totalorder %s81, 0
      %p718 = por %p716, %p717
      %s719 = ssub.s32 %s83, %s90
      %p720 = scmp.eq.s32.totalorder %s719, 0
      %s722 = sadd.s32 %s721, 1
      %s723 = scalar_select %p720, %s721, %s722
      %p726 = pneg %p720
      %p727 = scmp.eq.s32.totalorder %s75, 3
      %p728 = por %p726, %p727
      %p729 = scmp.ne.s32.totalorder %s721, %s724
      %p730 = scmp.eq.s32.totalorder %s75, 0
      %p731 = por %p729, %p730
      %p732 = scmp.ne.s32.totalorder %s721, %s724
      %p733 = scmp.eq.s32.totalorder %s80, 3
      %p734 = por %p732, %p733
      %p735 = scmp.ne.s32.totalorder %s724, %s725
      %p736 = scmp.eq.s32.totalorder %s80, 0
      %p737 = por %p735, %p736
      %p738 = scmp.ne.s32.totalorder %s724, %s725
      %p739 = scmp.eq.s32.totalorder %s81, 3
      %p740 = por %p738, %p739
      %p742 = scmp.ne.s32.totalorder %s725, %s741
      %p743 = scmp.eq.s32.totalorder %s81, 0
      %p744 = por %p742, %p743
      %s745 = ssub.s32 %s83, %s90
      %p746 = scmp.eq.s32.totalorder %s745, 0
      %s748 = sadd.s32 %s747, 1
      %s749 = scalar_select %p746, %s747, %s748
      %p752 = pneg %p746
      %p753 = scmp.eq.s32.totalorder %s75, 3
      %p754 = por %p752, %p753
      %p755 = scmp.ne.s32.totalorder %s747, %s750
      %p756 = scmp.eq.s32.totalorder %s75, 0
      %p757 = por %p755, %p756
      %p758 = scmp.ne.s32.totalorder %s747, %s750
      %p759 = scmp.eq.s32.totalorder %s80, 3
      %p760 = por %p758, %p759
      %p761 = scmp.ne.s32.totalorder %s750, %s751
      %p762 = scmp.eq.s32.totalorder %s80, 0
      %p763 = por %p761, %p762
      %p764 = scmp.ne.s32.totalorder %s750, %s751
      %p765 = scmp.eq.s32.totalorder %s81, 3
      %p766 = por %p764, %p765
      %p768 = scmp.ne.s32.totalorder %s751, %s767
      %p769 = scmp.eq.s32.totalorder %s81, 0
      %p770 = por %p768, %p769
      %s771 = ssub.s32 %s83, %s90
      %p772 = scmp.eq.s32.totalorder %s771, 0
      %s774 = sadd.s32 %s773, 1
      %s775 = scalar_select %p772, %s773, %s774
      %p778 = pneg %p772
      %p779 = scmp.eq.s32.totalorder %s75, 3
      %p780 = por %p778, %p779
      %p781 = scmp.ne.s32.totalorder %s773, %s776
      %p782 = scmp.eq.s32.totalorder %s75, 0
      %p783 = por %p781, %p782
      %p784 = scmp.ne.s32.totalorder %s773, %s776
      %p785 = scmp.eq.s32.totalorder %s80, 3
      %p786 = por %p784, %p785
      %p787 = scmp.ne.s32.totalorder %s776, %s777
      %p788 = scmp.eq.s32.totalorder %s80, 0
      %p789 = por %p787, %p788
      %p790 = scmp.ne.s32.totalorder %s776, %s777
      %p791 = scmp.eq.s32.totalorder %s81, 3
      %p792 = por %p790, %p791
      %p794 = scmp.ne.s32.totalorder %s777, %s793
      %p795 = scmp.eq.s32.totalorder %s81, 0
      %p796 = por %p794, %p795
      %s797 = ssub.s32 %s83, %s90
      %p798 = scmp.eq.s32.totalorder %s797, 0
      %s800 = sadd.s32 %s799, 1
      %s801 = scalar_select %p798, %s799, %s800
      %p804 = pneg %p798
      %p805 = scmp.eq.s32.totalorder %s75, 3
      %p806 = por %p804, %p805
      %p807 = scmp.ne.s32.totalorder %s799, %s802
      %p808 = scmp.eq.s32.totalorder %s75, 0
      %p809 = por %p807, %p808
      %p810 = scmp.ne.s32.totalorder %s799, %s802
      %p811 = scmp.eq.s32.totalorder %s80, 3
      %p812 = por %p810, %p811
      %p813 = scmp.ne.s32.totalorder %s802, %s803
      %p814 = scmp.eq.s32.totalorder %s80, 0
      %p815 = por %p813, %p814
      %p816 = scmp.ne.s32.totalorder %s802, %s803
      %p817 = scmp.eq.s32.totalorder %s81, 3
      %p818 = por %p816, %p817
      %p820 = scmp.ne.s32.totalorder %s803, %s819
      %p821 = scmp.eq.s32.totalorder %s81, 0
      %p822 = por %p820, %p821
      %s823 = ssub.s32 %s83, %s90
      %p824 = scmp.eq.s32.totalorder %s823, 0
      %s826 = sadd.s32 %s825, 1
      %s827 = scalar_select %p824, %s825, %s826
      %p830 = pneg %p824
      %p831 = scmp.eq.s32.totalorder %s75, 3
      %p832 = por %p830, %p831
      %p833 = scmp.ne.s32.totalorder %s825, %s828
      %p834 = scmp.eq.s32.totalorder %s75, 0
      %p835 = por %p833, %p834
      %p836 = scmp.ne.s32.totalorder %s825, %s828
      %p837 = scmp.eq.s32.totalorder %s80, 3
      %p838 = por %p836, %p837
      %p839 = scmp.ne.s32.totalorder %s828, %s829
      %p840 = scmp.eq.s32.totalorder %s80, 0
      %p841 = por %p839, %p840
      %p842 = scmp.ne.s32.totalorder %s828, %s829
      %p843 = scmp.eq.s32.totalorder %s81, 3
      %p844 = por %p842, %p843
      %p846 = scmp.ne.s32.totalorder %s829, %s845
      %p847 = scmp.eq.s32.totalorder %s81, 0
      %p848 = por %p846, %p847
      %s849 = ssub.s32 %s83, %s90
      %p850 = scmp.eq.s32.totalorder %s849, 0
      %s852 = sadd.s32 %s851, 1
      %s853 = scalar_select %p850, %s851, %s852
      %p856 = pneg %p850
      %p857 = scmp.eq.s32.totalorder %s75, 3
      %p858 = por %p856, %p857
      %p859 = scmp.ne.s32.totalorder %s851, %s854
      %p860 = scmp.eq.s32.totalorder %s75, 0
      %p861 = por %p859, %p860
      %p862 = scmp.ne.s32.totalorder %s851, %s854
      %p863 = scmp.eq.s32.totalorder %s80, 3
      %p864 = por %p862, %p863
      %p865 = scmp.ne.s32.totalorder %s854, %s855
      %p866 = scmp.eq.s32.totalorder %s80, 0
      %p867 = por %p865, %p866
      %p868 = scmp.ne.s32.totalorder %s854, %s855
      %p869 = scmp.eq.s32.totalorder %s81, 3
      %p870 = por %p868, %p869
      %p872 = scmp.ne.s32.totalorder %s855, %s871
      %p873 = scmp.eq.s32.totalorder %s81, 0
      %p874 = por %p872, %p873
      %s875 = ssub.s32 %s82, %s94
      %p876 = scmp.eq.s32.totalorder %s875, 0
      %s878 = sadd.s32 %s877, 1
      %s879 = scalar_select %p876, %s877, %s878
      %p882 = pneg %p876
      %p883 = scmp.eq.s32.totalorder %s75, 3
      %p884 = por %p882, %p883
      %p885 = scmp.ne.s32.totalorder %s877, %s880
      %p886 = scmp.eq.s32.totalorder %s75, 0
      %p887 = por %p885, %p886
      %p888 = scmp.ne.s32.totalorder %s877, %s880
      %p889 = scmp.eq.s32.totalorder %s80, 3
      %p890 = por %p888, %p889
      %p891 = scmp.ne.s32.totalorder %s880, %s881
      %p892 = scmp.eq.s32.totalorder %s80, 0
      %p893 = por %p891, %p892
      %p894 = scmp.ne.s32.totalorder %s880, %s881
      %p895 = scmp.eq.s32.totalorder %s81, 3
      %p896 = por %p894, %p895
      %p898 = scmp.ne.s32.totalorder %s881, %s897
      %p899 = scmp.eq.s32.totalorder %s81, 0
      %p900 = por %p898, %p899
      %s901 = ssub.s32 %s83, %s90
      %s902 = ssub.s32 %s82, %s94
      %s903 = sor.u32 %s901, %s902
      %p904 = scmp.eq.s32.totalorder %s903, 0
      %s906 = sadd.s32 %s905, 1
      %s907 = scalar_select %p904, %s905, %s906
      %p910 = pneg %p904
      %p911 = scmp.eq.s32.totalorder %s75, 3
      %p912 = por %p910, %p911
      %p913 = scmp.ne.s32.totalorder %s905, %s908
      %p914 = scmp.eq.s32.totalorder %s75, 0
      %p915 = por %p913, %p914
      %p916 = scmp.ne.s32.totalorder %s905, %s908
      %p917 = scmp.eq.s32.totalorder %s80, 3
      %p918 = por %p916, %p917
      %p919 = scmp.ne.s32.totalorder %s908, %s909
      %p920 = scmp.eq.s32.totalorder %s80, 0
      %p921 = por %p919, %p920
      %p922 = scmp.ne.s32.totalorder %s908, %s909
      %p923 = scmp.eq.s32.totalorder %s81, 3
      %p924 = por %p922, %p923
      %p926 = scmp.ne.s32.totalorder %s909, %s925
      %p927 = scmp.eq.s32.totalorder %s81, 0
      %p928 = por %p926, %p927
      %s929 = ssub.s32 %s83, %s90
      %s930 = ssub.s32 %s82, %s94
      %s931 = sor.u32 %s929, %s930
      %p932 = scmp.eq.s32.totalorder %s931, 0
      %s934 = sadd.s32 %s933, 1
      %s935 = scalar_select %p932, %s933, %s934
      %p938 = pneg %p932
      %p939 = scmp.eq.s32.totalorder %s75, 3
      %p940 = por %p938, %p939
      %p941 = scmp.ne.s32.totalorder %s933, %s936
      %p942 = scmp.eq.s32.totalorder %s75, 0
      %p943 = por %p941, %p942
      %p944 = scmp.ne.s32.totalorder %s933, %s936
      %p945 = scmp.eq.s32.totalorder %s80, 3
      %p946 = por %p944, %p945
      %p947 = scmp.ne.s32.totalorder %s936, %s937
      %p948 = scmp.eq.s32.totalorder %s80, 0
      %p949 = por %p947, %p948
      %p950 = scmp.ne.s32.totalorder %s936, %s937
      %p951 = scmp.eq.s32.totalorder %s81, 3
      %p952 = por %p950, %p951
      %p954 = scmp.ne.s32.totalorder %s937, %s953
      %p955 = scmp.eq.s32.totalorder %s81, 0
      %p956 = por %p954, %p955
      %p957 = scmp.le.s32.totalorder 1, %s75
      %p958 = scmp.lt.s32.totalorder %s75, 5
      %p959 = pnand %p957, %p958
      %p960 = pneg %p959
      // Predicated region
      $region9: #{decoder_forward.1} parent=5 // pred_check
        _
      $region10: #{decoder_forward.1} parent=5 // pred_check_branch
        %962 = sbr.rel (%p959) target = $region12
      $region11: #{decoder_forward.1} parent=5 // pred_region
        %s963 = ssub.s32 %s75, 1
      $region12: #{decoder_forward.1} parent=5 // pred_fallthru
        _
      %p964 = scmp.lt.s32.totalorder %s75, 4
      // Predicated region
      $region13: #{decoder_forward.1} parent=5 // pred_check
        %p965 = pneg %p964
      $region14: #{decoder_forward.1} parent=5 // pred_check_branch
        %967 = sbr.rel (%p965) target = $region16
      $region15: #{decoder_forward.1} parent=5 // pred_region
        // Predicated region
        $region17: #{decoder_forward.1} parent=15 // pred_check
          %p968 = pneg %p107
        $region18: #{decoder_forward.1} parent=15 // pred_check_branch
          %970 = sbr.rel (%p968) target = $region20
        $region19: #{decoder_forward.1} parent=15 // pred_region
          %p971 = scmp.lt.s32.totalorder %s82, 1
          %s972 = scalar_select %p971, %s82, 1
          %s973 = smul.addr %s972, 8
          %s974 = scalar_lea.vmem %s1, %s973
        $region20: #{decoder_forward.1} parent=15 // pred_fallthru
          _
        // Predicated region
        $region21: #{decoder_forward.1} parent=15 // pred_check
          %p975 = pneg %p133
        $region22: #{decoder_forward.1} parent=15 // pred_check_branch
          %977 = sbr.rel (%p975) target = $region24
        $region23: #{decoder_forward.1} parent=15 // pred_region
          %p978 = scmp.lt.s32.totalorder %s82, 1
          %s979 = scalar_select %p978, %s82, 1
          %s980 = smul.addr %s979, 2
          %s981 = smul.addr %s980, 8
          %s982 = scalar_lea.vmem %s3, %s981
        $region24: #{decoder_forward.1} parent=15 // pred_fallthru
          _
        // Predicated region
        $region25: #{decoder_forward.1} parent=15 // pred_check
          %p983 = pneg %p159
        $region26: #{decoder_forward.1} parent=15 // pred_check_branch
          %985 = sbr.rel (%p983) target = $region28
        $region27: #{decoder_forward.1} parent=15 // pred_region
          %p986 = scmp.lt.s32.totalorder %s82, 1
          %s987 = scalar_select %p986, %s82, 1
          %s988 = scalar_lea.vmem %s5, %s987
        $region28: #{decoder_forward.1} parent=15 // pred_fallthru
          _
        // Predicated region
        $region29: #{decoder_forward.1} parent=15 // pred_check
          %p989 = pneg %p185
        $region30: #{decoder_forward.1} parent=15 // pred_check_branch
          %991 = sbr.rel (%p989) target = $region32
        $region31: #{decoder_forward.1} parent=15 // pred_region
          %p992 = scmp.lt.s32.totalorder %s82, 1
          %s993 = scalar_select %p992, %s82, 1
          %s994 = scalar_lea.vmem %s7, %s993
        $region32: #{decoder_forward.1} parent=15 // pred_fallthru
          _
        // Predicated region
        $region33: #{decoder_forward.1} parent=15 // pred_check
          %p995 = pneg %p211
        $region34: #{decoder_forward.1} parent=15 // pred_check_branch
          %997 = sbr.rel (%p995) target = $region36
        $region35: #{decoder_forward.1} parent=15 // pred_region
          %p998 = scmp.lt.s32.totalorder %s83, 1
          %s999 = scalar_select %p998, %s83, 1
          %s1000 = smul.addr %s999, 16
          %s1001 = smul.addr %s1000, 4
          %s1002 = scalar_lea.vmem %s9, %s1001
        $region36: #{decoder_forward.1} parent=15 // pred_fallthru
          _
        // Predicated region
        $region37: #{decoder_forward.1} parent=15 // pred_check
          %p1003 = pneg %p237
        $region38: #{decoder_forward.1} parent=15 // pred_check_branch
          %1005 = sbr.rel (%p1003) target = $region40
        $region39: #{decoder_forward.1} parent=15 // pred_region
          %p1006 = scmp.lt.s32.totalorder %s83, 1
          %s1007 = scalar_select %p1006, %s83, 1
          %s1008 = smul.addr %s1007, 4
          %s1009 = scalar_lea.vmem %s11, %s1008
        $region40: #{decoder_forward.1} parent=15 // pred_fallthru
          _
        // Predicated region
        $region41: #{decoder_forward.1} parent=15 // pred_check
          %p1010 = pneg %p263
        $region42: #{decoder_forward.1} parent=15 // pred_check_branch
          %1012 = sbr.rel (%p1010) target = $region44
        $region43: #{decoder_forward.1} parent=15 // pred_region
          %p1013 = scmp.lt.s32.totalorder %s83, 1
          %s1014 = scalar_select %p1013, %s83, 1
          %s1015 = smul.addr %s1014, 16
          %s1016 = smul.addr %s1015, 4
          %s1017 = scalar_lea.vmem %s13, %s1016
        $region44: #{decoder_forward.1} parent=15 // pred_fallthru
          _
        // Predicated region
        $region45: #{decoder_forward.1} parent=15 // pred_check
          %p1018 = pneg %p289
        $region46: #{decoder_forward.1} parent=15 // pred_check_branch
          %1020 = sbr.rel (%p1018) target = $region48
        $region47: #{decoder_forward.1} parent=15 // pred_region
          %p1021 = scmp.lt.s32.totalorder %s83, 1
          %s1022 = scalar_select %p1021, %s83, 1
          %s1023 = smul.addr %s1022, 4
          %s1024 = scalar_lea.vmem %s15, %s1023
        $region48: #{decoder_forward.1} parent=15 // pred_fallthru
          _
        // Predicated region
        $region49: #{decoder_forward.1} parent=15 // pred_check
          %p1025 = pneg %p315
        $region50: #{decoder_forward.1} parent=15 // pred_check_branch
          %1027 = sbr.rel (%p1025) target = $region52
        $region51: #{decoder_forward.1} parent=15 // pred_region
          %p1028 = scmp.lt.s32.totalorder %s83, 1
          %s1029 = scalar_select %p1028, %s83, 1
          %s1030 = smul.addr %s1029, 16
          %s1031 = smul.addr %s1030, 4
          %s1032 = scalar_lea.vmem %s17, %s1031
        $region52: #{decoder_forward.1} parent=15 // pred_fallthru
          _
        // Predicated region
        $region53: #{decoder_forward.1} parent=15 // pred_check
          %p1033 = pneg %p341
        $region54: #{decoder_forward.1} parent=15 // pred_check_branch
          %1035 = sbr.rel (%p1033) target = $region56
        $region55: #{decoder_forward.1} parent=15 // pred_region
          %p1036 = scmp.lt.s32.totalorder %s83, 1
          %s1037 = scalar_select %p1036, %s83, 1
          %s1038 = smul.addr %s1037, 4
          %s1039 = scalar_lea.vmem %s19, %s1038
        $region56: #{decoder_forward.1} parent=15 // pred_fallthru
          _
        // Predicated region
        $region57: #{decoder_forward.1} parent=15 // pred_check
          %p1040 = pneg %p367
        $region58: #{decoder_forward.1} parent=15 // pred_check_branch
          %1042 = sbr.rel (%p1040) target = $region60
        $region59: #{decoder_forward.1} parent=15 // pred_region
          %p1043 = scmp.lt.s32.totalorder %s83, 1
          %s1044 = scalar_select %p1043, %s83, 1
          %s1045 = smul.addr %s1044, 4
          %s1046 = smul.addr %s1045, 4
          %s1047 = scalar_lea.vmem %s21, %s1046
        $region60: #{decoder_forward.1} parent=15 // pred_fallthru
          _
        // Predicated region
        $region61: #{decoder_forward.1} parent=15 // pred_check
          %p1048 = pneg %p393
        $region62: #{decoder_forward.1} parent=15 // pred_check_branch
          %1050 = sbr.rel (%p1048) target = $region64
        $region63: #{decoder_forward.1} parent=15 // pred_region
          %p1051 = scmp.lt.s32.totalorder %s83, 1
          %s1052 = scalar_select %p1051, %s83, 1
          %s1053 = scalar_lea.vmem %s23, %s1052
        $region64: #{decoder_forward.1} parent=15 // pred_fallthru
          _
        // Predicated region
        $region65: #{decoder_forward.1} parent=15 // pred_check
          %p1054 = pneg %p419
        $region66: #{decoder_forward.1} parent=15 // pred_check_branch
          %1056 = sbr.rel (%p1054) target = $region68
        $region67: #{decoder_forward.1} parent=15 // pred_region
          %p1057 = scmp.lt.s32.totalorder %s83, 1
          %s1058 = scalar_select %p1057, %s83, 1
          %s1059 = scalar_lea.vmem %s25, %s1058
        $region68: #{decoder_forward.1} parent=15 // pred_fallthru
          _
        // Predicated region
        $region69: #{decoder_forward.1} parent=15 // pred_check
          %p1060 = pneg %p445
        $region70: #{decoder_forward.1} parent=15 // pred_check_branch
          %1062 = sbr.rel (%p1060) target = $region72
        $region71: #{decoder_forward.1} parent=15 // pred_region
          %p1063 = scmp.lt.s32.totalorder %s83, 1
          %s1064 = scalar_select %p1063, %s83, 1
          %s1065 = scalar_lea.vmem %s27, %s1064
        $region72: #{decoder_forward.1} parent=15 // pred_fallthru
          _
        // Predicated region
        $region73: #{decoder_forward.1} parent=15 // pred_check
          %p1066 = pneg %p471
        $region74: #{decoder_forward.1} parent=15 // pred_check_branch
          %1068 = sbr.rel (%p1066) target = $region76
        $region75: #{decoder_forward.1} parent=15 // pred_region
          %p1069 = scmp.lt.s32.totalorder %s83, 1
          %s1070 = scalar_select %p1069, %s83, 1
          %s1071 = smul.addr %s1070, 16
          %s1072 = smul.addr %s1071, 4
          %s1073 = scalar_lea.vmem %s29, %s1072
        $region76: #{decoder_forward.1} parent=15 // pred_fallthru
          _
        // Predicated region
        $region77: #{decoder_forward.1} parent=15 // pred_check
          %p1074 = pneg %p497
        $region78: #{decoder_forward.1} parent=15 // pred_check_branch
          %1076 = sbr.rel (%p1074) target = $region80
        $region79: #{decoder_forward.1} parent=15 // pred_region
          %p1077 = scmp.lt.s32.totalorder %s83, 1
          %s1078 = scalar_select %p1077, %s83, 1
          %s1079 = smul.addr %s1078, 4
          %s1080 = scalar_lea.vmem %s31, %s1079
        $region80: #{decoder_forward.1} parent=15 // pred_fallthru
          _
        // Predicated region
        $region81: #{decoder_forward.1} parent=15 // pred_check
          %p1081 = pneg %p523
        $region82: #{decoder_forward.1} parent=15 // pred_check_branch
          %1083 = sbr.rel (%p1081) target = $region84
        $region83: #{decoder_forward.1} parent=15 // pred_region
          %p1084 = scmp.lt.s32.totalorder %s83, 1
          %s1085 = scalar_select %p1084, %s83, 1
          %s1086 = smul.addr %s1085, 16
          %s1087 = smul.addr %s1086, 4
          %s1088 = scalar_lea.vmem %s33, %s1087
        $region84: #{decoder_forward.1} parent=15 // pred_fallthru
          _
        // Predicated region
        $region85: #{decoder_forward.1} parent=15 // pred_check
          %p1089 = pneg %p549
        $region86: #{decoder_forward.1} parent=15 // pred_check_branch
          %1091 = sbr.rel (%p1089) target = $region88
        $region87: #{decoder_forward.1} parent=15 // pred_region
          %p1092 = scmp.lt.s32.totalorder %s83, 1
          %s1093 = scalar_select %p1092, %s83, 1
          %s1094 = smul.addr %s1093, 4
          %s1095 = scalar_lea.vmem %s35, %s1094
        $region88: #{decoder_forward.1} parent=15 // pred_fallthru
          _
        // Predicated region
        $region89: #{decoder_forward.1} parent=15 // pred_check
          %p1096 = pneg %p575
        $region90: #{decoder_forward.1} parent=15 // pred_check_branch
          %1098 = sbr.rel (%p1096) target = $region92
        $region91: #{decoder_forward.1} parent=15 // pred_region
          %p1099 = scmp.lt.s32.totalorder %s83, 1
          %s1100 = scalar_select %p1099, %s83, 1
          %s1101 = smul.addr %s1100, 16
          %s1102 = smul.addr %s1101, 4
          %s1103 = scalar_lea.vmem %s37, %s1102
        $region92: #{decoder_forward.1} parent=15 // pred_fallthru
          _
        // Predicated region
        $region93: #{decoder_forward.1} parent=15 // pred_check
          %p1104 = pneg %p601
        $region94: #{decoder_forward.1} parent=15 // pred_check_branch
          %1106 = sbr.rel (%p1104) target = $region96
        $region95: #{decoder_forward.1} parent=15 // pred_region
          %p1107 = scmp.lt.s32.totalorder %s83, 1
          %s1108 = scalar_select %p1107, %s83, 1
          %s1109 = smul.addr %s1108, 4
          %s1110 = scalar_lea.vmem %s39, %s1109
        $region96: #{decoder_forward.1} parent=15 // pred_fallthru
          _
        // Predicated region
        $region97: #{decoder_forward.1} parent=15 // pred_check
          %p1111 = pneg %p627
        $region98: #{decoder_forward.1} parent=15 // pred_check_branch
          %1113 = sbr.rel (%p1111) target = $region100
        $region99: #{decoder_forward.1} parent=15 // pred_region
          %p1114 = scmp.lt.s32.totalorder %s83, 1
          %s1115 = scalar_select %p1114, %s83, 1
          %s1116 = smul.addr %s1115, 4
          %s1117 = smul.addr %s1116, 4
          %s1118 = scalar_lea.vmem %s41, %s1117
        $region100: #{decoder_forward.1} parent=15 // pred_fallthru
          _
        // Predicated region
        $region101: #{decoder_forward.1} parent=15 // pred_check
          %p1119 = pneg %p653
        $region102: #{decoder_forward.1} parent=15 // pred_check_branch
          %1121 = sbr.rel (%p1119) target = $region104
        $region103: #{decoder_forward.1} parent=15 // pred_region
          %p1122 = scmp.lt.s32.totalorder %s83, 1
          %s1123 = scalar_select %p1122, %s83, 1
          %s1124 = scalar_lea.vmem %s43, %s1123
        $region104: #{decoder_forward.1} parent=15 // pred_fallthru
          _
        // Predicated region
        $region105: #{decoder_forward.1} parent=15 // pred_check
          %p1125 = pneg %p679
        $region106: #{decoder_forward.1} parent=15 // pred_check_branch
          %1127 = sbr.rel (%p1125) target = $region108
        $region107: #{decoder_forward.1} parent=15 // pred_region
          %p1128 = scmp.lt.s32.totalorder %s83, 1
          %s1129 = scalar_select %p1128, %s83, 1
          %s1130 = scalar_lea.vmem %s45, %s1129
        $region108: #{decoder_forward.1} parent=15 // pred_fallthru
          _
        // Predicated region
        $region109: #{decoder_forward.1} parent=15 // pred_check
          %p1131 = pneg %p705
        $region110: #{decoder_forward.1} parent=15 // pred_check_branch
          %1133 = sbr.rel (%p1131) target = $region112
        $region111: #{decoder_forward.1} parent=15 // pred_region
          %p1134 = scmp.lt.s32.totalorder %s83, 1
          %s1135 = scalar_select %p1134, %s83, 1
          %s1136 = scalar_lea.vmem %s47, %s1135
        $region112: #{decoder_forward.1} parent=15 // pred_fallthru
          _
        // Predicated region
        $region113: #{decoder_forward.1} parent=15 // pred_check
          %p1137 = pneg %p731
        $region114: #{decoder_forward.1} parent=15 // pred_check_branch
          %1139 = sbr.rel (%p1137) target = $region116
        $region115: #{decoder_forward.1} parent=15 // pred_region
          %p1140 = scmp.lt.s32.totalorder %s83, 1
          %s1141 = scalar_select %p1140, %s83, 1
          %s1142 = smul.addr %s1141, 4
          %s1143 = smul.addr %s1142, 4
          %s1144 = scalar_lea.vmem %s49, %s1143
        $region116: #{decoder_forward.1} parent=15 // pred_fallthru
          _
        // Predicated region
        $region117: #{decoder_forward.1} parent=15 // pred_check
          %p1145 = pneg %p757
        $region118: #{decoder_forward.1} parent=15 // pred_check_branch
          %1147 = sbr.rel (%p1145) target = $region120
        $region119: #{decoder_forward.1} parent=15 // pred_region
          %p1148 = scmp.lt.s32.totalorder %s83, 1
          %s1149 = scalar_select %p1148, %s83, 1
          %s1150 = scalar_lea.vmem %s51, %s1149
        $region120: #{decoder_forward.1} parent=15 // pred_fallthru
          _
        // Predicated region
        $region121: #{decoder_forward.1} parent=15 // pred_check
          %p1151 = pneg %p783
        $region122: #{decoder_forward.1} parent=15 // pred_check_branch
          %1153 = sbr.rel (%p1151) target = $region124
        $region123: #{decoder_forward.1} parent=15 // pred_region
          %p1154 = scmp.lt.s32.totalorder %s83, 1
          %s1155 = scalar_select %p1154, %s83, 1
          %s1156 = smul.addr %s1155, 8
          %s1157 = smul.addr %s1156, 4
          %s1158 = scalar_lea.vmem %s53, %s1157
        $region124: #{decoder_forward.1} parent=15 // pred_fallthru
          _
        // Predicated region
        $region125: #{decoder_forward.1} parent=15 // pred_check
          %p1159 = pneg %p809
        $region126: #{decoder_forward.1} parent=15 // pred_check_branch
          %1161 = sbr.rel (%p1159) target = $region128
        $region127: #{decoder_forward.1} parent=15 // pred_region
          %p1162 = scmp.lt.s32.totalorder %s83, 1
          %s1163 = scalar_select %p1162, %s83, 1
          %s1164 = scalar_lea.vmem %s55, %s1163
        $region128: #{decoder_forward.1} parent=15 // pred_fallthru
          _
        // Predicated region
        $region129: #{decoder_forward.1} parent=15 // pred_check
          %p1165 = pneg %p835
        $region130: #{decoder_forward.1} parent=15 // pred_check_branch
          %1167 = sbr.rel (%p1165) target = $region132
        $region131: #{decoder_forward.1} parent=15 // pred_region
          %p1168 = scmp.lt.s32.totalorder %s83, 1
          %s1169 = scalar_select %p1168, %s83, 1
          %s1170 = scalar_lea.vmem %s57, %s1169
        $region132: #{decoder_forward.1} parent=15 // pred_fallthru
          _
        // Predicated region
        $region133: #{decoder_forward.1} parent=15 // pred_check
          %p1171 = pneg %p861
        $region134: #{decoder_forward.1} parent=15 // pred_check_branch
          %1173 = sbr.rel (%p1171) target = $region136
        $region135: #{decoder_forward.1} parent=15 // pred_region
          %p1174 = scmp.lt.s32.totalorder %s83, 1
          %s1175 = scalar_select %p1174, %s83, 1
          %s1176 = scalar_lea.vmem %s59, %s1175
        $region136: #{decoder_forward.1} parent=15 // pred_fallthru
          _
      $region16: #{decoder_forward.1} parent=5 // pred_fallthru
        _
      %p1177 = scmp.le.s32.totalorder 1, %s75
      %p1178 = scmp.lt.s32.totalorder %s75, 5
      %p1179 = pnand %p1177, %p1178
      %p1180 = pneg %p1179
      // Predicated region
      $region137: #{decoder_forward.1} parent=5 // pred_check
        _
      $region138: #{decoder_forward.1} parent=5 // pred_check_branch
        %1182 = sbr.rel (%p1179) target = $region140
      $region139: #{decoder_forward.1} parent=5 // pred_region
        %s1183 = ssub.s32 %s75, 1
        %p1184 = scmp.lt.s32.totalorder %s84, 1
        %s1185 = scalar_select %p1184, %s84, 1
        %s1186 = smul.addr %s1185, 8
        %s1187 = scalar_lea.vmem %s1, %s1186
        %p1188 = pneg %p113
        %p1189 = pneg %p110
        %p1190 = scmp.lt.s32.totalorder %s84, 1
        %s1191 = scalar_select %p1190, %s84, 1
        %s1192 = smul.addr %s1191, 2
        %s1193 = smul.addr %s1192, 8
        %s1194 = scalar_lea.vmem %s3, %s1193
        %p1195 = pneg %p139
        %p1196 = pneg %p136
        %p1197 = scmp.lt.s32.totalorder %s84, 1
        %s1198 = scalar_select %p1197, %s84, 1
        %s1199 = scalar_lea.vmem %s5, %s1198
        %p1200 = pneg %p165
        %p1201 = pneg %p162
        %p1202 = scmp.lt.s32.totalorder %s84, 1
        %s1203 = scalar_select %p1202, %s84, 1
        %s1204 = scalar_lea.vmem %s7, %s1203
        %p1205 = pneg %p191
        %p1206 = pneg %p188
        %p1207 = scmp.lt.s32.totalorder %s85, 1
        %s1208 = scalar_select %p1207, %s85, 1
        %s1209 = smul.addr %s1208, 16
        %s1210 = smul.addr %s1209, 4
        %s1211 = scalar_lea.vmem %s9, %s1210
        %p1212 = pneg %p217
        %p1213 = pneg %p214
        %p1214 = scmp.lt.s32.totalorder %s85, 1
        %s1215 = scalar_select %p1214, %s85, 1
        %s1216 = smul.addr %s1215, 4
        %s1217 = scalar_lea.vmem %s11, %s1216
        %p1218 = pneg %p243
        %p1219 = pneg %p240
        %p1220 = scmp.lt.s32.totalorder %s85, 1
        %s1221 = scalar_select %p1220, %s85, 1
        %s1222 = smul.addr %s1221, 16
        %s1223 = smul.addr %s1222, 4
        %s1224 = scalar_lea.vmem %s13, %s1223
        %p1225 = pneg %p269
        %p1226 = pneg %p266
        %p1227 = scmp.lt.s32.totalorder %s85, 1
        %s1228 = scalar_select %p1227, %s85, 1
        %s1229 = smul.addr %s1228, 4
        %s1230 = scalar_lea.vmem %s15, %s1229
        %p1231 = pneg %p295
        %p1232 = pneg %p292
        %p1233 = scmp.lt.s32.totalorder %s85, 1
        %s1234 = scalar_select %p1233, %s85, 1
        %s1235 = smul.addr %s1234, 16
        %s1236 = smul.addr %s1235, 4
        %s1237 = scalar_lea.vmem %s17, %s1236
        %p1238 = pneg %p321
        %p1239 = pneg %p318
        %p1240 = scmp.lt.s32.totalorder %s85, 1
        %s1241 = scalar_select %p1240, %s85, 1
        %s1242 = smul.addr %s1241, 4
        %s1243 = scalar_lea.vmem %s19, %s1242
        %p1244 = pneg %p347
        %p1245 = pneg %p344
        %p1246 = scmp.lt.s32.totalorder %s85, 1
        %s1247 = scalar_select %p1246, %s85, 1
        %s1248 = smul.addr %s1247, 4
        %s1249 = smul.addr %s1248, 4
        %s1250 = scalar_lea.vmem %s21, %s1249
        %p1251 = pneg %p373
        %p1252 = pneg %p370
        %p1253 = scmp.lt.s32.totalorder %s85, 1
        %s1254 = scalar_select %p1253, %s85, 1
        %s1255 = scalar_lea.vmem %s23, %s1254
        %p1256 = pneg %p399
        %p1257 = pneg %p396
        %p1258 = scmp.lt.s32.totalorder %s85, 1
        %s1259 = scalar_select %p1258, %s85, 1
        %s1260 = scalar_lea.vmem %s25, %s1259
        %p1261 = pneg %p425
        %p1262 = pneg %p422
        %p1263 = scmp.lt.s32.totalorder %s85, 1
        %s1264 = scalar_select %p1263, %s85, 1
        %s1265 = scalar_lea.vmem %s27, %s1264
        %p1266 = pneg %p451
        %p1267 = pneg %p448
        %p1268 = scmp.lt.s32.totalorder %s85, 1
        %s1269 = scalar_select %p1268, %s85, 1
        %s1270 = smul.addr %s1269, 16
        %s1271 = smul.addr %s1270, 4
        %s1272 = scalar_lea.vmem %s29, %s1271
        %p1273 = pneg %p477
        %p1274 = pneg %p474
        %p1275 = scmp.lt.s32.totalorder %s85, 1
        %s1276 = scalar_select %p1275, %s85, 1
        %s1277 = smul.addr %s1276, 4
        %s1278 = scalar_lea.vmem %s31, %s1277
        %p1279 = pneg %p503
        %p1280 = pneg %p500
        %p1281 = scmp.lt.s32.totalorder %s85, 1
        %s1282 = scalar_select %p1281, %s85, 1
        %s1283 = smul.addr %s1282, 16
        %s1284 = smul.addr %s1283, 4
        %s1285 = scalar_lea.vmem %s33, %s1284
        %p1286 = pneg %p529
        %p1287 = pneg %p526
        %p1288 = scmp.lt.s32.totalorder %s85, 1
        %s1289 = scalar_select %p1288, %s85, 1
        %s1290 = smul.addr %s1289, 4
        %s1291 = scalar_lea.vmem %s35, %s1290
        %p1292 = pneg %p555
        %p1293 = pneg %p552
        %p1294 = scmp.lt.s32.totalorder %s85, 1
        %s1295 = scalar_select %p1294, %s85, 1
        %s1296 = smul.addr %s1295, 16
        %s1297 = smul.addr %s1296, 4
        %s1298 = scalar_lea.vmem %s37, %s1297
        %p1299 = pneg %p581
        %p1300 = pneg %p578
        %p1301 = scmp.lt.s32.totalorder %s85, 1
        %s1302 = scalar_select %p1301, %s85, 1
        %s1303 = smul.addr %s1302, 4
        %s1304 = scalar_lea.vmem %s39, %s1303
        %p1305 = pneg %p607
        %p1306 = pneg %p604
        %p1307 = scmp.lt.s32.totalorder %s85, 1
        %s1308 = scalar_select %p1307, %s85, 1
        %s1309 = smul.addr %s1308, 4
        %s1310 = smul.addr %s1309, 4
        %s1311 = scalar_lea.vmem %s41, %s1310
        %p1312 = pneg %p633
        %p1313 = pneg %p630
        %p1314 = scmp.lt.s32.totalorder %s85, 1
        %s1315 = scalar_select %p1314, %s85, 1
        %s1316 = scalar_lea.vmem %s43, %s1315
        %p1317 = pneg %p659
        %p1318 = pneg %p656
        %p1319 = scmp.lt.s32.totalorder %s85, 1
        %s1320 = scalar_select %p1319, %s85, 1
        %s1321 = scalar_lea.vmem %s45, %s1320
        %p1322 = pneg %p685
        %p1323 = pneg %p682
        %p1324 = scmp.lt.s32.totalorder %s85, 1
        %s1325 = scalar_select %p1324, %s85, 1
        %s1326 = scalar_lea.vmem %s47, %s1325
        %p1327 = pneg %p711
        %p1328 = pneg %p708
        %p1329 = scmp.lt.s32.totalorder %s85, 1
        %s1330 = scalar_select %p1329, %s85, 1
        %s1331 = smul.addr %s1330, 4
        %s1332 = smul.addr %s1331, 4
        %s1333 = scalar_lea.vmem %s49, %s1332
        %p1334 = pneg %p737
        %p1335 = pneg %p734
        %p1336 = scmp.lt.s32.totalorder %s85, 1
        %s1337 = scalar_select %p1336, %s85, 1
        %s1338 = scalar_lea.vmem %s51, %s1337
        %p1339 = pneg %p763
        %p1340 = pneg %p760
        %p1341 = scmp.lt.s32.totalorder %s85, 1
        %s1342 = scalar_select %p1341, %s85, 1
        %s1343 = smul.addr %s1342, 8
        %s1344 = smul.addr %s1343, 4
        %s1345 = scalar_lea.vmem %s53, %s1344
        %p1346 = pneg %p789
        %p1347 = pneg %p786
        %p1348 = scmp.lt.s32.totalorder %s85, 1
        %s1349 = scalar_select %p1348, %s85, 1
        %s1350 = scalar_lea.vmem %s55, %s1349
        %p1351 = pneg %p815
        %p1352 = pneg %p812
        %p1353 = scmp.lt.s32.totalorder %s85, 1
        %s1354 = scalar_select %p1353, %s85, 1
        %s1355 = scalar_lea.vmem %s57, %s1354
        %p1356 = pneg %p841
        %p1357 = pneg %p838
        %p1358 = scmp.lt.s32.totalorder %s85, 1
        %s1359 = scalar_select %p1358, %s85, 1
        %s1360 = scalar_lea.vmem %s59, %s1359
        %p1361 = pneg %p867
        %p1362 = pneg %p864
        %p1363 = pneg %p893
        %p1364 = pneg %p890
        %s1365 = sand.u32 %s880, 1
        %s1366 = scalar_lea.sflag [#allocation4], %s1365
        %s1367 = sand.u32 %s880, 1
        %s1368 = smul.addr %s1367, 8
        %s1369 = scalar_lea.vmem [#allocation3], %s1368
        %p1370 = pneg %p921
        %p1371 = pneg %p918
        %p1372 = scmp.lt.s32.totalorder %s85, 1
        %s1373 = scalar_select %p1372, %s85, 1
        %p1374 = scmp.lt.s32.totalorder %s84, 1
        %s1375 = scalar_select %p1374, %s84, 1
        %s1376 = smul.addr %s1375, 4
        %s1377 = smul.addr %s1373, 8
        %s1378 = sadd.s32 %s1376, %s1377
        %s1379 = smul.addr %s1378, 8
        %s1380 = scalar_lea.vmem %s63, %s1379
        %p1381 = pneg %p949
        %p1382 = pneg %p946
        %p1383 = scmp.lt.s32.totalorder %s85, 1
        %s1384 = scalar_select %p1383, %s85, 1
        %p1385 = scmp.lt.s32.totalorder %s84, 1
        %s1386 = scalar_select %p1385, %s84, 1
        %s1387 = smul.addr %s1386, 4
        %s1388 = smul.addr %s1384, 8
        %s1389 = sadd.s32 %s1387, %s1388
        %s1390 = smul.addr %s1389, 8
        %s1391 = scalar_lea.vmem %s65, %s1390
        %p1392 = scmp.lt.s32.totalorder %s84, 1
        %s1393 = scalar_select %p1392, %s84, 1
        %s1394 = smul.addr %s1393, 8
        %s1395 = scalar_lea.vmem %s1, %s1394
        %p1396 = scmp.lt.s32.totalorder %s84, 1
        %s1397 = scalar_select %p1396, %s84, 1
        %s1398 = smul.addr %s1397, 2
        %s1399 = smul.addr %s1398, 8
        %s1400 = scalar_lea.vmem %s3, %s1399
        %p1401 = scmp.lt.s32.totalorder %s84, 1
        %s1402 = scalar_select %p1401, %s84, 1
        %s1403 = scalar_lea.vmem %s5, %s1402
        %p1404 = scmp.lt.s32.totalorder %s84, 1
        %s1405 = scalar_select %p1404, %s84, 1
        %s1406 = scalar_lea.vmem %s7, %s1405
        %p1407 = scmp.lt.s32.totalorder %s85, 1
        %s1408 = scalar_select %p1407, %s85, 1
        %s1409 = smul.addr %s1408, 16
        %s1410 = smul.addr %s1409, 4
        %s1411 = scalar_lea.vmem %s9, %s1410
        %p1412 = scmp.lt.s32.totalorder %s85, 1
        %s1413 = scalar_select %p1412, %s85, 1
        %s1414 = smul.addr %s1413, 4
        %s1415 = scalar_lea.vmem %s11, %s1414
        %p1416 = scmp.lt.s32.totalorder %s85, 1
        %s1417 = scalar_select %p1416, %s85, 1
        %s1418 = smul.addr %s1417, 16
        %s1419 = smul.addr %s1418, 4
        %s1420 = scalar_lea.vmem %s13, %s1419
        %p1421 = scmp.lt.s32.totalorder %s85, 1
        %s1422 = scalar_select %p1421, %s85, 1
        %s1423 = smul.addr %s1422, 4
        %s1424 = scalar_lea.vmem %s15, %s1423
        %p1425 = scmp.lt.s32.totalorder %s85, 1
        %s1426 = scalar_select %p1425, %s85, 1
        %s1427 = smul.addr %s1426, 16
        %s1428 = smul.addr %s1427, 4
        %s1429 = scalar_lea.vmem %s17, %s1428
        %p1430 = scmp.lt.s32.totalorder %s85, 1
        %s1431 = scalar_select %p1430, %s85, 1
        %s1432 = smul.addr %s1431, 4
        %s1433 = scalar_lea.vmem %s19, %s1432
        %p1434 = scmp.lt.s32.totalorder %s85, 1
        %s1435 = scalar_select %p1434, %s85, 1
        %s1436 = smul.addr %s1435, 4
        %s1437 = smul.addr %s1436, 4
        %s1438 = scalar_lea.vmem %s21, %s1437
        %p1439 = scmp.lt.s32.totalorder %s85, 1
        %s1440 = scalar_select %p1439, %s85, 1
        %s1441 = scalar_lea.vmem %s23, %s1440
        %p1442 = scmp.lt.s32.totalorder %s85, 1
        %s1443 = scalar_select %p1442, %s85, 1
        %s1444 = scalar_lea.vmem %s25, %s1443
        %p1445 = scmp.lt.s32.totalorder %s85, 1
        %s1446 = scalar_select %p1445, %s85, 1
        %s1447 = scalar_lea.vmem %s27, %s1446
        %p1448 = scmp.lt.s32.totalorder %s85, 1
        %s1449 = scalar_select %p1448, %s85, 1
        %s1450 = smul.addr %s1449, 16
        %s1451 = smul.addr %s1450, 4
        %s1452 = scalar_lea.vmem %s29, %s1451
        %p1453 = scmp.lt.s32.totalorder %s85, 1
        %s1454 = scalar_select %p1453, %s85, 1
        %s1455 = smul.addr %s1454, 4
        %s1456 = scalar_lea.vmem %s31, %s1455
        %p1457 = scmp.lt.s32.totalorder %s85, 1
        %s1458 = scalar_select %p1457, %s85, 1
        %s1459 = smul.addr %s1458, 16
        %s1460 = smul.addr %s1459, 4
        %s1461 = scalar_lea.vmem %s33, %s1460
        %p1462 = scmp.lt.s32.totalorder %s85, 1
        %s1463 = scalar_select %p1462, %s85, 1
        %s1464 = smul.addr %s1463, 4
        %s1465 = scalar_lea.vmem %s35, %s1464
        %p1466 = scmp.lt.s32.totalorder %s85, 1
        %s1467 = scalar_select %p1466, %s85, 1
        %s1468 = smul.addr %s1467, 16
        %s1469 = smul.addr %s1468, 4
        %s1470 = scalar_lea.vmem %s37, %s1469
        %p1471 = scmp.lt.s32.totalorder %s85, 1
        %s1472 = scalar_select %p1471, %s85, 1
        %s1473 = smul.addr %s1472, 4
        %s1474 = scalar_lea.vmem %s39, %s1473
        %p1475 = scmp.lt.s32.totalorder %s85, 1
        %s1476 = scalar_select %p1475, %s85, 1
        %s1477 = smul.addr %s1476, 4
        %s1478 = smul.addr %s1477, 4
        %s1479 = scalar_lea.vmem %s41, %s1478
        %p1480 = scmp.lt.s32.totalorder %s85, 1
        %s1481 = scalar_select %p1480, %s85, 1
        %s1482 = scalar_lea.vmem %s43, %s1481
        %p1483 = scmp.lt.s32.totalorder %s85, 1
        %s1484 = scalar_select %p1483, %s85, 1
        %s1485 = scalar_lea.vmem %s45, %s1484
        %p1486 = scmp.lt.s32.totalorder %s85, 1
        %s1487 = scalar_select %p1486, %s85, 1
        %s1488 = scalar_lea.vmem %s47, %s1487
        %p1489 = scmp.lt.s32.totalorder %s85, 1
        %s1490 = scalar_select %p1489, %s85, 1
        %s1491 = smul.addr %s1490, 4
        %s1492 = smul.addr %s1491, 4
        %s1493 = scalar_lea.vmem %s49, %s1492
        %p1494 = scmp.lt.s32.totalorder %s85, 1
        %s1495 = scalar_select %p1494, %s85, 1
        %s1496 = scalar_lea.vmem %s51, %s1495
        %p1497 = scmp.lt.s32.totalorder %s85, 1
        %s1498 = scalar_select %p1497, %s85, 1
        %s1499 = smul.addr %s1498, 8
        %s1500 = smul.addr %s1499, 4
        %s1501 = scalar_lea.vmem %s53, %s1500
        %p1502 = scmp.lt.s32.totalorder %s85, 1
        %s1503 = scalar_select %p1502, %s85, 1
        %s1504 = scalar_lea.vmem %s55, %s1503
        %p1505 = scmp.lt.s32.totalorder %s85, 1
        %s1506 = scalar_select %p1505, %s85, 1
        %s1507 = scalar_lea.vmem %s57, %s1506
        %p1508 = scmp.lt.s32.totalorder %s85, 1
        %s1509 = scalar_select %p1508, %s85, 1
        %s1510 = scalar_lea.vmem %s59, %s1509
        %p1511 = scmp.lt.s32.totalorder %s85, 1
        %s1512 = scalar_select %p1511, %s85, 1
        %p1513 = scmp.lt.s32.totalorder %s84, 1
        %s1514 = scalar_select %p1513, %s84, 1
        %s1515 = smul.addr %s1514, 4
        %s1516 = smul.addr %s1512, 8
        %s1517 = sadd.s32 %s1515, %s1516
        %s1518 = smul.addr %s1517, 8
        %s1519 = scalar_lea.vmem %s63, %s1518
        %p1520 = scmp.lt.s32.totalorder %s85, 1
        %s1521 = scalar_select %p1520, %s85, 1
        %p1522 = scmp.lt.s32.totalorder %s84, 1
        %s1523 = scalar_select %p1522, %s84, 1
        %s1524 = smul.addr %s1523, 4
        %s1525 = smul.addr %s1521, 8
        %s1526 = sadd.s32 %s1524, %s1525
        %s1527 = smul.addr %s1526, 8
        %s1528 = scalar_lea.vmem %s65, %s1527
        %p1530 = scmp.eq.s32.totalorder %s85, 0
        // Predicated region
        $region141: #{decoder_forward.1} parent=139 // pred_check
          %p1531 = pneg %p1530
        $region142: #{decoder_forward.1} parent=139 // pred_check_branch
          %1533 = sbr.rel (%p1531) target = $region144
        $region143: #{decoder_forward.1} parent=139 // pred_region
          %v1534 = vld [vmem:[%s1395] sm:$0xff]
          %vm1535 = vcmask 261120
          %1536 = vst.msk [vmem:[#allocation2] sm:$0xff] %vm1535, %v1534
        $region144: #{decoder_forward.1} parent=139 // pred_fallthru
          _
        %v1537 = vld [vmem:[#allocation2] sm:$0xff]
        %v1538 = vld [vmem:[%s1400] sm:$0xff]
        %v1539 = vld [vmem:[%s1400 + $0x8] sm:$0x3]
        %v1540 = vpack.c.bf16 %v1539, %v1538
        %v1541 = vld [vmem:[%s1403] sm:$0x1]
        %vm1542 = vcmp.gt.f32.partialorder %v1541, 0.5
        %v1543 = vsel %vm1542, 0.0, -1e+09
        %v1544 = vld [vmem:[%s1406] sm:$0x1]
        %vm1545 = vcmp.gt.f32.partialorder %v1544, 0.5
        %v1546 = vsel %vm1545, 0.0, -1e+09
        %v1547 = vpack.c.bf16 %v1537, %v1537
        %v1548 = vld [vmem:[%s1411] sm:$0xf]
        %v1549 = vld [vmem:[%s1411 + $0x4] sm:$0xf]
        %v1550 = vld [vmem:[%s1411 + $0x8] sm:$0xf]
        %v1551 = vld [vmem:[%s1411 + $0xc] sm:$0xf]
        %v1552 = vld [vmem:[%s1415] sm:$0x1]
        %v1554 = vperm.slane %v1552, 0
        %v1560 = vunpack.c.l.b16 %v1548
        %v1561 = vunpack.c.l.b16 %v1549
        %v1562 = vunpack.c.l.b16 %v1550
        %v1563 = vunpack.c.l.b16 %v1551
        %v1564 = vpack.c.b16 %v1561, %v1560
        %v1565 = vpack.c.b16 %v1563, %v1562
        %vm1568 = vcmask 261120
        %v1570 = vsel %vm1568, %v1547, 0
        %1572 = vmatpush.bf16.msra.mxu0 0
        %1573 = vmatpush.bf16.msra.mxu0 0
        %1574 = vmatpush.bf16.msra.mxu0 0
        %1575 = vmatpush.bf16.msra.mxu0 0
        %1576 = vmatpush.bf16.msra.mxu0 0
        %1577 = vmatpush.bf16.msra.mxu0 0
        %1578 = vmatpush.bf16.msra.mxu0 %v1565
        %1579 = vmatpush.bf16.msra.mxu0 %v1564
        %1580 = vmatmul.bf16.gmra.mxu0 %v1570
        %v1581 = vpop.f32.mrf.mxu0
        %v1582 = vadd.f32 %v1554, %v1581
        %v1583 = vpop.f32.mrf.mxu0
        %1584 = vdwg.mxu0
        %v1585 = vld [vmem:[%s1420] sm:$0xf]
        %v1586 = vld [vmem:[%s1420 + $0x4] sm:$0xf]
        %v1587 = vld [vmem:[%s1420 + $0x8] sm:$0xf]
        %v1588 = vld [vmem:[%s1420 + $0xc] sm:$0xf]
        %v1589 = vld [vmem:[%s1424] sm:$0x1]
        %v1591 = vperm.slane %v1589, 0
        %v1597 = vunpack.c.l.b16 %v1585
        %v1598 = vunpack.c.l.b16 %v1586
        %v1599 = vunpack.c.l.b16 %v1587
        %v1600 = vunpack.c.l.b16 %v1588
        %v1601 = vpack.c.b16 %v1598, %v1597
        %v1602 = vpack.c.b16 %v1600, %v1599
        %1605 = vmatpush.bf16.msra.mxu0 0
        %1606 = vmatpush.bf16.msra.mxu0 0
        %1607 = vmatpush.bf16.msra.mxu0 0
        %1608 = vmatpush.bf16.msra.mxu0 0
        %1609 = vmatpush.bf16.msra.mxu0 0
        %1610 = vmatpush.bf16.msra.mxu0 0
        %1611 = vmatpush.bf16.msra.mxu0 %v1602
        %1612 = vmatpush.bf16.msra.mxu0 %v1601
        %1613 = vmatmul.bf16.gmra.mxu0 %v1570
        %v1614 = vpop.f32.mrf.mxu0
        %v1615 = vadd.f32 %v1591, %v1614
        %v1616 = vpop.f32.mrf.mxu0
        %1617 = vdwg.mxu0
        %v1618 = vld [vmem:[%s1429] sm:$0xf]
        %v1619 = vld [vmem:[%s1429 + $0x4] sm:$0xf]
        %v1620 = vld [vmem:[%s1429 + $0x8] sm:$0xf]
        %v1621 = vld [vmem:[%s1429 + $0xc] sm:$0xf]
        %v1622 = vld [vmem:[%s1433] sm:$0x1]
        %v1624 = vperm.slane %v1622, 0
        %v1630 = vunpack.c.l.b16 %v1618
        %v1631 = vunpack.c.l.b16 %v1619
        %v1632 = vunpack.c.l.b16 %v1620
        %v1633 = vunpack.c.l.b16 %v1621
        %v1634 = vpack.c.b16 %v1631, %v1630
        %v1635 = vpack.c.b16 %v1633, %v1632
        %1638 = vmatpush.bf16.msra.mxu0 0
        %1639 = vmatpush.bf16.msra.mxu0 0
        %1640 = vmatpush.bf16.msra.mxu0 0
        %1641 = vmatpush.bf16.msra.mxu0 0
        %1642 = vmatpush.bf16.msra.mxu0 0
        %1643 = vmatpush.bf16.msra.mxu0 0
        %1644 = vmatpush.bf16.msra.mxu0 %v1635
        %1645 = vmatpush.bf16.msra.mxu0 %v1634
        %1646 = vmatmul.bf16.gmra.mxu0 %v1570
        %v1647 = vpop.f32.mrf.mxu0
        %v1648 = vadd.f32 %v1624, %v1647
        %v1649 = vpop.f32.mrf.mxu0
        %1650 = vdwg.mxu0
        %v1652 = vperm.slane %v1543, 0
        %vm1654 = vcmask 64512
        %v1656 = vsel %vm1654, %v1582, 0
        %v1659 = vsel %vm1654, %v1615, 0
        %1661 = vmatpush.xpose.msra.mxu0 0.0
        %1662 = vmatpush.xpose.msra.mxu0 0.0
        %1663 = vmatpush.xpose.msra.mxu0 0.0
        %1664 = vmatpush.xpose.msra.mxu0 0.0
        %1665 = vmatpush.xpose.msra.mxu0 0.0
        %1666 = vmatpush.xpose.msra.mxu0 0.0
        %1667 = vmatpush.xpose.msra.mxu0 0.0
        %1668 = vmatpush.xpose.msra.mxu0 0.0
        %1669 = vmatpush.xpose.msra.mxu0 0.0
        %1670 = vmatpush.xpose.msra.mxu0 0.0
        %1671 = vmatpush.xpose.msra.mxu0 0.0
        %1672 = vmatpush.xpose.msra.mxu0 0.0
        %1673 = vmatpush.xpose.msra.mxu0 0.0
        %1674 = vmatpush.xpose.msra.mxu0 0.0
        %1675 = vmatpush.xpose.msra.mxu0 0.0
        %1676 = vmatpush.xpose.msra.mxu0 %v1659
        %1677 = vmatmul.f32.gmra.mxu0 %v1656
        %v1678 = vpop.f32.mrf.mxu0
        %v1679 = vadd.f32 %v1652, %v1678
        %1680 = vdwg.mxu0
        %v1681 = vsel %vm1654, %v1679, -inf
        %1682 = vmax.xlane.f32.xlu0 %v1681
        %v1683 = vpop.xlane.xlu0 %1682
        %v1684 = vsub.f32 %v1679, %v1683
        %v1685 = vmul.f32 %v1684, 1.442695
        %v1686 = vpow.pop %v1685
        %v1687 = vsel %vm1654, %v1686, 0.0
        %1688 = vadd.xlane.f32.xlu0 %v1687
        %v1689 = vpop.xlane.xlu0 %1688
        %v1690 = vrcp.pop %v1689
        %v1691 = vmul.f32 %v1689, %v1690
        %v1692 = vsub.f32 1.0, %v1691
        %v1693 = vmul.f32 %v1690, %v1692
        %v1694 = vadd.f32 %v1690, %v1693
        %vm1695 = vweird.f32 %v1689
        %vm1696 = vweird.f32 %v1690
        %vm1697 = vmor %vm1695, %vm1696
        %v1698 = vsel %vm1697, %v1690, %v1694
        %v1699 = vand.u32 2147483647, %v1689
        %vm1700 = vcmp.eq.f32.partialorder %v1699, 8.507059e+37
        %v1701 = vand.u32 %v1689, 2147483648
        %v1702 = vor.u32 1.1754944e-38, %v1701
        %v1703 = vsel %vm1700, %v1702, %v1698
        %v1704 = vmul.f32 %v1686, %v1703
        %1705 = vst.msk [vmem:[%s1519] sm:$0xff] %vm1654, %v1704
        %v1707 = vsel %vm1654, %v1704, 0
        %1709 = vmatpush.msra.mxu0 0.0
        %1710 = vmatpush.msra.mxu0 0.0
        %1711 = vmatpush.msra.mxu0 0.0
        %1712 = vmatpush.msra.mxu0 0.0
        %1713 = vmatpush.msra.mxu0 0.0
        %1714 = vmatpush.msra.mxu0 0.0
        %1715 = vmatpush.msra.mxu0 0.0
        %1716 = vmatpush.msra.mxu0 0.0
        %1717 = vmatpush.msra.mxu0 0.0
        %1718 = vmatpush.msra.mxu0 0.0
        %1719 = vmatpush.msra.mxu0 0.0
        %1720 = vmatpush.msra.mxu0 0.0
        %1721 = vmatpush.msra.mxu0 0.0
        %1722 = vmatpush.msra.mxu0 0.0
        %1723 = vmatpush.msra.mxu0 0.0
        %1724 = vmatpush.msra.mxu0 %v1648
        %1725 = vmatmul.f32.gmra.mxu0 %v1707
        %v1726 = vpop.f32.mrf.mxu0
        %v1727 = vadd.f32 0.0, %v1726
        %1728 = vdwg.mxu0
        %v1729 = vpack.c.bf16 %v1727, %v1727
        %v1730 = vld [vmem:[%s1438] sm:$0xf]
        %s1731 = scalar_lea.vmem %s1411, 16
        %v1732 = vld [vmem:[%s1731] sm:$0xf]
        %v1733 = vld [vmem:[%s1731 + $0x4] sm:$0xf]
        %v1734 = vld [vmem:[%s1731 + $0x8] sm:$0xf]
        %v1735 = vld [vmem:[%s1731 + $0xc] sm:$0xf]
        %s1736 = scalar_lea.vmem %s1415, 1
        %v1737 = vld [vmem:[%s1736] sm:$0x1]
        %v1739 = vperm.slane %v1737, 0
        %v1745 = vunpack.c.l.b16 %v1732
        %v1746 = vunpack.c.l.b16 %v1733
        %v1747 = vunpack.c.l.b16 %v1734
        %v1748 = vunpack.c.l.b16 %v1735
        %v1749 = vpack.c.b16 %v1746, %v1745
        %v1750 = vpack.c.b16 %v1748, %v1747
        %1753 = vmatpush.bf16.msra.mxu0 0
        %1754 = vmatpush.bf16.msra.mxu0 0
        %1755 = vmatpush.bf16.msra.mxu0 0
        %1756 = vmatpush.bf16.msra.mxu0 0
        %1757 = vmatpush.bf16.msra.mxu0 0
        %1758 = vmatpush.bf16.msra.mxu0 0
        %1759 = vmatpush.bf16.msra.mxu0 %v1750
        %1760 = vmatpush.bf16.msra.mxu0 %v1749
        %1761 = vmatmul.bf16.gmra.mxu0 %v1570
        %v1762 = vpop.f32.mrf.mxu0
        %v1763 = vadd.f32 %v1739, %v1762
        %v1764 = vpop.f32.mrf.mxu0
        %1765 = vdwg.mxu0
        %s1766 = scalar_lea.vmem %s1420, 16
        %v1767 = vld [vmem:[%s1766] sm:$0xf]
        %v1768 = vld [vmem:[%s1766 + $0x4] sm:$0xf]
        %v1769 = vld [vmem:[%s1766 + $0x8] sm:$0xf]
        %v1770 = vld [vmem:[%s1766 + $0xc] sm:$0xf]
        %s1771 = scalar_lea.vmem %s1424, 1
        %v1772 = vld [vmem:[%s1771] sm:$0x1]
        %v1774 = vperm.slane %v1772, 0
        %v1780 = vunpack.c.l.b16 %v1767
        %v1781 = vunpack.c.l.b16 %v1768
        %v1782 = vunpack.c.l.b16 %v1769
        %v1783 = vunpack.c.l.b16 %v1770
        %v1784 = vpack.c.b16 %v1781, %v1780
        %v1785 = vpack.c.b16 %v1783, %v1782
        %1788 = vmatpush.bf16.msra.mxu0 0
        %1789 = vmatpush.bf16.msra.mxu0 0
        %1790 = vmatpush.bf16.msra.mxu0 0
        %1791 = vmatpush.bf16.msra.mxu0 0
        %1792 = vmatpush.bf16.msra.mxu0 0
        %1793 = vmatpush.bf16.msra.mxu0 0
        %1794 = vmatpush.bf16.msra.mxu0 %v1785
        %1795 = vmatpush.bf16.msra.mxu0 %v1784
        %1796 = vmatmul.bf16.gmra.mxu0 %v1570
        %v1797 = vpop.f32.mrf.mxu0
        %v1798 = vadd.f32 %v1774, %v1797
        %v1799 = vpop.f32.mrf.mxu0
        %1800 = vdwg.mxu0
        %s1801 = scalar_lea.vmem %s1429, 16
        %v1802 = vld [vmem:[%s1801] sm:$0xf]
        %v1803 = vld [vmem:[%s1801 + $0x4] sm:$0xf]
        %v1804 = vld [vmem:[%s1801 + $0x8] sm:$0xf]
        %v1805 = vld [vmem:[%s1801 + $0xc] sm:$0xf]
        %s1806 = scalar_lea.vmem %s1433, 1
        %v1807 = vld [vmem:[%s1806] sm:$0x1]
        %v1809 = vperm.slane %v1807, 0
        %v1815 = vunpack.c.l.b16 %v1802
        %v1816 = vunpack.c.l.b16 %v1803
        %v1817 = vunpack.c.l.b16 %v1804
        %v1818 = vunpack.c.l.b16 %v1805
        %v1819 = vpack.c.b16 %v1816, %v1815
        %v1820 = vpack.c.b16 %v1818, %v1817
        %1823 = vmatpush.bf16.msra.mxu0 0
        %1824 = vmatpush.bf16.msra.mxu0 0
        %1825 = vmatpush.bf16.msra.mxu0 0
        %1826 = vmatpush.bf16.msra.mxu0 0
        %1827 = vmatpush.bf16.msra.mxu0 0
        %1828 = vmatpush.bf16.msra.mxu0 0
        %1829 = vmatpush.bf16.msra.mxu0 %v1820
        %1830 = vmatpush.bf16.msra.mxu0 %v1819
        %1831 = vmatmul.bf16.gmra.mxu0 %v1570
        %v1832 = vpop.f32.mrf.mxu0
        %v1833 = vadd.f32 %v1809, %v1832
        %v1834 = vpop.f32.mrf.mxu0
        %1835 = vdwg.mxu0
        %v1837 = vsel %vm1654, %v1763, 0
        %v1840 = vsel %vm1654, %v1798, 0
        %1842 = vmatpush.xpose.msra.mxu0 0.0
        %1843 = vmatpush.xpose.msra.mxu0 0.0
        %1844 = vmatpush.xpose.msra.mxu0 0.0
        %1845 = vmatpush.xpose.msra.mxu0 0.0
        %1846 = vmatpush.xpose.msra.mxu0 0.0
        %1847 = vmatpush.xpose.msra.mxu0 0.0
        %1848 = vmatpush.xpose.msra.mxu0 0.0
        %1849 = vmatpush.xpose.msra.mxu0 0.0
        %1850 = vmatpush.xpose.msra.mxu0 0.0
        %1851 = vmatpush.xpose.msra.mxu0 0.0
        %1852 = vmatpush.xpose.msra.mxu0 0.0
        %1853 = vmatpush.xpose.msra.mxu0 0.0
        %1854 = vmatpush.xpose.msra.mxu0 0.0
        %1855 = vmatpush.xpose.msra.mxu0 0.0
        %1856 = vmatpush.xpose.msra.mxu0 0.0
        %1857 = vmatpush.xpose.msra.mxu0 %v1840
        %1858 = vmatmul.f32.gmra.mxu0 %v1837
        %v1859 = vpop.f32.mrf.mxu0
        %v1860 = vadd.f32 %v1652, %v1859
        %1861 = vdwg.mxu0
        %v1862 = vsel %vm1654, %v1860, -inf
        %1863 = vmax.xlane.f32.xlu0 %v1862
        %v1864 = vpop.xlane.xlu0 %1863
        %v1865 = vsub.f32 %v1860, %v1864
        %v1866 = vmul.f32 %v1865, 1.442695
        %v1867 = vpow.pop %v1866
        %v1868 = vsel %vm1654, %v1867, 0.0
        %1869 = vadd.xlane.f32.xlu0 %v1868
        %v1870 = vpop.xlane.xlu0 %1869
        %v1871 = vrcp.pop %v1870
        %v1872 = vmul.f32 %v1870, %v1871
        %v1873 = vsub.f32 1.0, %v1872
        %v1874 = vmul.f32 %v1871, %v1873
        %v1875 = vadd.f32 %v1871, %v1874
        %vm1876 = vweird.f32 %v1870
        %vm1877 = vweird.f32 %v1871
        %vm1878 = vmor %vm1876, %vm1877
        %v1879 = vsel %vm1878, %v1871, %v1875
        %v1880 = vand.u32 2147483647, %v1870
        %vm1881 = vcmp.eq.f32.partialorder %v1880, 8.507059e+37
        %v1882 = vand.u32 %v1870, 2147483648
        %v1883 = vor.u32 1.1754944e-38, %v1882
        %v1884 = vsel %vm1881, %v1883, %v1879
        %v1885 = vmul.f32 %v1867, %v1884
        %1886 = vst.msk [vmem:[%s1519 + $0x8] sm:$0xff] %vm1654, %v1885
        %v1888 = vsel %vm1654, %v1885, 0
        %1890 = vmatpush.msra.mxu0 0.0
        %1891 = vmatpush.msra.mxu0 0.0
        %1892 = vmatpush.msra.mxu0 0.0
        %1893 = vmatpush.msra.mxu0 0.0
        %1894 = vmatpush.msra.mxu0 0.0
        %1895 = vmatpush.msra.mxu0 0.0
        %1896 = vmatpush.msra.mxu0 0.0
        %1897 = vmatpush.msra.mxu0 0.0
        %1898 = vmatpush.msra.mxu0 0.0
        %1899 = vmatpush.msra.mxu0 0.0
        %1900 = vmatpush.msra.mxu0 0.0
        %1901 = vmatpush.msra.mxu0 0.0
        %1902 = vmatpush.msra.mxu0 0.0
        %1903 = vmatpush.msra.mxu0 0.0
        %1904 = vmatpush.msra.mxu0 0.0
        %1905 = vmatpush.msra.mxu0 %v1833
        %1906 = vmatmul.f32.gmra.mxu0 %v1888
        %v1907 = vpop.f32.mrf.mxu0
        %v1908 = vadd.f32 0.0, %v1907
        %1909 = vdwg.mxu0
        %v1910 = vpack.c.bf16 %v1908, %v1908
        %s1911 = scalar_lea.vmem %s1438, 4
        %v1912 = vld [vmem:[%s1911] sm:$0xf]
        %v1914 = vsel %vm1654, %v1910, 0
        %vm1916 = vcmask 1043456
        %v1918 = vsel %vm1916, %v1912, 0
        %1920 = vmatpush.bf16.msra.mxu0 0
        %1921 = vmatpush.bf16.msra.mxu0 0
        %1922 = vmatpush.bf16.msra.mxu0 0
        %1923 = vmatpush.bf16.msra.mxu0 0
        %1924 = vmatpush.bf16.msra.mxu0 0
        %1925 = vmatpush.bf16.msra.mxu0 0
        %1926 = vmatpush.bf16.msra.mxu0 0
        %1927 = vmatpush.bf16.msra.mxu0 %v1918
        %1928 = vmatmul.bf16.gmra.mxu0 %v1914
        %v1929 = vpop.f32.mrf.mxu0
        %v1930 = vadd.f32 0.0, %v1929
        %v1931 = vpop.f32.mrf.mxu0
        %1932 = vdwg.mxu0
        %v1934 = vsel %vm1654, %v1729, 0
        %v1937 = vsel %vm1916, %v1730, 0
        %1939 = vmatpush.bf16.msra.mxu0 0
        %1940 = vmatpush.bf16.msra.mxu0 0
        %1941 = vmatpush.bf16.msra.mxu0 0
        %1942 = vmatpush.bf16.msra.mxu0 0
        %1943 = vmatpush.bf16.msra.mxu0 0
        %1944 = vmatpush.bf16.msra.mxu0 0
        %1945 = vmatpush.bf16.msra.mxu0 0
        %1946 = vmatpush.bf16.msra.mxu0 %v1937
        %1947 = vmatmul.bf16.gmra.mxu0 %v1934
        %v1948 = vpop.f32.mrf.mxu0
        %v1949 = vadd.f32 %v1930, %v1948
        %v1950 = vpop.f32.mrf.mxu0
        %1951 = vdwg.mxu0
        %s1952 = scalar_lea.vmem %s1411, 32
        %v1953 = vld [vmem:[%s1952] sm:$0xf]
        %v1954 = vld [vmem:[%s1952 + $0x4] sm:$0xf]
        %v1955 = vld [vmem:[%s1952 + $0x8] sm:$0xf]
        %v1956 = vld [vmem:[%s1952 + $0xc] sm:$0xf]
        %s1957 = scalar_lea.vmem %s1415, 2
        %v1958 = vld [vmem:[%s1957] sm:$0x1]
        %v1960 = vperm.slane %v1958, 0
        %v1966 = vunpack.c.l.b16 %v1953
        %v1967 = vunpack.c.l.b16 %v1954
        %v1968 = vunpack.c.l.b16 %v1955
        %v1969 = vunpack.c.l.b16 %v1956
        %v1970 = vpack.c.b16 %v1967, %v1966
        %v1971 = vpack.c.b16 %v1969, %v1968
        %1974 = vmatpush.bf16.msra.mxu0 0
        %1975 = vmatpush.bf16.msra.mxu0 0
        %1976 = vmatpush.bf16.msra.mxu0 0
        %1977 = vmatpush.bf16.msra.mxu0 0
        %1978 = vmatpush.bf16.msra.mxu0 0
        %1979 = vmatpush.bf16.msra.mxu0 0
        %1980 = vmatpush.bf16.msra.mxu0 %v1971
        %1981 = vmatpush.bf16.msra.mxu0 %v1970
        %1982 = vmatmul.bf16.gmra.mxu0 %v1570
        %v1983 = vpop.f32.mrf.mxu0
        %v1984 = vadd.f32 %v1960, %v1983
        %v1985 = vpop.f32.mrf.mxu0
        %1986 = vdwg.mxu0
        %s1987 = scalar_lea.vmem %s1420, 32
        %v1988 = vld [vmem:[%s1987] sm:$0xf]
        %v1989 = vld [vmem:[%s1987 + $0x4] sm:$0xf]
        %v1990 = vld [vmem:[%s1987 + $0x8] sm:$0xf]
        %v1991 = vld [vmem:[%s1987 + $0xc] sm:$0xf]
        %s1992 = scalar_lea.vmem %s1424, 2
        %v1993 = vld [vmem:[%s1992] sm:$0x1]
        %v1995 = vperm.slane %v1993, 0
        %v2001 = vunpack.c.l.b16 %v1988
        %v2002 = vunpack.c.l.b16 %v1989
        %v2003 = vunpack.c.l.b16 %v1990
        %v2004 = vunpack.c.l.b16 %v1991
        %v2005 = vpack.c.b16 %v2002, %v2001
        %v2006 = vpack.c.b16 %v2004, %v2003
        %2009 = vmatpush.bf16.msra.mxu0 0
        %2010 = vmatpush.bf16.msra.mxu0 0
        %2011 = vmatpush.bf16.msra.mxu0 0
        %2012 = vmatpush.bf16.msra.mxu0 0
        %2013 = vmatpush.bf16.msra.mxu0 0
        %2014 = vmatpush.bf16.msra.mxu0 0
        %2015 = vmatpush.bf16.msra.mxu0 %v2006
        %2016 = vmatpush.bf16.msra.mxu0 %v2005
        %2017 = vmatmul.bf16.gmra.mxu0 %v1570
        %v2018 = vpop.f32.mrf.mxu0
        %v2019 = vadd.f32 %v1995, %v2018
        %v2020 = vpop.f32.mrf.mxu0
        %2021 = vdwg.mxu0
        %s2022 = scalar_lea.vmem %s1429, 32
        %v2023 = vld [vmem:[%s2022] sm:$0xf]
        %v2024 = vld [vmem:[%s2022 + $0x4] sm:$0xf]
        %v2025 = vld [vmem:[%s2022 + $0x8] sm:$0xf]
        %v2026 = vld [vmem:[%s2022 + $0xc] sm:$0xf]
        %s2027 = scalar_lea.vmem %s1433, 2
        %v2028 = vld [vmem:[%s2027] sm:$0x1]
        %v2030 = vperm.slane %v2028, 0
        %v2036 = vunpack.c.l.b16 %v2023
        %v2037 = vunpack.c.l.b16 %v2024
        %v2038 = vunpack.c.l.b16 %v2025
        %v2039 = vunpack.c.l.b16 %v2026
        %v2040 = vpack.c.b16 %v2037, %v2036
        %v2041 = vpack.c.b16 %v2039, %v2038
        %2044 = vmatpush.bf16.msra.mxu0 0
        %2045 = vmatpush.bf16.msra.mxu0 0
        %2046 = vmatpush.bf16.msra.mxu0 0
        %2047 = vmatpush.bf16.msra.mxu0 0
        %2048 = vmatpush.bf16.msra.mxu0 0
        %2049 = vmatpush.bf16.msra.mxu0 0
        %2050 = vmatpush.bf16.msra.mxu0 %v2041
        %2051 = vmatpush.bf16.msra.mxu0 %v2040
        %2052 = vmatmul.bf16.gmra.mxu0 %v1570
        %v2053 = vpop.f32.mrf.mxu0
        %v2054 = vadd.f32 %v2030, %v2053
        %v2055 = vpop.f32.mrf.mxu0
        %2056 = vdwg.mxu0
        %v2058 = vsel %vm1654, %v1984, 0
        %v2061 = vsel %vm1654, %v2019, 0
        %2063 = vmatpush.xpose.msra.mxu0 0.0
        %2064 = vmatpush.xpose.msra.mxu0 0.0
        %2065 = vmatpush.xpose.msra.mxu0 0.0
        %2066 = vmatpush.xpose.msra.mxu0 0.0
        %2067 = vmatpush.xpose.msra.mxu0 0.0
        %2068 = vmatpush.xpose.msra.mxu0 0.0
        %2069 = vmatpush.xpose.msra.mxu0 0.0
        %2070 = vmatpush.xpose.msra.mxu0 0.0
        %2071 = vmatpush.xpose.msra.mxu0 0.0
        %2072 = vmatpush.xpose.msra.mxu0 0.0
        %2073 = vmatpush.xpose.msra.mxu0 0.0
        %2074 = vmatpush.xpose.msra.mxu0 0.0
        %2075 = vmatpush.xpose.msra.mxu0 0.0
        %2076 = vmatpush.xpose.msra.mxu0 0.0
        %2077 = vmatpush.xpose.msra.mxu0 0.0
        %2078 = vmatpush.xpose.msra.mxu0 %v2061
        %2079 = vmatmul.f32.gmra.mxu0 %v2058
        %v2080 = vpop.f32.mrf.mxu0
        %v2081 = vadd.f32 %v1652, %v2080
        %2082 = vdwg.mxu0
        %v2083 = vsel %vm1654, %v2081, -inf
        %2084 = vmax.xlane.f32.xlu0 %v2083
        %v2085 = vpop.xlane.xlu0 %2084
        %v2086 = vsub.f32 %v2081, %v2085
        %v2087 = vmul.f32 %v2086, 1.442695
        %v2088 = vpow.pop %v2087
        %v2089 = vsel %vm1654, %v2088, 0.0
        %2090 = vadd.xlane.f32.xlu0 %v2089
        %v2091 = vpop.xlane.xlu0 %2090
        %v2092 = vrcp.pop %v2091
        %v2093 = vmul.f32 %v2091, %v2092
        %v2094 = vsub.f32 1.0, %v2093
        %v2095 = vmul.f32 %v2092, %v2094
        %v2096 = vadd.f32 %v2092, %v2095
        %vm2097 = vweird.f32 %v2091
        %vm2098 = vweird.f32 %v2092
        %vm2099 = vmor %vm2097, %vm2098
        %v2100 = vsel %vm2099, %v2092, %v2096
        %v2101 = vand.u32 2147483647, %v2091
        %vm2102 = vcmp.eq.f32.partialorder %v2101, 8.507059e+37
        %v2103 = vand.u32 %v2091, 2147483648
        %v2104 = vor.u32 1.1754944e-38, %v2103
        %v2105 = vsel %vm2102, %v2104, %v2100
        %v2106 = vmul.f32 %v2088, %v2105
        %2107 = vst.msk [vmem:[%s1519 + $0x10] sm:$0xff] %vm1654, %v2106
        %v2109 = vsel %vm1654, %v2106, 0
        %2111 = vmatpush.msra.mxu0 0.0
        %2112 = vmatpush.msra.mxu0 0.0
        %2113 = vmatpush.msra.mxu0 0.0
        %2114 = vmatpush.msra.mxu0 0.0
        %2115 = vmatpush.msra.mxu0 0.0
        %2116 = vmatpush.msra.mxu0 0.0
        %2117 = vmatpush.msra.mxu0 0.0
        %2118 = vmatpush.msra.mxu0 0.0
        %2119 = vmatpush.msra.mxu0 0.0
        %2120 = vmatpush.msra.mxu0 0.0
        %2121 = vmatpush.msra.mxu0 0.0
        %2122 = vmatpush.msra.mxu0 0.0
        %2123 = vmatpush.msra.mxu0 0.0
        %2124 = vmatpush.msra.mxu0 0.0
        %2125 = vmatpush.msra.mxu0 0.0
        %2126 = vmatpush.msra.mxu0 %v2054
        %2127 = vmatmul.f32.gmra.mxu0 %v2109
        %v2128 = vpop.f32.mrf.mxu0
        %v2129 = vadd.f32 0.0, %v2128
        %2130 = vdwg.mxu0
        %v2131 = vpack.c.bf16 %v2129, %v2129
        %s2132 = scalar_lea.vmem %s1438, 8
        %v2133 = vld [vmem:[%s2132] sm:$0xf]
        %v2135 = vsel %vm1654, %v2131, 0
        %v2138 = vsel %vm1916, %v2133, 0
        %2140 = vmatpush.bf16.msra.mxu0 0
        %2141 = vmatpush.bf16.msra.mxu0 0
        %2142 = vmatpush.bf16.msra.mxu0 0
        %2143 = vmatpush.bf16.msra.mxu0 0
        %2144 = vmatpush.bf16.msra.mxu0 0
        %2145 = vmatpush.bf16.msra.mxu0 0
        %2146 = vmatpush.bf16.msra.mxu0 0
        %2147 = vmatpush.bf16.msra.mxu0 %v2138
        %2148 = vmatmul.bf16.gmra.mxu0 %v2135
        %v2149 = vpop.f32.mrf.mxu0
        %v2150 = vadd.f32 0.0, %v2149
        %v2151 = vpop.f32.mrf.mxu0
        %2152 = vdwg.mxu0
        %v2153 = vadd.f32 %v1949, %v2150
        %s2154 = scalar_lea.vmem %s1411, 48
        %v2155 = vld [vmem:[%s2154] sm:$0xf]
        %v2156 = vld [vmem:[%s2154 + $0x4] sm:$0xf]
        %v2157 = vld [vmem:[%s2154 + $0x8] sm:$0xf]
        %v2158 = vld [vmem:[%s2154 + $0xc] sm:$0xf]
        %s2159 = scalar_lea.vmem %s1415, 3
        %v2160 = vld [vmem:[%s2159] sm:$0x1]
        %v2162 = vperm.slane %v2160, 0
        %v2168 = vunpack.c.l.b16 %v2155
        %v2169 = vunpack.c.l.b16 %v2156
        %v2170 = vunpack.c.l.b16 %v2157
        %v2171 = vunpack.c.l.b16 %v2158
        %v2172 = vpack.c.b16 %v2169, %v2168
        %v2173 = vpack.c.b16 %v2171, %v2170
        %2176 = vmatpush.bf16.msra.mxu0 0
        %2177 = vmatpush.bf16.msra.mxu0 0
        %2178 = vmatpush.bf16.msra.mxu0 0
        %2179 = vmatpush.bf16.msra.mxu0 0
        %2180 = vmatpush.bf16.msra.mxu0 0
        %2181 = vmatpush.bf16.msra.mxu0 0
        %2182 = vmatpush.bf16.msra.mxu0 %v2173
        %2183 = vmatpush.bf16.msra.mxu0 %v2172
        %2184 = vmatmul.bf16.gmra.mxu0 %v1570
        %v2185 = vpop.f32.mrf.mxu0
        %v2186 = vadd.f32 %v2162, %v2185
        %v2187 = vpop.f32.mrf.mxu0
        %2188 = vdwg.mxu0
        %s2189 = scalar_lea.vmem %s1420, 48
        %v2190 = vld [vmem:[%s2189] sm:$0xf]
        %v2191 = vld [vmem:[%s2189 + $0x4] sm:$0xf]
        %v2192 = vld [vmem:[%s2189 + $0x8] sm:$0xf]
        %v2193 = vld [vmem:[%s2189 + $0xc] sm:$0xf]
        %s2194 = scalar_lea.vmem %s1424, 3
        %v2195 = vld [vmem:[%s2194] sm:$0x1]
        %v2197 = vperm.slane %v2195, 0
        %v2203 = vunpack.c.l.b16 %v2190
        %v2204 = vunpack.c.l.b16 %v2191
        %v2205 = vunpack.c.l.b16 %v2192
        %v2206 = vunpack.c.l.b16 %v2193
        %v2207 = vpack.c.b16 %v2204, %v2203
        %v2208 = vpack.c.b16 %v2206, %v2205
        %2211 = vmatpush.bf16.msra.mxu0 0
        %2212 = vmatpush.bf16.msra.mxu0 0
        %2213 = vmatpush.bf16.msra.mxu0 0
        %2214 = vmatpush.bf16.msra.mxu0 0
        %2215 = vmatpush.bf16.msra.mxu0 0
        %2216 = vmatpush.bf16.msra.mxu0 0
        %2217 = vmatpush.bf16.msra.mxu0 %v2208
        %2218 = vmatpush.bf16.msra.mxu0 %v2207
        %2219 = vmatmul.bf16.gmra.mxu0 %v1570
        %v2220 = vpop.f32.mrf.mxu0
        %v2221 = vadd.f32 %v2197, %v2220
        %v2222 = vpop.f32.mrf.mxu0
        %2223 = vdwg.mxu0
        %s2224 = scalar_lea.vmem %s1429, 48
        %v2225 = vld [vmem:[%s2224] sm:$0xf]
        %v2226 = vld [vmem:[%s2224 + $0x4] sm:$0xf]
        %v2227 = vld [vmem:[%s2224 + $0x8] sm:$0xf]
        %v2228 = vld [vmem:[%s2224 + $0xc] sm:$0xf]
        %s2229 = scalar_lea.vmem %s1433, 3
        %v2230 = vld [vmem:[%s2229] sm:$0x1]
        %v2232 = vperm.slane %v2230, 0
        %v2238 = vunpack.c.l.b16 %v2225
        %v2239 = vunpack.c.l.b16 %v2226
        %v2240 = vunpack.c.l.b16 %v2227
        %v2241 = vunpack.c.l.b16 %v2228
        %v2242 = vpack.c.b16 %v2239, %v2238
        %v2243 = vpack.c.b16 %v2241, %v2240
        %2246 = vmatpush.bf16.msra.mxu0 0
        %2247 = vmatpush.bf16.msra.mxu0 0
        %2248 = vmatpush.bf16.msra.mxu0 0
        %2249 = vmatpush.bf16.msra.mxu0 0
        %2250 = vmatpush.bf16.msra.mxu0 0
        %2251 = vmatpush.bf16.msra.mxu0 0
        %2252 = vmatpush.bf16.msra.mxu0 %v2243
        %2253 = vmatpush.bf16.msra.mxu0 %v2242
        %2254 = vmatmul.bf16.gmra.mxu0 %v1570
        %v2255 = vpop.f32.mrf.mxu0
        %v2256 = vadd.f32 %v2232, %v2255
        %v2257 = vpop.f32.mrf.mxu0
        %2258 = vdwg.mxu0
        %v2260 = vsel %vm1654, %v2186, 0
        %v2263 = vsel %vm1654, %v2221, 0
        %2265 = vmatpush.xpose.msra.mxu0 0.0
        %2266 = vmatpush.xpose.msra.mxu0 0.0
        %2267 = vmatpush.xpose.msra.mxu0 0.0
        %2268 = vmatpush.xpose.msra.mxu0 0.0
        %2269 = vmatpush.xpose.msra.mxu0 0.0
        %2270 = vmatpush.xpose.msra.mxu0 0.0
        %2271 = vmatpush.xpose.msra.mxu0 0.0
        %2272 = vmatpush.xpose.msra.mxu0 0.0
        %2273 = vmatpush.xpose.msra.mxu0 0.0
        %2274 = vmatpush.xpose.msra.mxu0 0.0
        %2275 = vmatpush.xpose.msra.mxu0 0.0
        %2276 = vmatpush.xpose.msra.mxu0 0.0
        %2277 = vmatpush.xpose.msra.mxu0 0.0
        %2278 = vmatpush.xpose.msra.mxu0 0.0
        %2279 = vmatpush.xpose.msra.mxu0 0.0
        %2280 = vmatpush.xpose.msra.mxu0 %v2263
        %2281 = vmatmul.f32.gmra.mxu0 %v2260
        %v2282 = vpop.f32.mrf.mxu0
        %v2283 = vadd.f32 %v1652, %v2282
        %2284 = vdwg.mxu0
        %v2285 = vsel %vm1654, %v2283, -inf
        %2286 = vmax.xlane.f32.xlu0 %v2285
        %v2287 = vpop.xlane.xlu0 %2286
        %v2288 = vsub.f32 %v2283, %v2287
        %v2289 = vmul.f32 %v2288, 1.442695
        %v2290 = vpow.pop %v2289
        %v2291 = vsel %vm1654, %v2290, 0.0
        %2292 = vadd.xlane.f32.xlu0 %v2291
        %v2293 = vpop.xlane.xlu0 %2292
        %v2294 = vrcp.pop %v2293
        %v2295 = vmul.f32 %v2293, %v2294
        %v2296 = vsub.f32 1.0, %v2295
        %v2297 = vmul.f32 %v2294, %v2296
        %v2298 = vadd.f32 %v2294, %v2297
        %vm2299 = vweird.f32 %v2293
        %vm2300 = vweird.f32 %v2294
        %vm2301 = vmor %vm2299, %vm2300
        %v2302 = vsel %vm2301, %v2294, %v2298
        %v2303 = vand.u32 2147483647, %v2293
        %vm2304 = vcmp.eq.f32.partialorder %v2303, 8.507059e+37
        %v2305 = vand.u32 %v2293, 2147483648
        %v2306 = vor.u32 1.1754944e-38, %v2305
        %v2307 = vsel %vm2304, %v2306, %v2302
        %v2308 = vmul.f32 %v2290, %v2307
        %2309 = vst.msk [vmem:[%s1519 + $0x18] sm:$0xff] %vm1654, %v2308
        %v2311 = vsel %vm1654, %v2308, 0
        %2313 = vmatpush.msra.mxu0 0.0
        %2314 = vmatpush.msra.mxu0 0.0
        %2315 = vmatpush.msra.mxu0 0.0
        %2316 = vmatpush.msra.mxu0 0.0
        %2317 = vmatpush.msra.mxu0 0.0
        %2318 = vmatpush.msra.mxu0 0.0
        %2319 = vmatpush.msra.mxu0 0.0
        %2320 = vmatpush.msra.mxu0 0.0
        %2321 = vmatpush.msra.mxu0 0.0
        %2322 = vmatpush.msra.mxu0 0.0
        %2323 = vmatpush.msra.mxu0 0.0
        %2324 = vmatpush.msra.mxu0 0.0
        %2325 = vmatpush.msra.mxu0 0.0
        %2326 = vmatpush.msra.mxu0 0.0
        %2327 = vmatpush.msra.mxu0 0.0
        %2328 = vmatpush.msra.mxu0 %v2256
        %2329 = vmatmul.f32.gmra.mxu0 %v2311
        %v2330 = vpop.f32.mrf.mxu0
        %v2331 = vadd.f32 0.0, %v2330
        %2332 = vdwg.mxu0
        %v2333 = vpack.c.bf16 %v2331, %v2331
        %s2334 = scalar_lea.vmem %s1438, 12
        %v2335 = vld [vmem:[%s2334] sm:$0xf]
        %v2337 = vsel %vm1654, %v2333, 0
        %v2340 = vsel %vm1916, %v2335, 0
        %2342 = vmatpush.bf16.msra.mxu0 0
        %2343 = vmatpush.bf16.msra.mxu0 0
        %2344 = vmatpush.bf16.msra.mxu0 0
        %2345 = vmatpush.bf16.msra.mxu0 0
        %2346 = vmatpush.bf16.msra.mxu0 0
        %2347 = vmatpush.bf16.msra.mxu0 0
        %2348 = vmatpush.bf16.msra.mxu0 0
        %2349 = vmatpush.bf16.msra.mxu0 %v2340
        %2350 = vmatmul.bf16.gmra.mxu0 %v2337
        %v2351 = vpop.f32.mrf.mxu0
        %v2352 = vadd.f32 0.0, %v2351
        %v2353 = vpop.f32.mrf.mxu0
        %2354 = vdwg.mxu0
        %v2355 = vadd.f32 %v2153, %v2352
        %v2356 = vld [vmem:[%s1441] sm:$0x1]
        %v2358 = vperm.slane %v2356, 0
        %v2360 = vadd.f32 %v2355, %v2358
        %v2361 = vadd.f32 %v1537, %v2360
        %v2362 = vsel %vm1568, %v2361, 0.0
        %2363 = vadd.xlane.f32.xlu0 %v2362
        %v2364 = vpop.xlane.xlu0 %2363
        %v2365 = vrcp.pop 32.0
        %v2366 = vmul.f32 32.0, %v2365
        %v2367 = vsub.f32 1.0, %v2366
        %v2368 = vmul.f32 %v2365, %v2367
        %v2369 = vadd.f32 %v2365, %v2368
        %vm2370 = vweird.f32 %v2365
        %v2371 = vsel %vm2370, %v2365, %v2369
        %v2372 = vmul.f32 %v2364, %v2371
        %v2373 = vsub.f32 %v2361, %v2372
        %v2374 = vmul.f32 %v2373, %v2373
        %v2375 = vsel %vm1568, %v2374, 0.0
        %2376 = vadd.xlane.f32.xlu0 %v2375
        %v2377 = vpop.xlane.xlu0 %2376
        %v2378 = vmul.f32 %v2377, %v2371
        %v2379 = vadd.f32 %v2378, 1e-05
        %v2380 = vrsqrt.pop %v2379
        %v2381 = vmul.f32 %v2380, %v2379
        %v2382 = vmul.f32 %v2381, %v2380
        %v2383 = vmul.f32 0.5, %v2382
        %v2384 = vsub.f32 1.5, %v2383
        %v2385 = vmul.f32 %v2380, %v2384
        %vm2386 = vweird.f32 %v2379
        %vm2387 = vweird.f32 %v2380
        %vm2388 = vmor %vm2386, %vm2387
        %v2389 = vsel %vm2388, %v2380, %v2385
        %v2390 = vmul.f32 %v2373, %v2389
        %v2391 = vld [vmem:[%s1444] sm:$0x1]
        %v2393 = vperm.slane %v2391, 0
        %v2395 = vmul.f32 %v2390, %v2393
        %v2396 = vld [vmem:[%s1447] sm:$0x1]
        %v2398 = vperm.slane %v2396, 0
        %v2400 = vadd.f32 %v2395, %v2398
        %v2401 = vpack.c.bf16 %v2400, %v2400
        %v2402 = vld [vmem:[%s1452] sm:$0xf]
        %v2403 = vld [vmem:[%s1452 + $0x4] sm:$0xf]
        %v2404 = vld [vmem:[%s1452 + $0x8] sm:$0xf]
        %v2405 = vld [vmem:[%s1452 + $0xc] sm:$0xf]
        %v2406 = vld [vmem:[%s1456] sm:$0x1]
        %v2408 = vperm.slane %v2406, 0
        %v2414 = vunpack.c.l.b16 %v2402
        %v2415 = vunpack.c.l.b16 %v2403
        %v2416 = vunpack.c.l.b16 %v2404
        %v2417 = vunpack.c.l.b16 %v2405
        %v2418 = vpack.c.b16 %v2415, %v2414
        %v2419 = vpack.c.b16 %v2417, %v2416
        %v2423 = vsel %vm1568, %v2401, 0
        %2425 = vmatpush.bf16.msra.mxu0 0
        %2426 = vmatpush.bf16.msra.mxu0 0
        %2427 = vmatpush.bf16.msra.mxu0 0
        %2428 = vmatpush.bf16.msra.mxu0 0
        %2429 = vmatpush.bf16.msra.mxu0 0
        %2430 = vmatpush.bf16.msra.mxu0 0
        %2431 = vmatpush.bf16.msra.mxu0 %v2419
        %2432 = vmatpush.bf16.msra.mxu0 %v2418
        %2433 = vmatmul.bf16.gmra.mxu0 %v2423
        %v2434 = vpop.f32.mrf.mxu0
        %v2435 = vadd.f32 %v2408, %v2434
        %v2436 = vpop.f32.mrf.mxu0
        %2437 = vdwg.mxu0
        %v2438 = vld [vmem:[%s1461] sm:$0xf]
        %v2439 = vld [vmem:[%s1461 + $0x4] sm:$0xf]
        %v2440 = vld [vmem:[%s1461 + $0x8] sm:$0xf]
        %v2441 = vld [vmem:[%s1461 + $0xc] sm:$0xf]
        %v2442 = vld [vmem:[%s1465] sm:$0x1]
        %v2444 = vperm.slane %v2442, 0
        %v2450 = vunpack.c.l.b16 %v2438
        %v2451 = vunpack.c.l.b16 %v2439
        %v2452 = vunpack.c.l.b16 %v2440
        %v2453 = vunpack.c.l.b16 %v2441
        %v2454 = vpack.c.b16 %v2451, %v2450
        %v2455 = vpack.c.b16 %v2453, %v2452
        %v2459 = vsel %vm1568, %v1540, 0
        %2461 = vmatpush.bf16.msra.mxu0 0
        %2462 = vmatpush.bf16.msra.mxu0 0
        %2463 = vmatpush.bf16.msra.mxu0 0
        %2464 = vmatpush.bf16.msra.mxu0 0
        %2465 = vmatpush.bf16.msra.mxu0 0
        %2466 = vmatpush.bf16.msra.mxu0 0
        %2467 = vmatpush.bf16.msra.mxu0 %v2455
        %2468 = vmatpush.bf16.msra.mxu0 %v2454
        %2469 = vmatmul.bf16.gmra.mxu0 %v2459
        %v2470 = vpop.f32.mrf.mxu0
        %v2471 = vadd.f32 %v2444, %v2470
        %v2472 = vpop.f32.mrf.mxu0
        %v2473 = vadd.f32 %v2444, %v2472
        %2474 = vdwg.mxu0
        %v2475 = vld [vmem:[%s1470] sm:$0xf]
        %v2476 = vld [vmem:[%s1470 + $0x4] sm:$0xf]
        %v2477 = vld [vmem:[%s1470 + $0x8] sm:$0xf]
        %v2478 = vld [vmem:[%s1470 + $0xc] sm:$0xf]
        %v2479 = vld [vmem:[%s1474] sm:$0x1]
        %v2481 = vperm.slane %v2479, 0
        %v2487 = vunpack.c.l.b16 %v2475
        %v2488 = vunpack.c.l.b16 %v2476
        %v2489 = vunpack.c.l.b16 %v2477
        %v2490 = vunpack.c.l.b16 %v2478
        %v2491 = vpack.c.b16 %v2488, %v2487
        %v2492 = vpack.c.b16 %v2490, %v2489
        %2495 = vmatpush.bf16.msra.mxu0 0
        %2496 = vmatpush.bf16.msra.mxu0 0
        %2497 = vmatpush.bf16.msra.mxu0 0
        %2498 = vmatpush.bf16.msra.mxu0 0
        %2499 = vmatpush.bf16.msra.mxu0 0
        %2500 = vmatpush.bf16.msra.mxu0 0
        %2501 = vmatpush.bf16.msra.mxu0 %v2492
        %2502 = vmatpush.bf16.msra.mxu0 %v2491
        %2503 = vmatmul.bf16.gmra.mxu0 %v2459
        %v2504 = vpop.f32.mrf.mxu0
        %v2505 = vadd.f32 %v2481, %v2504
        %v2506 = vpop.f32.mrf.mxu0
        %v2507 = vadd.f32 %v2481, %v2506
        %2508 = vdwg.mxu0
        %v2510 = vperm.slane %v1546, 0
        %v2513 = vsel %vm1654, %v2435, 0
        %v2516 = vsel %vm1654, %v2471, 0
        %v2519 = vsel %vm1654, %v2473, 0
        %2521 = vmatpush.xpose.msra.mxu0 0.0
        %2522 = vmatpush.xpose.msra.mxu0 0.0
        %2523 = vmatpush.xpose.msra.mxu0 0.0
        %2524 = vmatpush.xpose.msra.mxu0 0.0
        %2525 = vmatpush.xpose.msra.mxu0 0.0
        %2526 = vmatpush.xpose.msra.mxu0 0.0
        %2527 = vmatpush.xpose.msra.mxu0 0.0
        %2528 = vmatpush.xpose.msra.mxu0 0.0
        %2529 = vmatpush.xpose.msra.mxu0 0.0
        %2530 = vmatpush.xpose.msra.mxu0 0.0
        %2531 = vmatpush.xpose.msra.mxu0 0.0
        %2532 = vmatpush.xpose.msra.mxu0 0.0
        %2533 = vmatpush.xpose.msra.mxu0 0.0
        %2534 = vmatpush.xpose.msra.mxu0 0.0
        %2535 = vmatpush.xpose.msra.mxu0 %v2519
        %2536 = vmatpush.xpose.msra.mxu0 %v2516
        %2537 = vmatmul.f32.gmra.mxu0 %v2513
        %v2538 = vpop.f32.mrf.mxu0
        %v2539 = vadd.f32 %v2510, %v2538
        %2540 = vdwg.mxu0
        %vm2541 = vcmask 80896
        %v2542 = vsel %vm2541, %v2539, -inf
        %2543 = vmax.xlane.f32.xlu0 %v2542
        %v2544 = vpop.xlane.xlu0 %2543
        %v2545 = vsub.f32 %v2539, %v2544
        %v2546 = vmul.f32 %v2545, 1.442695
        %v2547 = vpow.pop %v2546
        %v2548 = vsel %vm2541, %v2547, 0.0
        %2549 = vadd.xlane.f32.xlu0 %v2548
        %v2550 = vpop.xlane.xlu0 %2549
        %v2551 = vrcp.pop %v2550
        %v2552 = vmul.f32 %v2550, %v2551
        %v2553 = vsub.f32 1.0, %v2552
        %v2554 = vmul.f32 %v2551, %v2553
        %v2555 = vadd.f32 %v2551, %v2554
        %vm2556 = vweird.f32 %v2550
        %vm2557 = vweird.f32 %v2551
        %vm2558 = vmor %vm2556, %vm2557
        %v2559 = vsel %vm2558, %v2551, %v2555
        %v2560 = vand.u32 2147483647, %v2550
        %vm2561 = vcmp.eq.f32.partialorder %v2560, 8.507059e+37
        %v2562 = vand.u32 %v2550, 2147483648
        %v2563 = vor.u32 1.1754944e-38, %v2562
        %v2564 = vsel %vm2561, %v2563, %v2559
        %v2565 = vmul.f32 %v2547, %v2564
        %2566 = vst.msk [vmem:[%s1528] sm:$0xff] %vm2541, %v2565
        %v2568 = vsel %vm2541, %v2565, 0
        %vm2570 = vcmask 1041408
        %v2572 = vsel %vm2570, %v2507, 0
        %2574 = vmatpush.msra.mxu0 0.0
        %2575 = vmatpush.msra.mxu0 0.0
        %2576 = vmatpush.msra.mxu0 0.0
        %2577 = vmatpush.msra.mxu0 0.0
        %2578 = vmatpush.msra.mxu0 0.0
        %2579 = vmatpush.msra.mxu0 0.0
        %2580 = vmatpush.msra.mxu0 0.0
        %2581 = vmatpush.msra.mxu0 0.0
        %2582 = vmatpush.msra.mxu0 0.0
        %2583 = vmatpush.msra.mxu0 0.0
        %2584 = vmatpush.msra.mxu0 0.0
        %2585 = vmatpush.msra.mxu0 0.0
        %2586 = vmatpush.msra.mxu0 0.0
        %2587 = vmatpush.msra.mxu0 0.0
        %2588 = vmatpush.msra.mxu0 %v2572
        %2589 = vmatpush.msra.mxu0 %v2505
        %2590 = vmatmul.f32.gmra.mxu0 %v2568
        %v2591 = vpop.f32.mrf.mxu0
        %v2592 = vadd.f32 0.0, %v2591
        %2593 = vdwg.mxu0
        %v2594 = vpack.c.bf16 %v2592, %v2592
        %v2595 = vld [vmem:[%s1479] sm:$0xf]
        %s2596 = scalar_lea.vmem %s1452, 16
        %v2597 = vld [vmem:[%s2596] sm:$0xf]
        %v2598 = vld [vmem:[%s2596 + $0x4] sm:$0xf]
        %v2599 = vld [vmem:[%s2596 + $0x8] sm:$0xf]
        %v2600 = vld [vmem:[%s2596 + $0xc] sm:$0xf]
        %s2601 = scalar_lea.vmem %s1456, 1
        %v2602 = vld [vmem:[%s2601] sm:$0x1]
        %v2604 = vperm.slane %v2602, 0
        %v2610 = vunpack.c.l.b16 %v2597
        %v2611 = vunpack.c.l.b16 %v2598
        %v2612 = vunpack.c.l.b16 %v2599
        %v2613 = vunpack.c.l.b16 %v2600
        %v2614 = vpack.c.b16 %v2611, %v2610
        %v2615 = vpack.c.b16 %v2613, %v2612
        %2618 = vmatpush.bf16.msra.mxu0 0
        %2619 = vmatpush.bf16.msra.mxu0 0
        %2620 = vmatpush.bf16.msra.mxu0 0
        %2621 = vmatpush.bf16.msra.mxu0 0
        %2622 = vmatpush.bf16.msra.mxu0 0
        %2623 = vmatpush.bf16.msra.mxu0 0
        %2624 = vmatpush.bf16.msra.mxu0 %v2615
        %2625 = vmatpush.bf16.msra.mxu0 %v2614
        %2626 = vmatmul.bf16.gmra.mxu0 %v2423
        %v2627 = vpop.f32.mrf.mxu0
        %v2628 = vadd.f32 %v2604, %v2627
        %v2629 = vpop.f32.mrf.mxu0
        %2630 = vdwg.mxu0
        %s2631 = scalar_lea.vmem %s1461, 16
        %v2632 = vld [vmem:[%s2631] sm:$0xf]
        %v2633 = vld [vmem:[%s2631 + $0x4] sm:$0xf]
        %v2634 = vld [vmem:[%s2631 + $0x8] sm:$0xf]
        %v2635 = vld [vmem:[%s2631 + $0xc] sm:$0xf]
        %s2636 = scalar_lea.vmem %s1465, 1
        %v2637 = vld [vmem:[%s2636] sm:$0x1]
        %v2639 = vperm.slane %v2637, 0
        %v2645 = vunpack.c.l.b16 %v2632
        %v2646 = vunpack.c.l.b16 %v2633
        %v2647 = vunpack.c.l.b16 %v2634
        %v2648 = vunpack.c.l.b16 %v2635
        %v2649 = vpack.c.b16 %v2646, %v2645
        %v2650 = vpack.c.b16 %v2648, %v2647
        %2653 = vmatpush.bf16.msra.mxu0 0
        %2654 = vmatpush.bf16.msra.mxu0 0
        %2655 = vmatpush.bf16.msra.mxu0 0
        %2656 = vmatpush.bf16.msra.mxu0 0
        %2657 = vmatpush.bf16.msra.mxu0 0
        %2658 = vmatpush.bf16.msra.mxu0 0
        %2659 = vmatpush.bf16.msra.mxu0 %v2650
        %2660 = vmatpush.bf16.msra.mxu0 %v2649
        %2661 = vmatmul.bf16.gmra.mxu0 %v2459
        %v2662 = vpop.f32.mrf.mxu0
        %v2663 = vadd.f32 %v2639, %v2662
        %v2664 = vpop.f32.mrf.mxu0
        %v2665 = vadd.f32 %v2639, %v2664
        %2666 = vdwg.mxu0
        %s2667 = scalar_lea.vmem %s1470, 16
        %v2668 = vld [vmem:[%s2667] sm:$0xf]
        %v2669 = vld [vmem:[%s2667 + $0x4] sm:$0xf]
        %v2670 = vld [vmem:[%s2667 + $0x8] sm:$0xf]
        %v2671 = vld [vmem:[%s2667 + $0xc] sm:$0xf]
        %s2672 = scalar_lea.vmem %s1474, 1
        %v2673 = vld [vmem:[%s2672] sm:$0x1]
        %v2675 = vperm.slane %v2673, 0
        %v2681 = vunpack.c.l.b16 %v2668
        %v2682 = vunpack.c.l.b16 %v2669
        %v2683 = vunpack.c.l.b16 %v2670
        %v2684 = vunpack.c.l.b16 %v2671
        %v2685 = vpack.c.b16 %v2682, %v2681
        %v2686 = vpack.c.b16 %v2684, %v2683
        %2689 = vmatpush.bf16.msra.mxu0 0
        %2690 = vmatpush.bf16.msra.mxu0 0
        %2691 = vmatpush.bf16.msra.mxu0 0
        %2692 = vmatpush.bf16.msra.mxu0 0
        %2693 = vmatpush.bf16.msra.mxu0 0
        %2694 = vmatpush.bf16.msra.mxu0 0
        %2695 = vmatpush.bf16.msra.mxu0 %v2686
        %2696 = vmatpush.bf16.msra.mxu0 %v2685
        %2697 = vmatmul.bf16.gmra.mxu0 %v2459
        %v2698 = vpop.f32.mrf.mxu0
        %v2699 = vadd.f32 %v2675, %v2698
        %v2700 = vpop.f32.mrf.mxu0
        %v2701 = vadd.f32 %v2675, %v2700
        %2702 = vdwg.mxu0
        %v2704 = vsel %vm1654, %v2628, 0
        %v2707 = vsel %vm1654, %v2663, 0
        %v2710 = vsel %vm1654, %v2665, 0
        %2712 = vmatpush.xpose.msra.mxu0 0.0
        %2713 = vmatpush.xpose.msra.mxu0 0.0
        %2714 = vmatpush.xpose.msra.mxu0 0.0
        %2715 = vmatpush.xpose.msra.mxu0 0.0
        %2716 = vmatpush.xpose.msra.mxu0 0.0
        %2717 = vmatpush.xpose.msra.mxu0 0.0
        %2718 = vmatpush.xpose.msra.mxu0 0.0
        %2719 = vmatpush.xpose.msra.mxu0 0.0
        %2720 = vmatpush.xpose.msra.mxu0 0.0
        %2721 = vmatpush.xpose.msra.mxu0 0.0
        %2722 = vmatpush.xpose.msra.mxu0 0.0
        %2723 = vmatpush.xpose.msra.mxu0 0.0
        %2724 = vmatpush.xpose.msra.mxu0 0.0
        %2725 = vmatpush.xpose.msra.mxu0 0.0
        %2726 = vmatpush.xpose.msra.mxu0 %v2710
        %2727 = vmatpush.xpose.msra.mxu0 %v2707
        %2728 = vmatmul.f32.gmra.mxu0 %v2704
        %v2729 = vpop.f32.mrf.mxu0
        %v2730 = vadd.f32 %v2510, %v2729
        %2731 = vdwg.mxu0
        %v2732 = vsel %vm2541, %v2730, -inf
        %2733 = vmax.xlane.f32.xlu0 %v2732
        %v2734 = vpop.xlane.xlu0 %2733
        %v2735 = vsub.f32 %v2730, %v2734
        %v2736 = vmul.f32 %v2735, 1.442695
        %v2737 = vpow.pop %v2736
        %v2738 = vsel %vm2541, %v2737, 0.0
        %2739 = vadd.xlane.f32.xlu0 %v2738
        %v2740 = vpop.xlane.xlu0 %2739
        %v2741 = vrcp.pop %v2740
        %v2742 = vmul.f32 %v2740, %v2741
        %v2743 = vsub.f32 1.0, %v2742
        %v2744 = vmul.f32 %v2741, %v2743
        %v2745 = vadd.f32 %v2741, %v2744
        %vm2746 = vweird.f32 %v2740
        %vm2747 = vweird.f32 %v2741
        %vm2748 = vmor %vm2746, %vm2747
        %v2749 = vsel %vm2748, %v2741, %v2745
        %v2750 = vand.u32 2147483647, %v2740
        %vm2751 = vcmp.eq.f32.partialorder %v2750, 8.507059e+37
        %v2752 = vand.u32 %v2740, 2147483648
        %v2753 = vor.u32 1.1754944e-38, %v2752
        %v2754 = vsel %vm2751, %v2753, %v2749
        %v2755 = vmul.f32 %v2737, %v2754
        %2756 = vst.msk [vmem:[%s1528 + $0x8] sm:$0xff] %vm2541, %v2755
        %v2758 = vsel %vm2541, %v2755, 0
        %v2761 = vsel %vm2570, %v2701, 0
        %2763 = vmatpush.msra.mxu0 0.0
        %2764 = vmatpush.msra.mxu0 0.0
        %2765 = vmatpush.msra.mxu0 0.0
        %2766 = vmatpush.msra.mxu0 0.0
        %2767 = vmatpush.msra.mxu0 0.0
        %2768 = vmatpush.msra.mxu0 0.0
        %2769 = vmatpush.msra.mxu0 0.0
        %2770 = vmatpush.msra.mxu0 0.0
        %2771 = vmatpush.msra.mxu0 0.0
        %2772 = vmatpush.msra.mxu0 0.0
        %2773 = vmatpush.msra.mxu0 0.0
        %2774 = vmatpush.msra.mxu0 0.0
        %2775 = vmatpush.msra.mxu0 0.0
        %2776 = vmatpush.msra.mxu0 0.0
        %2777 = vmatpush.msra.mxu0 %v2761
        %2778 = vmatpush.msra.mxu0 %v2699
        %2779 = vmatmul.f32.gmra.mxu0 %v2758
        %v2780 = vpop.f32.mrf.mxu0
        %v2781 = vadd.f32 0.0, %v2780
        %2782 = vdwg.mxu0
        %v2783 = vpack.c.bf16 %v2781, %v2781
        %s2784 = scalar_lea.vmem %s1479, 4
        %v2785 = vld [vmem:[%s2784] sm:$0xf]
        %v2787 = vsel %vm1654, %v2783, 0
        %v2790 = vsel %vm1916, %v2785, 0
        %2792 = vmatpush.bf16.msra.mxu0 0
        %2793 = vmatpush.bf16.msra.mxu0 0
        %2794 = vmatpush.bf16.msra.mxu0 0
        %2795 = vmatpush.bf16.msra.mxu0 0
        %2796 = vmatpush.bf16.msra.mxu0 0
        %2797 = vmatpush.bf16.msra.mxu0 0
        %2798 = vmatpush.bf16.msra.mxu0 0
        %2799 = vmatpush.bf16.msra.mxu0 %v2790
        %2800 = vmatmul.bf16.gmra.mxu0 %v2787
        %v2801 = vpop.f32.mrf.mxu0
        %v2802 = vadd.f32 0.0, %v2801
        %v2803 = vpop.f32.mrf.mxu0
        %2804 = vdwg.mxu0
        %v2806 = vsel %vm1654, %v2594, 0
        %v2809 = vsel %vm1916, %v2595, 0
        %2811 = vmatpush.bf16.msra.mxu0 0
        %2812 = vmatpush.bf16.msra.mxu0 0
        %2813 = vmatpush.bf16.msra.mxu0 0
        %2814 = vmatpush.bf16.msra.mxu0 0
        %2815 = vmatpush.bf16.msra.mxu0 0
        %2816 = vmatpush.bf16.msra.mxu0 0
        %2817 = vmatpush.bf16.msra.mxu0 0
        %2818 = vmatpush.bf16.msra.mxu0 %v2809
        %2819 = vmatmul.bf16.gmra.mxu0 %v2806
        %v2820 = vpop.f32.mrf.mxu0
        %v2821 = vadd.f32 %v2802, %v2820
        %v2822 = vpop.f32.mrf.mxu0
        %2823 = vdwg.mxu0
        %s2824 = scalar_lea.vmem %s1452, 32
        %v2825 = vld [vmem:[%s2824] sm:$0xf]
        %v2826 = vld [vmem:[%s2824 + $0x4] sm:$0xf]
        %v2827 = vld [vmem:[%s2824 + $0x8] sm:$0xf]
        %v2828 = vld [vmem:[%s2824 + $0xc] sm:$0xf]
        %s2829 = scalar_lea.vmem %s1456, 2
        %v2830 = vld [vmem:[%s2829] sm:$0x1]
        %v2832 = vperm.slane %v2830, 0
        %v2838 = vunpack.c.l.b16 %v2825
        %v2839 = vunpack.c.l.b16 %v2826
        %v2840 = vunpack.c.l.b16 %v2827
        %v2841 = vunpack.c.l.b16 %v2828
        %v2842 = vpack.c.b16 %v2839, %v2838
        %v2843 = vpack.c.b16 %v2841, %v2840
        %2846 = vmatpush.bf16.msra.mxu0 0
        %2847 = vmatpush.bf16.msra.mxu0 0
        %2848 = vmatpush.bf16.msra.mxu0 0
        %2849 = vmatpush.bf16.msra.mxu0 0
        %2850 = vmatpush.bf16.msra.mxu0 0
        %2851 = vmatpush.bf16.msra.mxu0 0
        %2852 = vmatpush.bf16.msra.mxu0 %v2843
        %2853 = vmatpush.bf16.msra.mxu0 %v2842
        %2854 = vmatmul.bf16.gmra.mxu0 %v2423
        %v2855 = vpop.f32.mrf.mxu0
        %v2856 = vadd.f32 %v2832, %v2855
        %v2857 = vpop.f32.mrf.mxu0
        %2858 = vdwg.mxu0
        %s2859 = scalar_lea.vmem %s1461, 32
        %v2860 = vld [vmem:[%s2859] sm:$0xf]
        %v2861 = vld [vmem:[%s2859 + $0x4] sm:$0xf]
        %v2862 = vld [vmem:[%s2859 + $0x8] sm:$0xf]
        %v2863 = vld [vmem:[%s2859 + $0xc] sm:$0xf]
        %s2864 = scalar_lea.vmem %s1465, 2
        %v2865 = vld [vmem:[%s2864] sm:$0x1]
        %v2867 = vperm.slane %v2865, 0
        %v2873 = vunpack.c.l.b16 %v2860
        %v2874 = vunpack.c.l.b16 %v2861
        %v2875 = vunpack.c.l.b16 %v2862
        %v2876 = vunpack.c.l.b16 %v2863
        %v2877 = vpack.c.b16 %v2874, %v2873
        %v2878 = vpack.c.b16 %v2876, %v2875
        %2881 = vmatpush.bf16.msra.mxu0 0
        %2882 = vmatpush.bf16.msra.mxu0 0
        %2883 = vmatpush.bf16.msra.mxu0 0
        %2884 = vmatpush.bf16.msra.mxu0 0
        %2885 = vmatpush.bf16.msra.mxu0 0
        %2886 = vmatpush.bf16.msra.mxu0 0
        %2887 = vmatpush.bf16.msra.mxu0 %v2878
        %2888 = vmatpush.bf16.msra.mxu0 %v2877
        %2889 = vmatmul.bf16.gmra.mxu0 %v2459
        %v2890 = vpop.f32.mrf.mxu0
        %v2891 = vadd.f32 %v2867, %v2890
        %v2892 = vpop.f32.mrf.mxu0
        %v2893 = vadd.f32 %v2867, %v2892
        %2894 = vdwg.mxu0
        %s2895 = scalar_lea.vmem %s1470, 32
        %v2896 = vld [vmem:[%s2895] sm:$0xf]
        %v2897 = vld [vmem:[%s2895 + $0x4] sm:$0xf]
        %v2898 = vld [vmem:[%s2895 + $0x8] sm:$0xf]
        %v2899 = vld [vmem:[%s2895 + $0xc] sm:$0xf]
        %s2900 = scalar_lea.vmem %s1474, 2
        %v2901 = vld [vmem:[%s2900] sm:$0x1]
        %v2903 = vperm.slane %v2901, 0
        %v2909 = vunpack.c.l.b16 %v2896
        %v2910 = vunpack.c.l.b16 %v2897
        %v2911 = vunpack.c.l.b16 %v2898
        %v2912 = vunpack.c.l.b16 %v2899
        %v2913 = vpack.c.b16 %v2910, %v2909
        %v2914 = vpack.c.b16 %v2912, %v2911
        %2917 = vmatpush.bf16.msra.mxu0 0
        %2918 = vmatpush.bf16.msra.mxu0 0
        %2919 = vmatpush.bf16.msra.mxu0 0
        %2920 = vmatpush.bf16.msra.mxu0 0
        %2921 = vmatpush.bf16.msra.mxu0 0
        %2922 = vmatpush.bf16.msra.mxu0 0
        %2923 = vmatpush.bf16.msra.mxu0 %v2914
        %2924 = vmatpush.bf16.msra.mxu0 %v2913
        %2925 = vmatmul.bf16.gmra.mxu0 %v2459
        %v2926 = vpop.f32.mrf.mxu0
        %v2927 = vadd.f32 %v2903, %v2926
        %v2928 = vpop.f32.mrf.mxu0
        %v2929 = vadd.f32 %v2903, %v2928
        %2930 = vdwg.mxu0
        %v2932 = vsel %vm1654, %v2856, 0
        %v2935 = vsel %vm1654, %v2891, 0
        %v2938 = vsel %vm1654, %v2893, 0
        %2940 = vmatpush.xpose.msra.mxu0 0.0
        %2941 = vmatpush.xpose.msra.mxu0 0.0
        %2942 = vmatpush.xpose.msra.mxu0 0.0
        %2943 = vmatpush.xpose.msra.mxu0 0.0
        %2944 = vmatpush.xpose.msra.mxu0 0.0
        %2945 = vmatpush.xpose.msra.mxu0 0.0
        %2946 = vmatpush.xpose.msra.mxu0 0.0
        %2947 = vmatpush.xpose.msra.mxu0 0.0
        %2948 = vmatpush.xpose.msra.mxu0 0.0
        %2949 = vmatpush.xpose.msra.mxu0 0.0
        %2950 = vmatpush.xpose.msra.mxu0 0.0
        %2951 = vmatpush.xpose.msra.mxu0 0.0
        %2952 = vmatpush.xpose.msra.mxu0 0.0
        %2953 = vmatpush.xpose.msra.mxu0 0.0
        %2954 = vmatpush.xpose.msra.mxu0 %v2938
        %2955 = vmatpush.xpose.msra.mxu0 %v2935
        %2956 = vmatmul.f32.gmra.mxu0 %v2932
        %v2957 = vpop.f32.mrf.mxu0
        %v2958 = vadd.f32 %v2510, %v2957
        %2959 = vdwg.mxu0
        %v2960 = vsel %vm2541, %v2958, -inf
        %2961 = vmax.xlane.f32.xlu0 %v2960
        %v2962 = vpop.xlane.xlu0 %2961
        %v2963 = vsub.f32 %v2958, %v2962
        %v2964 = vmul.f32 %v2963, 1.442695
        %v2965 = vpow.pop %v2964
        %v2966 = vsel %vm2541, %v2965, 0.0
        %2967 = vadd.xlane.f32.xlu0 %v2966
        %v2968 = vpop.xlane.xlu0 %2967
        %v2969 = vrcp.pop %v2968
        %v2970 = vmul.f32 %v2968, %v2969
        %v2971 = vsub.f32 1.0, %v2970
        %v2972 = vmul.f32 %v2969, %v2971
        %v2973 = vadd.f32 %v2969, %v2972
        %vm2974 = vweird.f32 %v2968
        %vm2975 = vweird.f32 %v2969
        %vm2976 = vmor %vm2974, %vm2975
        %v2977 = vsel %vm2976, %v2969, %v2973
        %v2978 = vand.u32 2147483647, %v2968
        %vm2979 = vcmp.eq.f32.partialorder %v2978, 8.507059e+37
        %v2980 = vand.u32 %v2968, 2147483648
        %v2981 = vor.u32 1.1754944e-38, %v2980
        %v2982 = vsel %vm2979, %v2981, %v2977
        %v2983 = vmul.f32 %v2965, %v2982
        %2984 = vst.msk [vmem:[%s1528 + $0x10] sm:$0xff] %vm2541, %v2983
        %v2986 = vsel %vm2541, %v2983, 0
        %v2989 = vsel %vm2570, %v2929, 0
        %2991 = vmatpush.msra.mxu0 0.0
        %2992 = vmatpush.msra.mxu0 0.0
        %2993 = vmatpush.msra.mxu0 0.0
        %2994 = vmatpush.msra.mxu0 0.0
        %2995 = vmatpush.msra.mxu0 0.0
        %2996 = vmatpush.msra.mxu0 0.0
        %2997 = vmatpush.msra.mxu0 0.0
        %2998 = vmatpush.msra.mxu0 0.0
        %2999 = vmatpush.msra.mxu0 0.0
        %3000 = vmatpush.msra.mxu0 0.0
        %3001 = vmatpush.msra.mxu0 0.0
        %3002 = vmatpush.msra.mxu0 0.0
        %3003 = vmatpush.msra.mxu0 0.0
        %3004 = vmatpush.msra.mxu0 0.0
        %3005 = vmatpush.msra.mxu0 %v2989
        %3006 = vmatpush.msra.mxu0 %v2927
        %3007 = vmatmul.f32.gmra.mxu0 %v2986
        %v3008 = vpop.f32.mrf.mxu0
        %v3009 = vadd.f32 0.0, %v3008
        %3010 = vdwg.mxu0
        %v3011 = vpack.c.bf16 %v3009, %v3009
        %s3012 = scalar_lea.vmem %s1479, 8
        %v3013 = vld [vmem:[%s3012] sm:$0xf]
        %v3015 = vsel %vm1654, %v3011, 0
        %v3018 = vsel %vm1916, %v3013, 0
        %3020 = vmatpush.bf16.msra.mxu0 0
        %3021 = vmatpush.bf16.msra.mxu0 0
        %3022 = vmatpush.bf16.msra.mxu0 0
        %3023 = vmatpush.bf16.msra.mxu0 0
        %3024 = vmatpush.bf16.msra.mxu0 0
        %3025 = vmatpush.bf16.msra.mxu0 0
        %3026 = vmatpush.bf16.msra.mxu0 0
        %3027 = vmatpush.bf16.msra.mxu0 %v3018
        %3028 = vmatmul.bf16.gmra.mxu0 %v3015
        %v3029 = vpop.f32.mrf.mxu0
        %v3030 = vadd.f32 0.0, %v3029
        %v3031 = vpop.f32.mrf.mxu0
        %3032 = vdwg.mxu0
        %v3033 = vadd.f32 %v2821, %v3030
        %s3034 = scalar_lea.vmem %s1452, 48
        %v3035 = vld [vmem:[%s3034] sm:$0xf]
        %v3036 = vld [vmem:[%s3034 + $0x4] sm:$0xf]
        %v3037 = vld [vmem:[%s3034 + $0x8] sm:$0xf]
        %v3038 = vld [vmem:[%s3034 + $0xc] sm:$0xf]
        %s3039 = scalar_lea.vmem %s1456, 3
        %v3040 = vld [vmem:[%s3039] sm:$0x1]
        %v3042 = vperm.slane %v3040, 0
        %v3048 = vunpack.c.l.b16 %v3035
        %v3049 = vunpack.c.l.b16 %v3036
        %v3050 = vunpack.c.l.b16 %v3037
        %v3051 = vunpack.c.l.b16 %v3038
        %v3052 = vpack.c.b16 %v3049, %v3048
        %v3053 = vpack.c.b16 %v3051, %v3050
        %3056 = vmatpush.bf16.msra.mxu0 0
        %3057 = vmatpush.bf16.msra.mxu0 0
        %3058 = vmatpush.bf16.msra.mxu0 0
        %3059 = vmatpush.bf16.msra.mxu0 0
        %3060 = vmatpush.bf16.msra.mxu0 0
        %3061 = vmatpush.bf16.msra.mxu0 0
        %3062 = vmatpush.bf16.msra.mxu0 %v3053
        %3063 = vmatpush.bf16.msra.mxu0 %v3052
        %3064 = vmatmul.bf16.gmra.mxu0 %v2423
        %v3065 = vpop.f32.mrf.mxu0
        %v3066 = vadd.f32 %v3042, %v3065
        %v3067 = vpop.f32.mrf.mxu0
        %3068 = vdwg.mxu0
        %s3069 = scalar_lea.vmem %s1461, 48
        %v3070 = vld [vmem:[%s3069] sm:$0xf]
        %v3071 = vld [vmem:[%s3069 + $0x4] sm:$0xf]
        %v3072 = vld [vmem:[%s3069 + $0x8] sm:$0xf]
        %v3073 = vld [vmem:[%s3069 + $0xc] sm:$0xf]
        %s3074 = scalar_lea.vmem %s1465, 3
        %v3075 = vld [vmem:[%s3074] sm:$0x1]
        %v3077 = vperm.slane %v3075, 0
        %v3083 = vunpack.c.l.b16 %v3070
        %v3084 = vunpack.c.l.b16 %v3071
        %v3085 = vunpack.c.l.b16 %v3072
        %v3086 = vunpack.c.l.b16 %v3073
        %v3087 = vpack.c.b16 %v3084, %v3083
        %v3088 = vpack.c.b16 %v3086, %v3085
        %3091 = vmatpush.bf16.msra.mxu0 0
        %3092 = vmatpush.bf16.msra.mxu0 0
        %3093 = vmatpush.bf16.msra.mxu0 0
        %3094 = vmatpush.bf16.msra.mxu0 0
        %3095 = vmatpush.bf16.msra.mxu0 0
        %3096 = vmatpush.bf16.msra.mxu0 0
        %3097 = vmatpush.bf16.msra.mxu0 %v3088
        %3098 = vmatpush.bf16.msra.mxu0 %v3087
        %3099 = vmatmul.bf16.gmra.mxu0 %v2459
        %v3100 = vpop.f32.mrf.mxu0
        %v3101 = vadd.f32 %v3077, %v3100
        %v3102 = vpop.f32.mrf.mxu0
        %v3103 = vadd.f32 %v3077, %v3102
        %3104 = vdwg.mxu0
        %s3105 = scalar_lea.vmem %s1470, 48
        %v3106 = vld [vmem:[%s3105] sm:$0xf]
        %v3107 = vld [vmem:[%s3105 + $0x4] sm:$0xf]
        %v3108 = vld [vmem:[%s3105 + $0x8] sm:$0xf]
        %v3109 = vld [vmem:[%s3105 + $0xc] sm:$0xf]
        %s3110 = scalar_lea.vmem %s1474, 3
        %v3111 = vld [vmem:[%s3110] sm:$0x1]
        %v3113 = vperm.slane %v3111, 0
        %v3119 = vunpack.c.l.b16 %v3106
        %v3120 = vunpack.c.l.b16 %v3107
        %v3121 = vunpack.c.l.b16 %v3108
        %v3122 = vunpack.c.l.b16 %v3109
        %v3123 = vpack.c.b16 %v3120, %v3119
        %v3124 = vpack.c.b16 %v3122, %v3121
        %3127 = vmatpush.bf16.msra.mxu0 0
        %3128 = vmatpush.bf16.msra.mxu0 0
        %3129 = vmatpush.bf16.msra.mxu0 0
        %3130 = vmatpush.bf16.msra.mxu0 0
        %3131 = vmatpush.bf16.msra.mxu0 0
        %3132 = vmatpush.bf16.msra.mxu0 0
        %3133 = vmatpush.bf16.msra.mxu0 %v3124
        %3134 = vmatpush.bf16.msra.mxu0 %v3123
        %3135 = vmatmul.bf16.gmra.mxu0 %v2459
        %v3136 = vpop.f32.mrf.mxu0
        %v3137 = vadd.f32 %v3113, %v3136
        %v3138 = vpop.f32.mrf.mxu0
        %v3139 = vadd.f32 %v3113, %v3138
        %3140 = vdwg.mxu0
        %v3142 = vsel %vm1654, %v3066, 0
        %v3145 = vsel %vm1654, %v3101, 0
        %v3148 = vsel %vm1654, %v3103, 0
        %3150 = vmatpush.xpose.msra.mxu0 0.0
        %3151 = vmatpush.xpose.msra.mxu0 0.0
        %3152 = vmatpush.xpose.msra.mxu0 0.0
        %3153 = vmatpush.xpose.msra.mxu0 0.0
        %3154 = vmatpush.xpose.msra.mxu0 0.0
        %3155 = vmatpush.xpose.msra.mxu0 0.0
        %3156 = vmatpush.xpose.msra.mxu0 0.0
        %3157 = vmatpush.xpose.msra.mxu0 0.0
        %3158 = vmatpush.xpose.msra.mxu0 0.0
        %3159 = vmatpush.xpose.msra.mxu0 0.0
        %3160 = vmatpush.xpose.msra.mxu0 0.0
        %3161 = vmatpush.xpose.msra.mxu0 0.0
        %3162 = vmatpush.xpose.msra.mxu0 0.0
        %3163 = vmatpush.xpose.msra.mxu0 0.0
        %3164 = vmatpush.xpose.msra.mxu0 %v3148
        %3165 = vmatpush.xpose.msra.mxu0 %v3145
        %3166 = vmatmul.f32.gmra.mxu0 %v3142
        %v3167 = vpop.f32.mrf.mxu0
        %v3168 = vadd.f32 %v2510, %v3167
        %3169 = vdwg.mxu0
        %v3170 = vsel %vm2541, %v3168, -inf
        %3171 = vmax.xlane.f32.xlu0 %v3170
        %v3172 = vpop.xlane.xlu0 %3171
        %v3173 = vsub.f32 %v3168, %v3172
        %v3174 = vmul.f32 %v3173, 1.442695
        %v3175 = vpow.pop %v3174
        %v3176 = vsel %vm2541, %v3175, 0.0
        %3177 = vadd.xlane.f32.xlu0 %v3176
        %v3178 = vpop.xlane.xlu0 %3177
        %v3179 = vrcp.pop %v3178
        %v3180 = vmul.f32 %v3178, %v3179
        %v3181 = vsub.f32 1.0, %v3180
        %v3182 = vmul.f32 %v3179, %v3181
        %v3183 = vadd.f32 %v3179, %v3182
        %vm3184 = vweird.f32 %v3178
        %vm3185 = vweird.f32 %v3179
        %vm3186 = vmor %vm3184, %vm3185
        %v3187 = vsel %vm3186, %v3179, %v3183
        %v3188 = vand.u32 2147483647, %v3178
        %vm3189 = vcmp.eq.f32.partialorder %v3188, 8.507059e+37
        %v3190 = vand.u32 %v3178, 2147483648
        %v3191 = vor.u32 1.1754944e-38, %v3190
        %v3192 = vsel %vm3189, %v3191, %v3187
        %v3193 = vmul.f32 %v3175, %v3192
        %3194 = vst.msk [vmem:[%s1528 + $0x18] sm:$0xff] %vm2541, %v3193
        %v3196 = vsel %vm2541, %v3193, 0
        %v3199 = vsel %vm2570, %v3139, 0
        %3201 = vmatpush.msra.mxu0 0.0
        %3202 = vmatpush.msra.mxu0 0.0
        %3203 = vmatpush.msra.mxu0 0.0
        %3204 = vmatpush.msra.mxu0 0.0
        %3205 = vmatpush.msra.mxu0 0.0
        %3206 = vmatpush.msra.mxu0 0.0
        %3207 = vmatpush.msra.mxu0 0.0
        %3208 = vmatpush.msra.mxu0 0.0
        %3209 = vmatpush.msra.mxu0 0.0
        %3210 = vmatpush.msra.mxu0 0.0
        %3211 = vmatpush.msra.mxu0 0.0
        %3212 = vmatpush.msra.mxu0 0.0
        %3213 = vmatpush.msra.mxu0 0.0
        %3214 = vmatpush.msra.mxu0 0.0
        %3215 = vmatpush.msra.mxu0 %v3199
        %3216 = vmatpush.msra.mxu0 %v3137
        %3217 = vmatmul.f32.gmra.mxu0 %v3196
        %v3218 = vpop.f32.mrf.mxu0
        %v3219 = vadd.f32 0.0, %v3218
        %3220 = vdwg.mxu0
        %v3221 = vpack.c.bf16 %v3219, %v3219
        %s3222 = scalar_lea.vmem %s1479, 12
        %v3223 = vld [vmem:[%s3222] sm:$0xf]
        %v3225 = vsel %vm1654, %v3221, 0
        %v3228 = vsel %vm1916, %v3223, 0
        %3230 = vmatpush.bf16.msra.mxu0 0
        %3231 = vmatpush.bf16.msra.mxu0 0
        %3232 = vmatpush.bf16.msra.mxu0 0
        %3233 = vmatpush.bf16.msra.mxu0 0
        %3234 = vmatpush.bf16.msra.mxu0 0
        %3235 = vmatpush.bf16.msra.mxu0 0
        %3236 = vmatpush.bf16.msra.mxu0 0
        %3237 = vmatpush.bf16.msra.mxu0 %v3228
        %3238 = vmatmul.bf16.gmra.mxu0 %v3225
        %v3239 = vpop.f32.mrf.mxu0
        %v3240 = vadd.f32 0.0, %v3239
        %v3241 = vpop.f32.mrf.mxu0
        %3242 = vdwg.mxu0
        %v3243 = vadd.f32 %v3033, %v3240
        %v3244 = vld [vmem:[%s1482] sm:$0x1]
        %v3246 = vperm.slane %v3244, 0
        %v3248 = vadd.f32 %v3243, %v3246
        %v3249 = vadd.f32 %v2400, %v3248
        %v3250 = vsel %vm1568, %v3249, 0.0
        %3251 = vadd.xlane.f32.xlu0 %v3250
        %v3252 = vpop.xlane.xlu0 %3251
        %v3253 = vmul.f32 %v3252, %v2371
        %v3254 = vsub.f32 %v3249, %v3253
        %v3255 = vmul.f32 %v3254, %v3254
        %v3256 = vsel %vm1568, %v3255, 0.0
        %3257 = vadd.xlane.f32.xlu0 %v3256
        %v3258 = vpop.xlane.xlu0 %3257
        %v3259 = vmul.f32 %v3258, %v2371
        %v3260 = vadd.f32 %v3259, 1e-05
        %v3261 = vrsqrt.pop %v3260
        %v3262 = vmul.f32 %v3261, %v3260
        %v3263 = vmul.f32 %v3262, %v3261
        %v3264 = vmul.f32 0.5, %v3263
        %v3265 = vsub.f32 1.5, %v3264
        %v3266 = vmul.f32 %v3261, %v3265
        %vm3267 = vweird.f32 %v3260
        %vm3268 = vweird.f32 %v3261
        %vm3269 = vmor %vm3267, %vm3268
        %v3270 = vsel %vm3269, %v3261, %v3266
        %v3271 = vmul.f32 %v3254, %v3270
        %v3272 = vld [vmem:[%s1485] sm:$0x1]
        %v3274 = vperm.slane %v3272, 0
        %v3276 = vmul.f32 %v3271, %v3274
        %v3277 = vld [vmem:[%s1488] sm:$0x1]
        %v3279 = vperm.slane %v3277, 0
        %v3281 = vadd.f32 %v3276, %v3279
        %v3282 = vpack.c.bf16 %v3281, %v3281
        %v3283 = vld [vmem:[%s1493] sm:$0xf]
        %v3284 = vld [vmem:[%s1493 + $0x4] sm:$0xf]
        %v3285 = vld [vmem:[%s1493 + $0x8] sm:$0xf]
        %v3286 = vld [vmem:[%s1493 + $0xc] sm:$0xf]
        %v3287 = vld [vmem:[%s1496] sm:$0x1]
        %v3289 = vperm.slane %v3287, 0
        %v3295 = vunpack.c.l.b16 %v3283
        %v3296 = vunpack.c.l.b16 %v3284
        %v3297 = vunpack.c.l.b16 %v3285
        %v3298 = vunpack.c.l.b16 %v3286
        %v3299 = vpack.c.b16 %v3296, %v3295
        %v3300 = vpack.c.b16 %v3298, %v3297
        %v3304 = vsel %vm1568, %v3282, 0
        %3306 = vmatpush.bf16.msra.mxu0 0
        %3307 = vmatpush.bf16.msra.mxu0 0
        %3308 = vmatpush.bf16.msra.mxu0 0
        %3309 = vmatpush.bf16.msra.mxu0 0
        %3310 = vmatpush.bf16.msra.mxu0 0
        %3311 = vmatpush.bf16.msra.mxu0 0
        %3312 = vmatpush.bf16.msra.mxu0 %v3300
        %3313 = vmatpush.bf16.msra.mxu0 %v3299
        %3314 = vmatmul.bf16.gmra.mxu0 %v3304
        %v3315 = vpop.f32.mrf.mxu0
        %v3316 = vadd.f32 %v3289, %v3315
        %v3317 = vpop.f32.mrf.mxu0
        %3318 = vdwg.mxu0
        %v3319 = vmax.f32 %v3316, 0.0
        %v3320 = vpack.c.bf16 %v3319, %v3319
        %v3321 = vld [vmem:[%s1501] sm:$0xf]
        %v3322 = vld [vmem:[%s1501 + $0x4] sm:$0xf]
        %v3323 = vld [vmem:[%s1501 + $0x8] sm:$0xf]
        %v3324 = vld [vmem:[%s1501 + $0xc] sm:$0xf]
        %v3325 = vld [vmem:[%s1501 + $0x10] sm:$0xf]
        %v3326 = vld [vmem:[%s1501 + $0x14] sm:$0xf]
        %v3327 = vld [vmem:[%s1501 + $0x18] sm:$0xf]
        %v3328 = vld [vmem:[%s1501 + $0x1c] sm:$0xf]
        %v3329 = vld [vmem:[%s1504] sm:$0x1]
        %v3331 = vperm.slane %v3329, 0
        %v3341 = vunpack.c.l.b16 %v3321
        %v3342 = vunpack.c.l.b16 %v3322
        %v3343 = vunpack.c.l.b16 %v3323
        %v3344 = vunpack.c.l.b16 %v3324
        %v3345 = vunpack.c.l.b16 %v3325
        %v3346 = vunpack.c.l.b16 %v3326
        %v3347 = vunpack.c.l.b16 %v3327
        %v3348 = vunpack.c.l.b16 %v3328
        %v3349 = vpack.c.b16 %v3342, %v3341
        %v3350 = vpack.c.b16 %v3344, %v3343
        %v3351 = vpack.c.b16 %v3346, %v3345
        %v3352 = vpack.c.b16 %v3348, %v3347
        %vm3357 = vcmask 523264
        %v3359 = vsel %vm3357, %v3320, 0
        %3361 = vmatpush.bf16.msra.mxu0 0
        %3362 = vmatpush.bf16.msra.mxu0 0
        %3363 = vmatpush.bf16.msra.mxu0 0
        %3364 = vmatpush.bf16.msra.mxu0 0
        %3365 = vmatpush.bf16.msra.mxu0 %v3352
        %3366 = vmatpush.bf16.msra.mxu0 %v3351
        %3367 = vmatpush.bf16.msra.mxu0 %v3350
        %3368 = vmatpush.bf16.msra.mxu0 %v3349
        %3369 = vmatmul.bf16.gmra.mxu0 %v3359
        %v3370 = vpop.f32.mrf.mxu0
        %v3371 = vadd.f32 %v3331, %v3370
        %v3372 = vpop.f32.mrf.mxu0
        %3373 = vdwg.mxu0
        %v3374 = vadd.f32 %v3281, %v3371
        %v3375 = vsel %vm1568, %v3374, 0.0
        %3376 = vadd.xlane.f32.xlu0 %v3375
        %v3377 = vpop.xlane.xlu0 %3376
        %v3378 = vmul.f32 %v3377, %v2371
        %v3379 = vsub.f32 %v3374, %v3378
        %v3380 = vmul.f32 %v3379, %v3379
        %v3381 = vsel %vm1568, %v3380, 0.0
        %3382 = vadd.xlane.f32.xlu0 %v3381
        %v3383 = vpop.xlane.xlu0 %3382
        %v3384 = vmul.f32 %v3383, %v2371
        %v3385 = vadd.f32 %v3384, 1e-05
        %v3386 = vrsqrt.pop %v3385
        %v3387 = vmul.f32 %v3386, %v3385
        %v3388 = vmul.f32 %v3387, %v3386
        %v3389 = vmul.f32 0.5, %v3388
        %v3390 = vsub.f32 1.5, %v3389
        %v3391 = vmul.f32 %v3386, %v3390
        %vm3392 = vweird.f32 %v3385
        %vm3393 = vweird.f32 %v3386
        %vm3394 = vmor %vm3392, %vm3393
        %v3395 = vsel %vm3394, %v3386, %v3391
        %v3396 = vmul.f32 %v3379, %v3395
        %v3397 = vld [vmem:[%s1507] sm:$0x1]
        %v3399 = vperm.slane %v3397, 0
        %v3401 = vmul.f32 %v3396, %v3399
        %v3402 = vld [vmem:[%s1510] sm:$0x1]
        %v3404 = vperm.slane %v3402, 0
        %v3406 = vadd.f32 %v3401, %v3404
        %3407 = vst.msk [vmem:[#allocation2] sm:$0xff] %vm1568, %v3406
        %3408 = vst.msk [vmem:[%s1369] sm:$0xff] %vm1568, %v3406
        %s3409 = sand.u32 %s880, 1
        %s3410 = scalar_lea.sflag [#allocation4], %s3409
        %s3411 = sand.u32 %s880, 1
        %s3412 = smul.addr %s3411, 8
        %s3413 = scalar_lea.vmem [#allocation3], %s3412
        %p3414 = scmp.lt.s32.totalorder %s85, 1
        %s3415 = scalar_select %p3414, %s85, 1
        %p3416 = scmp.lt.s32.totalorder %s84, 1
        %s3417 = scalar_select %p3416, %s84, 1
        %s3418 = smul.addr %s3417, 4
        %s3419 = smul.addr %s3415, 8
        %s3420 = sadd.s32 %s3418, %s3419
        %s3421 = smul.addr %s3420, 8
        %s3422 = scalar_lea.vmem %s63, %s3421
        %p3423 = scmp.lt.s32.totalorder %s85, 1
        %s3424 = scalar_select %p3423, %s85, 1
        %p3425 = scmp.lt.s32.totalorder %s84, 1
        %s3426 = scalar_select %p3425, %s84, 1
        %s3427 = smul.addr %s3426, 4
        %s3428 = smul.addr %s3424, 8
        %s3429 = sadd.s32 %s3427, %s3428
        %s3430 = smul.addr %s3429, 8
        %s3431 = scalar_lea.vmem %s65, %s3430
        // Predicated region
        $region145: #{decoder_forward.1} parent=139 // pred_check
          %p3432 = pneg %p890
        $region146: #{decoder_forward.1} parent=139 // pred_check_branch
          %3434 = sbr.rel (%p3432) target = $region148
        $region147: #{decoder_forward.1} parent=139 // pred_region
          %3436 = vsyncadd %s3410, 0
          %s3437 = smul.addr %s84, 8
          %s3438 = scalar_lea.hbm %s61, %s3437
          %s3440 = sshll.u32 %s3413, 4
          %s3441 = int_to_ptr.vmem [resolvable:$true] %s3440
          %s3442 = sshll.u32 %s3438, 4
          %s3443 = int_to_ptr.hbm [resolvable:$true] %s3442
          %3445 = dma.vmem_to_hbm [thread:$0]  %s3441, 128, %s3443, %s3410
        $region148: #{decoder_forward.1} parent=139 // pred_fallthru
          _
        // Predicated region
        $region149: #{decoder_forward.1} parent=139 // pred_check
          %p3446 = pneg %p918
        $region150: #{decoder_forward.1} parent=139 // pred_check_branch
          %3448 = sbr.rel (%p3446) target = $region152
        $region151: #{decoder_forward.1} parent=139 // pred_region
          _
        $region152: #{decoder_forward.1} parent=139 // pred_fallthru
          _
        // Predicated region
        $region153: #{decoder_forward.1} parent=139 // pred_check
          %p3449 = pneg %p946
        $region154: #{decoder_forward.1} parent=139 // pred_check_branch
          %3451 = sbr.rel (%p3449) target = $region156
        $region155: #{decoder_forward.1} parent=139 // pred_region
          _
        $region156: #{decoder_forward.1} parent=139 // pred_fallthru
          _
      $region140: #{decoder_forward.1} parent=5 // pred_fallthru
        _
      %p3452 = scmp.le.s32.totalorder 2, %s75
      // Predicated region
      $region157: #{decoder_forward.1} parent=5 // pred_check
        %p3453 = pneg %p3452
      $region158: #{decoder_forward.1} parent=5 // pred_check_branch
        %3455 = sbr.rel (%p3453) target = $region160
      $region159: #{decoder_forward.1} parent=5 // pred_region
        %s3456 = ssub.s32 %s75, 2
        // Predicated region
        $region161: #{decoder_forward.1} parent=159 // pred_check
          %p3457 = pneg %p896
        $region162: #{decoder_forward.1} parent=159 // pred_check_branch
          %3459 = sbr.rel (%p3457) target = $region164
        $region163: #{decoder_forward.1} parent=159 // pred_region
          %s3460 = sand.u32 %s881, 1
          %s3461 = scalar_lea.sflag [#allocation4], %s3460
          %s3462 = sand.u32 %s881, 1
          %s3463 = smul.addr %s3462, 8
          %s3464 = scalar_lea.vmem [#allocation3], %s3463
          %3466 = dma.done %s3461, 128
        $region164: #{decoder_forward.1} parent=159 // pred_fallthru
          _
        // Predicated region
        $region165: #{decoder_forward.1} parent=159 // pred_check
          %p3467 = pneg %p924
        $region166: #{decoder_forward.1} parent=159 // pred_check_branch
          %3469 = sbr.rel (%p3467) target = $region168
        $region167: #{decoder_forward.1} parent=159 // pred_region
          %p3470 = scmp.lt.s32.totalorder %s87, 1
          %s3471 = scalar_select %p3470, %s87, 1
          %p3472 = scmp.lt.s32.totalorder %s86, 1
          %s3473 = scalar_select %p3472, %s86, 1
          %s3474 = smul.addr %s3473, 4
          %s3475 = smul.addr %s3471, 8
          %s3476 = sadd.s32 %s3474, %s3475
          %s3477 = smul.addr %s3476, 8
          %s3478 = scalar_lea.vmem %s63, %s3477
        $region168: #{decoder_forward.1} parent=159 // pred_fallthru
          _
        // Predicated region
        $region169: #{decoder_forward.1} parent=159 // pred_check
          %p3479 = pneg %p952
        $region170: #{decoder_forward.1} parent=159 // pred_check_branch
          %3481 = sbr.rel (%p3479) target = $region172
        $region171: #{decoder_forward.1} parent=159 // pred_region
          %p3482 = scmp.lt.s32.totalorder %s87, 1
          %s3483 = scalar_select %p3482, %s87, 1
          %p3484 = scmp.lt.s32.totalorder %s86, 1
          %s3485 = scalar_select %p3484, %s86, 1
          %s3486 = smul.addr %s3485, 4
          %s3487 = smul.addr %s3483, 8
          %s3488 = sadd.s32 %s3486, %s3487
          %s3489 = smul.addr %s3488, 8
          %s3490 = scalar_lea.vmem %s65, %s3489
        $region172: #{decoder_forward.1} parent=159 // pred_fallthru
          _
      $region160: #{decoder_forward.1} parent=5 // pred_fallthru
        _
    $region6: #{decoder_forward.1} parent=1 // loop_footer
      %s79 = sadd.s32 1, %s75
    $region7: #{decoder_forward.1} parent=1 // loop_footer_branch
      %74 = sbr.rel target = $region3
    $region8: #{decoder_forward.1} parent=1 // loop_exit
      _
    %3491 = vsyncpa [#allocation4], 1
    %s3492 = scalar_lea.sflag [#allocation4], 1
    %3493 = vsyncpa %s3492, 1

</llo_original>
